<compile_context>
chip_gen: v6e
topology: v6e:2x2x1
jax: 0.10.0
libtpu: 0.0.40
codegen_flags: <defaults>
</compile_context>

<pallas_src>
import functools

import numpy as np
import jax
import jax.numpy as jnp
from jax import lax
from jax.experimental import pallas as pl
from jax.experimental.pallas import tpu as pltpu  # noqa: F401  (TPU backend)


def _round_up(x, m):
    return (x + m - 1) // m * m


def _conv_geometry(input_shape):
    C, H, W = input_shape
    h1 = (H - 8) // 4 + 1
    w1 = (W - 8) // 4 + 1
    h2 = (h1 - 4) // 2 + 1
    w2 = (w1 - 4) // 2 + 1
    h3 = (h2 - 3) // 1 + 1
    w3 = (w2 - 3) // 1 + 1
    return (h1, w1), (h2, w2), (h3, w3)


# ----------------------------- fused Pallas kernel -------------------------- #
def _fused_forward_kernel(p1_ref, w1_ref, b1_ref, w2_ref, b2_ref,
                          w3_ref, b3_ref, wh1_ref, bh1_ref, wh2_ref, bh2_ref,
                          o_ref, *, nb, n_pos2, n_k2, cin2, n_pos3, cin3):
    f32 = jnp.float32
    # If exact f32 accumulation mattered, add precision=lax.Precision.HIGHEST.

    # conv1: one MXU matmul on the duplicated im2col patch matrix.
    h1 = jnp.dot(p1_ref[...], w1_ref[...], preferred_element_type=f32)
    h1 = jnp.maximum(h1 + b1_ref[...], 0.0)          # (n_k2*n_pos2*nb, cout1)

    # conv2: sum over the 16 kernel positions; each block is a contiguous,
    # sublane-aligned row slice (n_pos2*nb rows, nb is a multiple of 8).
    blk = n_pos2 * nb
    acc2 = jnp.dot(h1[:blk, :], w2_ref[:cin2, :], preferred_element_type=f32)
    for ij in range(1, n_k2):
        acc2 = acc2 + jnp.dot(h1[ij * blk:(ij + 1) * blk, :],
                              w2_ref[ij * cin2:(ij + 1) * cin2, :],
                              preferred_element_type=f32)
    h2 = jnp.maximum(acc2 + b2_ref[...], 0.0)         # (n_pos2*nb, cout2)

    # conv3 (1x1 spatial output): contract over all spatial positions.
    acc3 = jnp.dot(h2[:nb, :], w3_ref[:cin3, :], preferred_element_type=f32)
    for s in range(1, n_pos3):
        acc3 = acc3 + jnp.dot(h2[s * nb:(s + 1) * nb, :],
                              w3_ref[s * cin3:(s + 1) * cin3, :],
                              preferred_element_type=f32)
    h3 = jnp.maximum(acc3 + b3_ref[...], 0.0)         # (nb, cout3) = flat conv out

    # fused policy|value heads -> single lane-dense (nb, 128) store.
    hh = jnp.dot(h3, wh1_ref[...], preferred_element_type=f32)
    hh = jnp.maximum(hh + bh1_ref[...], 0.0)          # (nb, 1024)
    out = jnp.dot(hh, wh2_ref[...], preferred_element_type=f32) + bh2_ref[...]
    o_ref[...] = out.astype(o_ref.dtype)


# --------------------------- wrapper-side packing --------------------------- #
def _build_gather_indices(input_shape):
    """Indices for the duplicated conv1 im2col matrix.

    Rows ordered (conv2 kernel pos i2,j2 ; conv2 out pos oh2,ow2) so the conv2
    stage inside the kernel is a plain sum of contiguous row-block matmuls.
    Cols ordered (kh, kw, cin) to match the reshaped conv1 weight.
    """
    C, H, W = input_shape
    _, (h2o, w2o), _ = _conv_geometry((C, H, W))
    i2, j2, oh2, ow2 = np.meshgrid(np.arange(4), np.arange(4),
                                   np.arange(h2o), np.arange(w2o), indexing="ij")
    h1p = (2 * oh2 + i2).reshape(-1)                  # conv1-output row per patch
    w1p = (2 * ow2 + j2).reshape(-1)
    i1, j1, ci = np.meshgrid(np.arange(8), np.arange(8), np.arange(C),
                             indexing="ij")
    hh = 4 * h1p[:, None] + i1.reshape(-1)[None, :]
    ww = 4 * w1p[:, None] + j1.reshape(-1)[None, :]
    cc = ci.reshape(-1)[None, :]
    flat = hh * (W * C) + ww * C + cc                 # NHWC-flat index, (rows, 8*8*C)
    return jnp.asarray(flat, dtype=jnp.int32)


def _pack_params(params):
    cout1 = params["c1w"].shape[0]
    cout2 = params["c2w"].shape[0]
    cout3 = params["c3w"].shape[0]
    hp = params["p1w"].shape[1]
    hv = params["v1w"].shape[1]
    n_actions = params["p2w"].shape[1]
    head_n = 128                                      # lane-dense padded head width
    assert n_actions + 1 <= head_n
    w1 = jnp.transpose(params["c1w"], (2, 3, 1, 0)).reshape(-1, cout1)
    w2 = jnp.transpose(params["c2w"], (2, 3, 1, 0)).reshape(-1, cout2)
    w3 = jnp.transpose(params["c3w"], (2, 3, 1, 0)).reshape(-1, cout3)
    wh1 = jnp.concatenate([params["p1w"], params["v1w"]], axis=1)   # (64, hp+hv)
    bh1 = jnp.concatenate([params["p1b"], params["v1b"]], axis=0)
    wh2 = jnp.zeros((hp + hv, head_n), jnp.float32)
    wh2 = wh2.at[:hp, :n_actions].set(params["p2w"])
    wh2 = wh2.at[hp:, n_actions].set(params["v2w"][:, 0])
    bh2 = jnp.zeros((head_n,), jnp.float32)
    bh2 = bh2.at[:n_actions].set(params["p2b"])
    bh2 = bh2.at[n_actions].set(params["v2b"][0])
    return dict(
        w1=w1, b1=params["c1b"].reshape(1, -1),
        w2=w2, b2=params["c2b"].reshape(1, -1),
        w3=w3, b3=params["c3b"].reshape(1, -1),
        wh1=wh1, bh1=bh1.reshape(1, -1),
        wh2=wh2, bh2=bh2.reshape(1, -1),
    )


# ---------------------------------- forward --------------------------------- #
def forward(params, x_nchw):
    """Matches net.forward: returns (logits, value). One fused pallas_call."""
    N, C, H, W = x_nchw.shape
    _, (h2o, w2o), (h3o, w3o) = _conv_geometry((C, H, W))
    assert h3o == 1 and w3o == 1, "fused kernel assumes 1x1 conv3 output"
    # TODO(synk): (h3o, w3o) > 1 would need channel-major flatten in-kernel.
    n_actions = params["p2w"].shape[1]
    nb = _round_up(N, 8)                              # sublane-aligned batch

    # One-time XLA glue: NHWC flatten + single gather -> duplicated conv1
    # im2col matrix, rows ordered (conv2 kpos, conv2 out pos, batch).
    x = jnp.transpose(x_nchw, (0, 2, 3, 1)).reshape(N, H * W * C)
    if nb != N:
        x = jnp.pad(x, ((0, nb - N), (0, 0)))
    idx = _build_gather_indices((C, H, W))            # (16*h2o*w2o, 8*8*C)
    rows_sp, kcols = idx.shape
    p1 = x[:, idx]                                    # (nb, rows_sp, kcols)
    p1 = jnp.transpose(p1, (1, 0, 2)).reshape(rows_sp * nb, kcols)

    pk = _pack_params(params)
    head_n = pk["wh2"].shape[1]
    cout1 = pk["w1"].shape[1]
    cout2 = pk["w2"].shape[1]

    kernel = functools.partial(
        _fused_forward_kernel, nb=nb, n_pos2=h2o * w2o, n_k2=4 * 4,
        cin2=cout1, n_pos3=h2o * w2o, cin3=cout2)

    args = (p1, pk["w1"], pk["b1"], pk["w2"], pk["b2"], pk["w3"], pk["b3"],
            pk["wh1"], pk["bh1"], pk["wh2"], pk["bh2"])
    in_specs = [pl.BlockSpec(a.shape, lambda i: (0, 0)) for a in args]

    out = pl.pallas_call(
        kernel,
        out_shape=jax.ShapeDtypeStruct((nb, head_n), jnp.float32),
        grid=(1,),
        in_specs=in_specs,
        out_specs=pl.BlockSpec((nb, head_n), lambda i: (0, 0)),
    )(*args)

    logits = out[:N, :n_actions]
    value = out[:N, n_actions]
    return logits, value


# ------------------------------ parameter init ------------------------------ #
def _init_conv(key, cout, cin, kh, kw):
    fan_in = cin * kh * kw
    bound = 1.0 / jnp.sqrt(fan_in)
    k1, k2 = jax.random.split(key)
    w = jax.random.uniform(k1, (cout, cin, kh, kw), jnp.float32, -bound, bound)
    b = jax.random.uniform(k2, (cout,), jnp.float32, -bound, bound)
    return w, b


def _init_linear(key, fan_in, fan_out):
    bound = 1.0 / jnp.sqrt(fan_in)
    k1, k2 = jax.random.split(key)
    w = jax.random.uniform(k1, (fan_in, fan_out), jnp.float32, -bound, bound)
    b = jax.random.uniform(k2, (fan_out,), jnp.float32, -bound, bound)
    return w, b


def init_params(key, input_shape, n_actions):
    C, H, W = input_shape
    ks = jax.random.split(key, 7)
    c1w, c1b = _init_conv(ks[0], 32, C, 8, 8)
    c2w, c2b = _init_conv(ks[1], 64, 32, 4, 4)
    c3w, c3b = _init_conv(ks[2], 64, 64, 3, 3)
    _, _, (h3, w3) = _conv_geometry(input_shape)
    conv_out = 64 * h3 * w3
    p1w, p1b = _init_linear(ks[3], conv_out, 512)
    p2w, p2b = _init_linear(ks[4], 512, n_actions)
    v1w, v1b = _init_linear(ks[5], conv_out, 512)
    v2w, v2b = _init_linear(ks[6], 512, 1)
    return dict(c1w=c1w, c1b=c1b, c2w=c2w, c2b=c2b, c3w=c3w, c3b=c3b,
                p1w=p1w, p1b=p1b, p2w=p2w, p2b=p2b,
                v1w=v1w, v1b=v1b, v2w=v2w, v2b=v2b)


# ----------------------------- pure-JAX reference --------------------------- #
def ref_forward(params, x):
    def conv(x, w, b, s):
        y = lax.conv_general_dilated(
            x, w, (s, s), "VALID",
            dimension_numbers=("NCHW", "OIHW", "NCHW"))
        return jax.nn.relu(y + b[None, :, None, None])

    h = conv(x, params["c1w"], params["c1b"], 4)
    h = conv(h, params["c2w"], params["c2b"], 2)
    h = conv(h, params["c3w"], params["c3b"], 1)
    flat = h.reshape(x.shape[0], -1)
    p = jax.nn.relu(flat @ params["p1w"] + params["p1b"])
    logits = p @ params["p2w"] + params["p2b"]
    v = jax.nn.relu(flat @ params["v1w"] + params["v1b"])
    value = (v @ params["v2w"] + params["v2b"])[:, 0]
    return logits, value


if __name__ == "__main__":
    key = jax.random.PRNGKey(0)
    input_shape = (4, 36, 36)      # (C, H, W): conv stack -> 64 x 1 x 1 = 64
    n_actions = 6
    batch = 2

    kp, kx = jax.random.split(key)
    params = init_params(kp, input_shape, n_actions)
    x = jax.random.normal(kx, (batch,) + input_shape, dtype=jnp.float32)

    fwd = jax.jit(forward)
    logits, value = fwd(params, x)
    jax.block_until_ready((logits, value))

    ref_logits, ref_value = ref_forward(params, x)
    assert logits.shape == (batch, n_actions)
    assert value.shape == (batch,)
    assert jnp.allclose(logits, ref_logits, atol=2e-3, rtol=2e-3)
    assert jnp.allclose(value, ref_value, atol=2e-3, rtol=2e-3)

    print("KERNEL_OK")
</pallas_src>

<mosaic_0001>
module attributes {stable_mosaic.version = 11 : i64} {
  func.func @_fused_forward_kernel(%arg0: i32, %arg1: memref<1152x256xf32, #tpu.memory_space<vmem>>, %arg2: memref<256x32xf32, #tpu.memory_space<vmem>>, %arg3: memref<1x32xf32, #tpu.memory_space<vmem>>, %arg4: memref<512x64xf32, #tpu.memory_space<vmem>>, %arg5: memref<1x64xf32, #tpu.memory_space<vmem>>, %arg6: memref<576x64xf32, #tpu.memory_space<vmem>>, %arg7: memref<1x64xf32, #tpu.memory_space<vmem>>, %arg8: memref<64x1024xf32, #tpu.memory_space<vmem>>, %arg9: memref<1x1024xf32, #tpu.memory_space<vmem>>, %arg10: memref<1024x128xf32, #tpu.memory_space<vmem>>, %arg11: memref<1x128xf32, #tpu.memory_space<vmem>>, %arg12: memref<8x128xf32, #tpu.memory_space<vmem>>) attributes {dimension_semantics = [#tpu.dimension_semantics<arbitrary>], iteration_bounds = array<i64: 1>, scalar_prefetch = 0 : i64, scratch_operands = 0 : i64, tpu.core_type = #tpu.core_type<tc>, window_params = [{pipeline_mode = #tpu.pipeline_mode<synchronous>, transform_indices = @transform_0, window_bounds = array<i64: 1152, 256>}, {pipeline_mode = #tpu.pipeline_mode<synchronous>, transform_indices = @transform_1, window_bounds = array<i64: 256, 32>}, {pipeline_mode = #tpu.pipeline_mode<synchronous>, transform_indices = @transform_2, window_bounds = array<i64: 1, 32>}, {pipeline_mode = #tpu.pipeline_mode<synchronous>, transform_indices = @transform_3, window_bounds = array<i64: 512, 64>}, {pipeline_mode = #tpu.pipeline_mode<synchronous>, transform_indices = @transform_4, window_bounds = array<i64: 1, 64>}, {pipeline_mode = #tpu.pipeline_mode<synchronous>, transform_indices = @transform_5, window_bounds = array<i64: 576, 64>}, {pipeline_mode = #tpu.pipeline_mode<synchronous>, transform_indices = @transform_6, window_bounds = array<i64: 1, 64>}, {pipeline_mode = #tpu.pipeline_mode<synchronous>, transform_indices = @transform_7, window_bounds = array<i64: 64, 1024>}, {pipeline_mode = #tpu.pipeline_mode<synchronous>, transform_indices = @transform_8, window_bounds = array<i64: 1, 1024>}, {pipeline_mode = #tpu.pipeline_mode<synchronous>, transform_indices = @transform_9, window_bounds = array<i64: 1024, 128>}, {pipeline_mode = #tpu.pipeline_mode<synchronous>, transform_indices = @transform_10, window_bounds = array<i64: 1, 128>}, {pipeline_mode = #tpu.pipeline_mode<synchronous>, transform_indices = @transform_11, window_bounds = array<i64: 8, 128>}]} {
    %c0 = arith.constant 0 : index
    %c0_0 = arith.constant 0 : index
    %0 = vector.load %arg1[%c0, %c0_0] : memref<1152x256xf32, #tpu.memory_space<vmem>>, vector<1152x256xf32>
    %c0_1 = arith.constant 0 : index
    %c0_2 = arith.constant 0 : index
    %1 = vector.load %arg2[%c0_1, %c0_2] : memref<256x32xf32, #tpu.memory_space<vmem>>, vector<256x32xf32>
    %cst = arith.constant dense<0.000000e+00> : vector<1152x32xf32>
    %2 = tpu.matmul %0, %1, %cst {dimension_numbers = #tpu.dot_dimension_numbers<[1], [0], [0], [1], [0, 0, 1, 1], [], []>} : vector<1152x256xf32>, vector<256x32xf32>, vector<1152x32xf32> -> vector<1152x32xf32>
    %c0_3 = arith.constant 0 : index
    %c0_4 = arith.constant 0 : index
    %3 = vector.load %arg3[%c0_3, %c0_4] : memref<1x32xf32, #tpu.memory_space<vmem>>, vector<1x32xf32>
    %4 = vector.broadcast %3 : vector<1x32xf32> to vector<1152x32xf32>
    %5 = arith.addf %2, %4 : vector<1152x32xf32>
    %cst_5 = arith.constant 0.000000e+00 : f32
    %6 = vector.broadcast %cst_5 : f32 to vector<1152x32xf32>
    %7 = arith.maximumf %5, %6 : vector<1152x32xf32>
    %8 = vector.extract_strided_slice %7 {offsets = [0, 0], sizes = [72, 32], strides = [1, 1]} : vector<1152x32xf32> to vector<72x32xf32>
    %c0_6 = arith.constant 0 : index
    %c0_7 = arith.constant 0 : index
    %9 = vector.load %arg4[%c0_6, %c0_7] : memref<512x64xf32, #tpu.memory_space<vmem>>, vector<32x64xf32>
    %cst_8 = arith.constant dense<0.000000e+00> : vector<72x64xf32>
    %10 = tpu.matmul %8, %9, %cst_8 {dimension_numbers = #tpu.dot_dimension_numbers<[1], [0], [0], [1], [0, 0, 1, 1], [], []>} : vector<72x32xf32>, vector<32x64xf32>, vector<72x64xf32> -> vector<72x64xf32>
    %11 = vector.extract_strided_slice %7 {offsets = [72, 0], sizes = [72, 32], strides = [1, 1]} : vector<1152x32xf32> to vector<72x32xf32>
    %c32 = arith.constant 32 : index
    %c0_9 = arith.constant 0 : index
    %12 = vector.load %arg4[%c32, %c0_9] : memref<512x64xf32, #tpu.memory_space<vmem>>, vector<32x64xf32>
    %cst_10 = arith.constant dense<0.000000e+00> : vector<72x64xf32>
    %13 = tpu.matmul %11, %12, %cst_10 {dimension_numbers = #tpu.dot_dimension_numbers<[1], [0], [0], [1], [0, 0, 1, 1], [], []>} : vector<72x32xf32>, vector<32x64xf32>, vector<72x64xf32> -> vector<72x64xf32>
    %14 = arith.addf %10, %13 : vector<72x64xf32>
    %15 = vector.extract_strided_slice %7 {offsets = [144, 0], sizes = [72, 32], strides = [1, 1]} : vector<1152x32xf32> to vector<72x32xf32>
    %c64 = arith.constant 64 : index
    %c0_11 = arith.constant 0 : index
    %16 = vector.load %arg4[%c64, %c0_11] : memref<512x64xf32, #tpu.memory_space<vmem>>, vector<32x64xf32>
    %cst_12 = arith.constant dense<0.000000e+00> : vector<72x64xf32>
    %17 = tpu.matmul %15, %16, %cst_12 {dimension_numbers = #tpu.dot_dimension_numbers<[1], [0], [0], [1], [0, 0, 1, 1], [], []>} : vector<72x32xf32>, vector<32x64xf32>, vector<72x64xf32> -> vector<72x64xf32>
    %18 = arith.addf %14, %17 : vector<72x64xf32>
    %19 = vector.extract_strided_slice %7 {offsets = [216, 0], sizes = [72, 32], strides = [1, 1]} : vector<1152x32xf32> to vector<72x32xf32>
    %c96 = arith.constant 96 : index
    %c0_13 = arith.constant 0 : index
    %20 = vector.load %arg4[%c96, %c0_13] : memref<512x64xf32, #tpu.memory_space<vmem>>, vector<32x64xf32>
    %cst_14 = arith.constant dense<0.000000e+00> : vector<72x64xf32>
    %21 = tpu.matmul %19, %20, %cst_14 {dimension_numbers = #tpu.dot_dimension_numbers<[1], [0], [0], [1], [0, 0, 1, 1], [], []>} : vector<72x32xf32>, vector<32x64xf32>, vector<72x64xf32> -> vector<72x64xf32>
    %22 = arith.addf %18, %21 : vector<72x64xf32>
    %23 = vector.extract_strided_slice %7 {offsets = [288, 0], sizes = [72, 32], strides = [1, 1]} : vector<1152x32xf32> to vector<72x32xf32>
    %c128 = arith.constant 128 : index
    %c0_15 = arith.constant 0 : index
    %24 = vector.load %arg4[%c128, %c0_15] : memref<512x64xf32, #tpu.memory_space<vmem>>, vector<32x64xf32>
    %cst_16 = arith.constant dense<0.000000e+00> : vector<72x64xf32>
    %25 = tpu.matmul %23, %24, %cst_16 {dimension_numbers = #tpu.dot_dimension_numbers<[1], [0], [0], [1], [0, 0, 1, 1], [], []>} : vector<72x32xf32>, vector<32x64xf32>, vector<72x64xf32> -> vector<72x64xf32>
    %26 = arith.addf %22, %25 : vector<72x64xf32>
    %27 = vector.extract_strided_slice %7 {offsets = [360, 0], sizes = [72, 32], strides = [1, 1]} : vector<1152x32xf32> to vector<72x32xf32>
    %c160 = arith.constant 160 : index
    %c0_17 = arith.constant 0 : index
    %28 = vector.load %arg4[%c160, %c0_17] : memref<512x64xf32, #tpu.memory_space<vmem>>, vector<32x64xf32>
    %cst_18 = arith.constant dense<0.000000e+00> : vector<72x64xf32>
    %29 = tpu.matmul %27, %28, %cst_18 {dimension_numbers = #tpu.dot_dimension_numbers<[1], [0], [0], [1], [0, 0, 1, 1], [], []>} : vector<72x32xf32>, vector<32x64xf32>, vector<72x64xf32> -> vector<72x64xf32>
    %30 = arith.addf %26, %29 : vector<72x64xf32>
    %31 = vector.extract_strided_slice %7 {offsets = [432, 0], sizes = [72, 32], strides = [1, 1]} : vector<1152x32xf32> to vector<72x32xf32>
    %c192 = arith.constant 192 : index
    %c0_19 = arith.constant 0 : index
    %32 = vector.load %arg4[%c192, %c0_19] : memref<512x64xf32, #tpu.memory_space<vmem>>, vector<32x64xf32>
    %cst_20 = arith.constant dense<0.000000e+00> : vector<72x64xf32>
    %33 = tpu.matmul %31, %32, %cst_20 {dimension_numbers = #tpu.dot_dimension_numbers<[1], [0], [0], [1], [0, 0, 1, 1], [], []>} : vector<72x32xf32>, vector<32x64xf32>, vector<72x64xf32> -> vector<72x64xf32>
    %34 = arith.addf %30, %33 : vector<72x64xf32>
    %35 = vector.extract_strided_slice %7 {offsets = [504, 0], sizes = [72, 32], strides = [1, 1]} : vector<1152x32xf32> to vector<72x32xf32>
    %c224 = arith.constant 224 : index
    %c0_21 = arith.constant 0 : index
    %36 = vector.load %arg4[%c224, %c0_21] : memref<512x64xf32, #tpu.memory_space<vmem>>, vector<32x64xf32>
    %cst_22 = arith.constant dense<0.000000e+00> : vector<72x64xf32>
    %37 = tpu.matmul %35, %36, %cst_22 {dimension_numbers = #tpu.dot_dimension_numbers<[1], [0], [0], [1], [0, 0, 1, 1], [], []>} : vector<72x32xf32>, vector<32x64xf32>, vector<72x64xf32> -> vector<72x64xf32>
    %38 = arith.addf %34, %37 : vector<72x64xf32>
    %39 = vector.extract_strided_slice %7 {offsets = [576, 0], sizes = [72, 32], strides = [1, 1]} : vector<1152x32xf32> to vector<72x32xf32>
    %c256 = arith.constant 256 : index
    %c0_23 = arith.constant 0 : index
    %40 = vector.load %arg4[%c256, %c0_23] : memref<512x64xf32, #tpu.memory_space<vmem>>, vector<32x64xf32>
    %cst_24 = arith.constant dense<0.000000e+00> : vector<72x64xf32>
    %41 = tpu.matmul %39, %40, %cst_24 {dimension_numbers = #tpu.dot_dimension_numbers<[1], [0], [0], [1], [0, 0, 1, 1], [], []>} : vector<72x32xf32>, vector<32x64xf32>, vector<72x64xf32> -> vector<72x64xf32>
    %42 = arith.addf %38, %41 : vector<72x64xf32>
    %43 = vector.extract_strided_slice %7 {offsets = [648, 0], sizes = [72, 32], strides = [1, 1]} : vector<1152x32xf32> to vector<72x32xf32>
    %c288 = arith.constant 288 : index
    %c0_25 = arith.constant 0 : index
    %44 = vector.load %arg4[%c288, %c0_25] : memref<512x64xf32, #tpu.memory_space<vmem>>, vector<32x64xf32>
    %cst_26 = arith.constant dense<0.000000e+00> : vector<72x64xf32>
    %45 = tpu.matmul %43, %44, %cst_26 {dimension_numbers = #tpu.dot_dimension_numbers<[1], [0], [0], [1], [0, 0, 1, 1], [], []>} : vector<72x32xf32>, vector<32x64xf32>, vector<72x64xf32> -> vector<72x64xf32>
    %46 = arith.addf %42, %45 : vector<72x64xf32>
    %47 = vector.extract_strided_slice %7 {offsets = [720, 0], sizes = [72, 32], strides = [1, 1]} : vector<1152x32xf32> to vector<72x32xf32>
    %c320 = arith.constant 320 : index
    %c0_27 = arith.constant 0 : index
    %48 = vector.load %arg4[%c320, %c0_27] : memref<512x64xf32, #tpu.memory_space<vmem>>, vector<32x64xf32>
    %cst_28 = arith.constant dense<0.000000e+00> : vector<72x64xf32>
    %49 = tpu.matmul %47, %48, %cst_28 {dimension_numbers = #tpu.dot_dimension_numbers<[1], [0], [0], [1], [0, 0, 1, 1], [], []>} : vector<72x32xf32>, vector<32x64xf32>, vector<72x64xf32> -> vector<72x64xf32>
    %50 = arith.addf %46, %49 : vector<72x64xf32>
    %51 = vector.extract_strided_slice %7 {offsets = [792, 0], sizes = [72, 32], strides = [1, 1]} : vector<1152x32xf32> to vector<72x32xf32>
    %c352 = arith.constant 352 : index
    %c0_29 = arith.constant 0 : index
    %52 = vector.load %arg4[%c352, %c0_29] : memref<512x64xf32, #tpu.memory_space<vmem>>, vector<32x64xf32>
    %cst_30 = arith.constant dense<0.000000e+00> : vector<72x64xf32>
    %53 = tpu.matmul %51, %52, %cst_30 {dimension_numbers = #tpu.dot_dimension_numbers<[1], [0], [0], [1], [0, 0, 1, 1], [], []>} : vector<72x32xf32>, vector<32x64xf32>, vector<72x64xf32> -> vector<72x64xf32>
    %54 = arith.addf %50, %53 : vector<72x64xf32>
    %55 = vector.extract_strided_slice %7 {offsets = [864, 0], sizes = [72, 32], strides = [1, 1]} : vector<1152x32xf32> to vector<72x32xf32>
    %c384 = arith.constant 384 : index
    %c0_31 = arith.constant 0 : index
    %56 = vector.load %arg4[%c384, %c0_31] : memref<512x64xf32, #tpu.memory_space<vmem>>, vector<32x64xf32>
    %cst_32 = arith.constant dense<0.000000e+00> : vector<72x64xf32>
    %57 = tpu.matmul %55, %56, %cst_32 {dimension_numbers = #tpu.dot_dimension_numbers<[1], [0], [0], [1], [0, 0, 1, 1], [], []>} : vector<72x32xf32>, vector<32x64xf32>, vector<72x64xf32> -> vector<72x64xf32>
    %58 = arith.addf %54, %57 : vector<72x64xf32>
    %59 = vector.extract_strided_slice %7 {offsets = [936, 0], sizes = [72, 32], strides = [1, 1]} : vector<1152x32xf32> to vector<72x32xf32>
    %c416 = arith.constant 416 : index
    %c0_33 = arith.constant 0 : index
    %60 = vector.load %arg4[%c416, %c0_33] : memref<512x64xf32, #tpu.memory_space<vmem>>, vector<32x64xf32>
    %cst_34 = arith.constant dense<0.000000e+00> : vector<72x64xf32>
    %61 = tpu.matmul %59, %60, %cst_34 {dimension_numbers = #tpu.dot_dimension_numbers<[1], [0], [0], [1], [0, 0, 1, 1], [], []>} : vector<72x32xf32>, vector<32x64xf32>, vector<72x64xf32> -> vector<72x64xf32>
    %62 = arith.addf %58, %61 : vector<72x64xf32>
    %63 = vector.extract_strided_slice %7 {offsets = [1008, 0], sizes = [72, 32], strides = [1, 1]} : vector<1152x32xf32> to vector<72x32xf32>
    %c448 = arith.constant 448 : index
    %c0_35 = arith.constant 0 : index
    %64 = vector.load %arg4[%c448, %c0_35] : memref<512x64xf32, #tpu.memory_space<vmem>>, vector<32x64xf32>
    %cst_36 = arith.constant dense<0.000000e+00> : vector<72x64xf32>
    %65 = tpu.matmul %63, %64, %cst_36 {dimension_numbers = #tpu.dot_dimension_numbers<[1], [0], [0], [1], [0, 0, 1, 1], [], []>} : vector<72x32xf32>, vector<32x64xf32>, vector<72x64xf32> -> vector<72x64xf32>
    %66 = arith.addf %62, %65 : vector<72x64xf32>
    %67 = vector.extract_strided_slice %7 {offsets = [1080, 0], sizes = [72, 32], strides = [1, 1]} : vector<1152x32xf32> to vector<72x32xf32>
    %c480 = arith.constant 480 : index
    %c0_37 = arith.constant 0 : index
    %68 = vector.load %arg4[%c480, %c0_37] : memref<512x64xf32, #tpu.memory_space<vmem>>, vector<32x64xf32>
    %cst_38 = arith.constant dense<0.000000e+00> : vector<72x64xf32>
    %69 = tpu.matmul %67, %68, %cst_38 {dimension_numbers = #tpu.dot_dimension_numbers<[1], [0], [0], [1], [0, 0, 1, 1], [], []>} : vector<72x32xf32>, vector<32x64xf32>, vector<72x64xf32> -> vector<72x64xf32>
    %70 = arith.addf %66, %69 : vector<72x64xf32>
    %c0_39 = arith.constant 0 : index
    %c0_40 = arith.constant 0 : index
    %71 = vector.load %arg5[%c0_39, %c0_40] : memref<1x64xf32, #tpu.memory_space<vmem>>, vector<1x64xf32>
    %72 = vector.broadcast %71 : vector<1x64xf32> to vector<72x64xf32>
    %73 = arith.addf %70, %72 : vector<72x64xf32>
    %cst_41 = arith.constant 0.000000e+00 : f32
    %74 = vector.broadcast %cst_41 : f32 to vector<72x64xf32>
    %75 = arith.maximumf %73, %74 : vector<72x64xf32>
    %76 = vector.extract_strided_slice %75 {offsets = [0, 0], sizes = [8, 64], strides = [1, 1]} : vector<72x64xf32> to vector<8x64xf32>
    %c0_42 = arith.constant 0 : index
    %c0_43 = arith.constant 0 : index
    %77 = vector.load %arg6[%c0_42, %c0_43] : memref<576x64xf32, #tpu.memory_space<vmem>>, vector<64x64xf32>
    %cst_44 = arith.constant dense<0.000000e+00> : vector<8x64xf32>
    %78 = tpu.matmul %76, %77, %cst_44 {dimension_numbers = #tpu.dot_dimension_numbers<[1], [0], [0], [1], [0, 0, 1, 1], [], []>} : vector<8x64xf32>, vector<64x64xf32>, vector<8x64xf32> -> vector<8x64xf32>
    %79 = vector.extract_strided_slice %75 {offsets = [8, 0], sizes = [8, 64], strides = [1, 1]} : vector<72x64xf32> to vector<8x64xf32>
    %c64_45 = arith.constant 64 : index
    %c0_46 = arith.constant 0 : index
    %80 = vector.load %arg6[%c64_45, %c0_46] : memref<576x64xf32, #tpu.memory_space<vmem>>, vector<64x64xf32>
    %cst_47 = arith.constant dense<0.000000e+00> : vector<8x64xf32>
    %81 = tpu.matmul %79, %80, %cst_47 {dimension_numbers = #tpu.dot_dimension_numbers<[1], [0], [0], [1], [0, 0, 1, 1], [], []>} : vector<8x64xf32>, vector<64x64xf32>, vector<8x64xf32> -> vector<8x64xf32>
    %82 = arith.addf %78, %81 : vector<8x64xf32>
    %83 = vector.extract_strided_slice %75 {offsets = [16, 0], sizes = [8, 64], strides = [1, 1]} : vector<72x64xf32> to vector<8x64xf32>
    %c128_48 = arith.constant 128 : index
    %c0_49 = arith.constant 0 : index
    %84 = vector.load %arg6[%c128_48, %c0_49] : memref<576x64xf32, #tpu.memory_space<vmem>>, vector<64x64xf32>
    %cst_50 = arith.constant dense<0.000000e+00> : vector<8x64xf32>
    %85 = tpu.matmul %83, %84, %cst_50 {dimension_numbers = #tpu.dot_dimension_numbers<[1], [0], [0], [1], [0, 0, 1, 1], [], []>} : vector<8x64xf32>, vector<64x64xf32>, vector<8x64xf32> -> vector<8x64xf32>
    %86 = arith.addf %82, %85 : vector<8x64xf32>
    %87 = vector.extract_strided_slice %75 {offsets = [24, 0], sizes = [8, 64], strides = [1, 1]} : vector<72x64xf32> to vector<8x64xf32>
    %c192_51 = arith.constant 192 : index
    %c0_52 = arith.constant 0 : index
    %88 = vector.load %arg6[%c192_51, %c0_52] : memref<576x64xf32, #tpu.memory_space<vmem>>, vector<64x64xf32>
    %cst_53 = arith.constant dense<0.000000e+00> : vector<8x64xf32>
    %89 = tpu.matmul %87, %88, %cst_53 {dimension_numbers = #tpu.dot_dimension_numbers<[1], [0], [0], [1], [0, 0, 1, 1], [], []>} : vector<8x64xf32>, vector<64x64xf32>, vector<8x64xf32> -> vector<8x64xf32>
    %90 = arith.addf %86, %89 : vector<8x64xf32>
    %91 = vector.extract_strided_slice %75 {offsets = [32, 0], sizes = [8, 64], strides = [1, 1]} : vector<72x64xf32> to vector<8x64xf32>
    %c256_54 = arith.constant 256 : index
    %c0_55 = arith.constant 0 : index
    %92 = vector.load %arg6[%c256_54, %c0_55] : memref<576x64xf32, #tpu.memory_space<vmem>>, vector<64x64xf32>
    %cst_56 = arith.constant dense<0.000000e+00> : vector<8x64xf32>
    %93 = tpu.matmul %91, %92, %cst_56 {dimension_numbers = #tpu.dot_dimension_numbers<[1], [0], [0], [1], [0, 0, 1, 1], [], []>} : vector<8x64xf32>, vector<64x64xf32>, vector<8x64xf32> -> vector<8x64xf32>
    %94 = arith.addf %90, %93 : vector<8x64xf32>
    %95 = vector.extract_strided_slice %75 {offsets = [40, 0], sizes = [8, 64], strides = [1, 1]} : vector<72x64xf32> to vector<8x64xf32>
    %c320_57 = arith.constant 320 : index
    %c0_58 = arith.constant 0 : index
    %96 = vector.load %arg6[%c320_57, %c0_58] : memref<576x64xf32, #tpu.memory_space<vmem>>, vector<64x64xf32>
    %cst_59 = arith.constant dense<0.000000e+00> : vector<8x64xf32>
    %97 = tpu.matmul %95, %96, %cst_59 {dimension_numbers = #tpu.dot_dimension_numbers<[1], [0], [0], [1], [0, 0, 1, 1], [], []>} : vector<8x64xf32>, vector<64x64xf32>, vector<8x64xf32> -> vector<8x64xf32>
    %98 = arith.addf %94, %97 : vector<8x64xf32>
    %99 = vector.extract_strided_slice %75 {offsets = [48, 0], sizes = [8, 64], strides = [1, 1]} : vector<72x64xf32> to vector<8x64xf32>
    %c384_60 = arith.constant 384 : index
    %c0_61 = arith.constant 0 : index
    %100 = vector.load %arg6[%c384_60, %c0_61] : memref<576x64xf32, #tpu.memory_space<vmem>>, vector<64x64xf32>
    %cst_62 = arith.constant dense<0.000000e+00> : vector<8x64xf32>
    %101 = tpu.matmul %99, %100, %cst_62 {dimension_numbers = #tpu.dot_dimension_numbers<[1], [0], [0], [1], [0, 0, 1, 1], [], []>} : vector<8x64xf32>, vector<64x64xf32>, vector<8x64xf32> -> vector<8x64xf32>
    %102 = arith.addf %98, %101 : vector<8x64xf32>
    %103 = vector.extract_strided_slice %75 {offsets = [56, 0], sizes = [8, 64], strides = [1, 1]} : vector<72x64xf32> to vector<8x64xf32>
    %c448_63 = arith.constant 448 : index
    %c0_64 = arith.constant 0 : index
    %104 = vector.load %arg6[%c448_63, %c0_64] : memref<576x64xf32, #tpu.memory_space<vmem>>, vector<64x64xf32>
    %cst_65 = arith.constant dense<0.000000e+00> : vector<8x64xf32>
    %105 = tpu.matmul %103, %104, %cst_65 {dimension_numbers = #tpu.dot_dimension_numbers<[1], [0], [0], [1], [0, 0, 1, 1], [], []>} : vector<8x64xf32>, vector<64x64xf32>, vector<8x64xf32> -> vector<8x64xf32>
    %106 = arith.addf %102, %105 : vector<8x64xf32>
    %107 = vector.extract_strided_slice %75 {offsets = [64, 0], sizes = [8, 64], strides = [1, 1]} : vector<72x64xf32> to vector<8x64xf32>
    %c512 = arith.constant 512 : index
    %c0_66 = arith.constant 0 : index
    %108 = vector.load %arg6[%c512, %c0_66] : memref<576x64xf32, #tpu.memory_space<vmem>>, vector<64x64xf32>
    %cst_67 = arith.constant dense<0.000000e+00> : vector<8x64xf32>
    %109 = tpu.matmul %107, %108, %cst_67 {dimension_numbers = #tpu.dot_dimension_numbers<[1], [0], [0], [1], [0, 0, 1, 1], [], []>} : vector<8x64xf32>, vector<64x64xf32>, vector<8x64xf32> -> vector<8x64xf32>
    %110 = arith.addf %106, %109 : vector<8x64xf32>
    %c0_68 = arith.constant 0 : index
    %c0_69 = arith.constant 0 : index
    %111 = vector.load %arg7[%c0_68, %c0_69] : memref<1x64xf32, #tpu.memory_space<vmem>>, vector<1x64xf32>
    %112 = vector.broadcast %111 : vector<1x64xf32> to vector<8x64xf32>
    %113 = arith.addf %110, %112 : vector<8x64xf32>
    %cst_70 = arith.constant 0.000000e+00 : f32
    %114 = vector.broadcast %cst_70 : f32 to vector<8x64xf32>
    %115 = arith.maximumf %113, %114 : vector<8x64xf32>
    %c0_71 = arith.constant 0 : index
    %c0_72 = arith.constant 0 : index
    %116 = vector.load %arg8[%c0_71, %c0_72] : memref<64x1024xf32, #tpu.memory_space<vmem>>, vector<64x1024xf32>
    %cst_73 = arith.constant dense<0.000000e+00> : vector<8x1024xf32>
    %117 = tpu.matmul %115, %116, %cst_73 {dimension_numbers = #tpu.dot_dimension_numbers<[1], [0], [0], [1], [0, 0, 1, 1], [], []>} : vector<8x64xf32>, vector<64x1024xf32>, vector<8x1024xf32> -> vector<8x1024xf32>
    %c0_74 = arith.constant 0 : index
    %c0_75 = arith.constant 0 : index
    %118 = vector.load %arg9[%c0_74, %c0_75] : memref<1x1024xf32, #tpu.memory_space<vmem>>, vector<1x1024xf32>
    %119 = vector.broadcast %118 : vector<1x1024xf32> to vector<8x1024xf32>
    %120 = arith.addf %117, %119 : vector<8x1024xf32>
    %cst_76 = arith.constant 0.000000e+00 : f32
    %121 = vector.broadcast %cst_76 : f32 to vector<8x1024xf32>
    %122 = arith.maximumf %120, %121 : vector<8x1024xf32>
    %c0_77 = arith.constant 0 : index
    %c0_78 = arith.constant 0 : index
    %123 = vector.load %arg10[%c0_77, %c0_78] : memref<1024x128xf32, #tpu.memory_space<vmem>>, vector<1024x128xf32>
    %cst_79 = arith.constant dense<0.000000e+00> : vector<8x128xf32>
    %124 = tpu.matmul %122, %123, %cst_79 {dimension_numbers = #tpu.dot_dimension_numbers<[1], [0], [0], [1], [0, 0, 1, 1], [], []>} : vector<8x1024xf32>, vector<1024x128xf32>, vector<8x128xf32> -> vector<8x128xf32>
    %c0_80 = arith.constant 0 : index
    %c0_81 = arith.constant 0 : index
    %125 = vector.load %arg11[%c0_80, %c0_81] : memref<1x128xf32, #tpu.memory_space<vmem>>, vector<1x128xf32>
    %126 = vector.broadcast %125 : vector<1x128xf32> to vector<8x128xf32>
    %127 = arith.addf %124, %126 : vector<8x128xf32>
    %c0_82 = arith.constant 0 : index
    %c0_83 = arith.constant 0 : index
    %128 = vector.load %arg12[%c0_82, %c0_83] : memref<8x128xf32, #tpu.memory_space<vmem>>, vector<8x128xf32>
    tpu.vector_store %arg12[%c0_82, %c0_83], %127 {strides = array<i32>} : memref<8x128xf32, #tpu.memory_space<vmem>>, vector<8x128xf32>,
    return
  }
  func.func @transform_0(%arg0: i32) -> (i32, i32) {
    %c0_i32 = arith.constant 0 : i32
    %c0_i32_0 = arith.constant 0 : i32
    %c0_i32_1 = arith.constant 0 : i32
    return %c0_i32, %c0_i32_0 : i32, i32
  }
  func.func @transform_1(%arg0: i32) -> (i32, i32) {
    %c0_i32 = arith.constant 0 : i32
    %c0_i32_0 = arith.constant 0 : i32
    %c0_i32_1 = arith.constant 0 : i32
    return %c0_i32, %c0_i32_0 : i32, i32
  }
  func.func @transform_2(%arg0: i32) -> (i32, i32) {
    %c0_i32 = arith.constant 0 : i32
    %c0_i32_0 = arith.constant 0 : i32
    %c0_i32_1 = arith.constant 0 : i32
    return %c0_i32, %c0_i32_0 : i32, i32
  }
  func.func @transform_3(%arg0: i32) -> (i32, i32) {
    %c0_i32 = arith.constant 0 : i32
    %c0_i32_0 = arith.constant 0 : i32
    %c0_i32_1 = arith.constant 0 : i32
    return %c0_i32, %c0_i32_0 : i32, i32
  }
  func.func @transform_4(%arg0: i32) -> (i32, i32) {
    %c0_i32 = arith.constant 0 : i32
    %c0_i32_0 = arith.constant 0 : i32
    %c0_i32_1 = arith.constant 0 : i32
    return %c0_i32, %c0_i32_0 : i32, i32
  }
  func.func @transform_5(%arg0: i32) -> (i32, i32) {
    %c0_i32 = arith.constant 0 : i32
    %c0_i32_0 = arith.constant 0 : i32
    %c0_i32_1 = arith.constant 0 : i32
    return %c0_i32, %c0_i32_0 : i32, i32
  }
  func.func @transform_6(%arg0: i32) -> (i32, i32) {
    %c0_i32 = arith.constant 0 : i32
    %c0_i32_0 = arith.constant 0 : i32
    %c0_i32_1 = arith.constant 0 : i32
    return %c0_i32, %c0_i32_0 : i32, i32
  }
  func.func @transform_7(%arg0: i32) -> (i32, i32) {
    %c0_i32 = arith.constant 0 : i32
    %c0_i32_0 = arith.constant 0 : i32
    %c0_i32_1 = arith.constant 0 : i32
    return %c0_i32, %c0_i32_0 : i32, i32
  }
  func.func @transform_8(%arg0: i32) -> (i32, i32) {
    %c0_i32 = arith.constant 0 : i32
    %c0_i32_0 = arith.constant 0 : i32
    %c0_i32_1 = arith.constant 0 : i32
    return %c0_i32, %c0_i32_0 : i32, i32
  }
  func.func @transform_9(%arg0: i32) -> (i32, i32) {
    %c0_i32 = arith.constant 0 : i32
    %c0_i32_0 = arith.constant 0 : i32
    %c0_i32_1 = arith.constant 0 : i32
    return %c0_i32, %c0_i32_0 : i32, i32
  }
  func.func @transform_10(%arg0: i32) -> (i32, i32) {
    %c0_i32 = arith.constant 0 : i32
    %c0_i32_0 = arith.constant 0 : i32
    %c0_i32_1 = arith.constant 0 : i32
    return %c0_i32, %c0_i32_0 : i32, i32
  }
  func.func @transform_11(%arg0: i32) -> (i32, i32) {
    %c0_i32 = arith.constant 0 : i32
    %c0_i32_0 = arith.constant 0 : i32
    %c0_i32_1 = arith.constant 0 : i32
    return %c0_i32, %c0_i32_0 : i32, i32
  }
}

</mosaic_0001>

<llo_original>
// kernel: forward.1
$region0: #{forward.1}
  #allocation0 [shape = 'u32[]', space=smem, size = 0x4, offset = 0x4, fixed_abs, tag = 'smem constant byte address 0x4 - core index']
  #allocation1 [shape = 'u32[144,128]{1,0:T(1,128)}', space=vmem, size = 0x12000, scoped, tag = 'internal scratch']
  %s0 = inlined_call_operand.vmem [shape: f32[1152,256], index: 0, kind: input, shape index: {}]
  %s1 = inlined_call_operand.vmem [shape: f32[256,32], index: 1, kind: input, shape index: {}]
  %s2 = inlined_call_operand.vmem [shape: f32[1,32], index: 2, kind: input, shape index: {}]
  %s3 = inlined_call_operand.vmem [shape: f32[512,64], index: 3, kind: input, shape index: {}]
  %s4 = inlined_call_operand.vmem [shape: f32[1,64], index: 4, kind: input, shape index: {}]
  %s5 = inlined_call_operand.vmem [shape: f32[576,64], index: 5, kind: input, shape index: {}]
  %s6 = inlined_call_operand.vmem [shape: f32[1,64], index: 6, kind: input, shape index: {}]
  %s7 = inlined_call_operand.vmem [shape: f32[64,1024], index: 7, kind: input, shape index: {}]
  %s8 = inlined_call_operand.vmem [shape: f32[1,1024], index: 8, kind: input, shape index: {}]
  %s9 = inlined_call_operand.vmem [shape: f32[1024,128], index: 9, kind: input, shape index: {}]
  %s10 = inlined_call_operand.vmem [shape: f32[1,128], index: 10, kind: input, shape index: {}]
  %s11 = inlined_call_operand.vmem [shape: f32[8,128], index: 11, kind: output, shape index: {}]
  %s12 = sld [smem:[#allocation0]]
  $region54: #{forward.1} parent=0
    _
  %s14 = ssub.s32 1, %s12
  %s15 = scalar_select 0, %s14, %s12
  // Predicated region
  $region2: #{forward.1} parent=0 // pred_check
    _
  $region3: #{forward.1} parent=0 // pred_check_branch
    %17 = sbr.rel (0) target = $region5
  $region4: #{forward.1} parent=0 // pred_region
    _
  $region5: #{forward.1} parent=0 // pred_fallthru
    _
  // Predicated region
  $region6: #{forward.1} parent=0 // pred_check
    _
  $region7: #{forward.1} parent=0 // pred_check_branch
    %19 = sbr.rel (0) target = $region9
  $region8: #{forward.1} parent=0 // pred_region
    _
  $region9: #{forward.1} parent=0 // pred_fallthru
    _
  // Predicated region
  $region10: #{forward.1} parent=0 // pred_check
    _
  $region11: #{forward.1} parent=0 // pred_check_branch
    %21 = sbr.rel (0) target = $region13
  $region12: #{forward.1} parent=0 // pred_region
    _
  $region13: #{forward.1} parent=0 // pred_fallthru
    _
  // Predicated region
  $region14: #{forward.1} parent=0 // pred_check
    _
  $region15: #{forward.1} parent=0 // pred_check_branch
    %23 = sbr.rel (0) target = $region17
  $region16: #{forward.1} parent=0 // pred_region
    _
  $region17: #{forward.1} parent=0 // pred_fallthru
    _
  // Predicated region
  $region18: #{forward.1} parent=0 // pred_check
    _
  $region19: #{forward.1} parent=0 // pred_check_branch
    %25 = sbr.rel (0) target = $region21
  $region20: #{forward.1} parent=0 // pred_region
    _
  $region21: #{forward.1} parent=0 // pred_fallthru
    _
  // Predicated region
  $region22: #{forward.1} parent=0 // pred_check
    _
  $region23: #{forward.1} parent=0 // pred_check_branch
    %27 = sbr.rel (0) target = $region25
  $region24: #{forward.1} parent=0 // pred_region
    _
  $region25: #{forward.1} parent=0 // pred_fallthru
    _
  // Predicated region
  $region26: #{forward.1} parent=0 // pred_check
    _
  $region27: #{forward.1} parent=0 // pred_check_branch
    %29 = sbr.rel (0) target = $region29
  $region28: #{forward.1} parent=0 // pred_region
    _
  $region29: #{forward.1} parent=0 // pred_fallthru
    _
  // Predicated region
  $region30: #{forward.1} parent=0 // pred_check
    _
  $region31: #{forward.1} parent=0 // pred_check_branch
    %31 = sbr.rel (0) target = $region33
  $region32: #{forward.1} parent=0 // pred_region
    _
  $region33: #{forward.1} parent=0 // pred_fallthru
    _
  // Predicated region
  $region34: #{forward.1} parent=0 // pred_check
    _
  $region35: #{forward.1} parent=0 // pred_check_branch
    %33 = sbr.rel (0) target = $region37
  $region36: #{forward.1} parent=0 // pred_region
    _
  $region37: #{forward.1} parent=0 // pred_fallthru
    _
  // Predicated region
  $region38: #{forward.1} parent=0 // pred_check
    _
  $region39: #{forward.1} parent=0 // pred_check_branch
    %35 = sbr.rel (0) target = $region41
  $region40: #{forward.1} parent=0 // pred_region
    _
  $region41: #{forward.1} parent=0 // pred_fallthru
    _
  // Predicated region
  $region42: #{forward.1} parent=0 // pred_check
    _
  $region43: #{forward.1} parent=0 // pred_check_branch
    %37 = sbr.rel (0) target = $region45
  $region44: #{forward.1} parent=0 // pred_region
    _
  $region45: #{forward.1} parent=0 // pred_fallthru
    _
  %v38 = vld [vmem:[%s0] sm:$0xff]
  %v39 = vld [vmem:[%s0 + $0x8] sm:$0xff]
  %v40 = vld [vmem:[%s0 + $0x10] sm:$0xff]
  %v41 = vld [vmem:[%s0 + $0x18] sm:$0xff]
  %v42 = vld [vmem:[%s0 + $0x20] sm:$0xff]
  %v43 = vld [vmem:[%s0 + $0x28] sm:$0xff]
  %v44 = vld [vmem:[%s0 + $0x30] sm:$0xff]
  %v45 = vld [vmem:[%s0 + $0x38] sm:$0xff]
  %v46 = vld [vmem:[%s0 + $0x40] sm:$0xff]
  %v47 = vld [vmem:[%s0 + $0x48] sm:$0xff]
  %v48 = vld [vmem:[%s0 + $0x50] sm:$0xff]
  %v49 = vld [vmem:[%s0 + $0x58] sm:$0xff]
  %v50 = vld [vmem:[%s0 + $0x60] sm:$0xff]
  %v51 = vld [vmem:[%s0 + $0x68] sm:$0xff]
  %v52 = vld [vmem:[%s0 + $0x70] sm:$0xff]
  %v53 = vld [vmem:[%s0 + $0x78] sm:$0xff]
  %v54 = vld [vmem:[%s0 + $0x80] sm:$0xff]
  %v55 = vld [vmem:[%s0 + $0x88] sm:$0xff]
  %v56 = vld [vmem:[%s0 + $0x90] sm:$0xff]
  %v57 = vld [vmem:[%s0 + $0x98] sm:$0xff]
  %v58 = vld [vmem:[%s0 + $0xa0] sm:$0xff]
  %v59 = vld [vmem:[%s0 + $0xa8] sm:$0xff]
  %v60 = vld [vmem:[%s0 + $0xb0] sm:$0xff]
  %v61 = vld [vmem:[%s0 + $0xb8] sm:$0xff]
  %v62 = vld [vmem:[%s0 + $0xc0] sm:$0xff]
  %v63 = vld [vmem:[%s0 + $0xc8] sm:$0xff]
  %v64 = vld [vmem:[%s0 + $0xd0] sm:$0xff]
  %v65 = vld [vmem:[%s0 + $0xd8] sm:$0xff]
  %v66 = vld [vmem:[%s0 + $0xe0] sm:$0xff]
  %v67 = vld [vmem:[%s0 + $0xe8] sm:$0xff]
  %v68 = vld [vmem:[%s0 + $0xf0] sm:$0xff]
  %v69 = vld [vmem:[%s0 + $0xf8] sm:$0xff]
  %v70 = vld [vmem:[%s0 + $0x100] sm:$0xff]
  %v71 = vld [vmem:[%s0 + $0x108] sm:$0xff]
  %v72 = vld [vmem:[%s0 + $0x110] sm:$0xff]
  %v73 = vld [vmem:[%s0 + $0x118] sm:$0xff]
  %v74 = vld [vmem:[%s0 + $0x120] sm:$0xff]
  %v75 = vld [vmem:[%s0 + $0x128] sm:$0xff]
  %v76 = vld [vmem:[%s0 + $0x130] sm:$0xff]
  %v77 = vld [vmem:[%s0 + $0x138] sm:$0xff]
  %v78 = vld [vmem:[%s0 + $0x140] sm:$0xff]
  %v79 = vld [vmem:[%s0 + $0x148] sm:$0xff]
  %v80 = vld [vmem:[%s0 + $0x150] sm:$0xff]
  %v81 = vld [vmem:[%s0 + $0x158] sm:$0xff]
  %v82 = vld [vmem:[%s0 + $0x160] sm:$0xff]
  %v83 = vld [vmem:[%s0 + $0x168] sm:$0xff]
  %v84 = vld [vmem:[%s0 + $0x170] sm:$0xff]
  %v85 = vld [vmem:[%s0 + $0x178] sm:$0xff]
  %v86 = vld [vmem:[%s0 + $0x180] sm:$0xff]
  %v87 = vld [vmem:[%s0 + $0x188] sm:$0xff]
  %v88 = vld [vmem:[%s0 + $0x190] sm:$0xff]
  %v89 = vld [vmem:[%s0 + $0x198] sm:$0xff]
  %v90 = vld [vmem:[%s0 + $0x1a0] sm:$0xff]
  %v91 = vld [vmem:[%s0 + $0x1a8] sm:$0xff]
  %v92 = vld [vmem:[%s0 + $0x1b0] sm:$0xff]
  %v93 = vld [vmem:[%s0 + $0x1b8] sm:$0xff]
  %v94 = vld [vmem:[%s0 + $0x1c0] sm:$0xff]
  %v95 = vld [vmem:[%s0 + $0x1c8] sm:$0xff]
  %v96 = vld [vmem:[%s0 + $0x1d0] sm:$0xff]
  %v97 = vld [vmem:[%s0 + $0x1d8] sm:$0xff]
  %v98 = vld [vmem:[%s0 + $0x1e0] sm:$0xff]
  %v99 = vld [vmem:[%s0 + $0x1e8] sm:$0xff]
  %v100 = vld [vmem:[%s0 + $0x1f0] sm:$0xff]
  %v101 = vld [vmem:[%s0 + $0x1f8] sm:$0xff]
  %v102 = vld [vmem:[%s0 + $0x200] sm:$0xff]
  %v103 = vld [vmem:[%s0 + $0x208] sm:$0xff]
  %v104 = vld [vmem:[%s0 + $0x210] sm:$0xff]
  %v105 = vld [vmem:[%s0 + $0x218] sm:$0xff]
  %v106 = vld [vmem:[%s0 + $0x220] sm:$0xff]
  %v107 = vld [vmem:[%s0 + $0x228] sm:$0xff]
  %v108 = vld [vmem:[%s0 + $0x230] sm:$0xff]
  %v109 = vld [vmem:[%s0 + $0x238] sm:$0xff]
  %v110 = vld [vmem:[%s0 + $0x240] sm:$0xff]
  %v111 = vld [vmem:[%s0 + $0x248] sm:$0xff]
  %v112 = vld [vmem:[%s0 + $0x250] sm:$0xff]
  %v113 = vld [vmem:[%s0 + $0x258] sm:$0xff]
  %v114 = vld [vmem:[%s0 + $0x260] sm:$0xff]
  %v115 = vld [vmem:[%s0 + $0x268] sm:$0xff]
  %v116 = vld [vmem:[%s0 + $0x270] sm:$0xff]
  %v117 = vld [vmem:[%s0 + $0x278] sm:$0xff]
  %v118 = vld [vmem:[%s0 + $0x280] sm:$0xff]
  %v119 = vld [vmem:[%s0 + $0x288] sm:$0xff]
  %v120 = vld [vmem:[%s0 + $0x290] sm:$0xff]
  %v121 = vld [vmem:[%s0 + $0x298] sm:$0xff]
  %v122 = vld [vmem:[%s0 + $0x2a0] sm:$0xff]
  %v123 = vld [vmem:[%s0 + $0x2a8] sm:$0xff]
  %v124 = vld [vmem:[%s0 + $0x2b0] sm:$0xff]
  %v125 = vld [vmem:[%s0 + $0x2b8] sm:$0xff]
  %v126 = vld [vmem:[%s0 + $0x2c0] sm:$0xff]
  %v127 = vld [vmem:[%s0 + $0x2c8] sm:$0xff]
  %v128 = vld [vmem:[%s0 + $0x2d0] sm:$0xff]
  %v129 = vld [vmem:[%s0 + $0x2d8] sm:$0xff]
  %v130 = vld [vmem:[%s0 + $0x2e0] sm:$0xff]
  %v131 = vld [vmem:[%s0 + $0x2e8] sm:$0xff]
  %v132 = vld [vmem:[%s0 + $0x2f0] sm:$0xff]
  %v133 = vld [vmem:[%s0 + $0x2f8] sm:$0xff]
  %v134 = vld [vmem:[%s0 + $0x300] sm:$0xff]
  %v135 = vld [vmem:[%s0 + $0x308] sm:$0xff]
  %v136 = vld [vmem:[%s0 + $0x310] sm:$0xff]
  %v137 = vld [vmem:[%s0 + $0x318] sm:$0xff]
  %v138 = vld [vmem:[%s0 + $0x320] sm:$0xff]
  %v139 = vld [vmem:[%s0 + $0x328] sm:$0xff]
  %v140 = vld [vmem:[%s0 + $0x330] sm:$0xff]
  %v141 = vld [vmem:[%s0 + $0x338] sm:$0xff]
  %v142 = vld [vmem:[%s0 + $0x340] sm:$0xff]
  %v143 = vld [vmem:[%s0 + $0x348] sm:$0xff]
  %v144 = vld [vmem:[%s0 + $0x350] sm:$0xff]
  %v145 = vld [vmem:[%s0 + $0x358] sm:$0xff]
  %v146 = vld [vmem:[%s0 + $0x360] sm:$0xff]
  %v147 = vld [vmem:[%s0 + $0x368] sm:$0xff]
  %v148 = vld [vmem:[%s0 + $0x370] sm:$0xff]
  %v149 = vld [vmem:[%s0 + $0x378] sm:$0xff]
  %v150 = vld [vmem:[%s0 + $0x380] sm:$0xff]
  %v151 = vld [vmem:[%s0 + $0x388] sm:$0xff]
  %v152 = vld [vmem:[%s0 + $0x390] sm:$0xff]
  %v153 = vld [vmem:[%s0 + $0x398] sm:$0xff]
  %v154 = vld [vmem:[%s0 + $0x3a0] sm:$0xff]
  %v155 = vld [vmem:[%s0 + $0x3a8] sm:$0xff]
  %v156 = vld [vmem:[%s0 + $0x3b0] sm:$0xff]
  %v157 = vld [vmem:[%s0 + $0x3b8] sm:$0xff]
  %v158 = vld [vmem:[%s0 + $0x3c0] sm:$0xff]
  %v159 = vld [vmem:[%s0 + $0x3c8] sm:$0xff]
  %v160 = vld [vmem:[%s0 + $0x3d0] sm:$0xff]
  %v161 = vld [vmem:[%s0 + $0x3d8] sm:$0xff]
  %v162 = vld [vmem:[%s0 + $0x3e0] sm:$0xff]
  %v163 = vld [vmem:[%s0 + $0x3e8] sm:$0xff]
  %v164 = vld [vmem:[%s0 + $0x3f0] sm:$0xff]
  %v165 = vld [vmem:[%s0 + $0x3f8] sm:$0xff]
  %v166 = vld [vmem:[%s0 + $0x400] sm:$0xff]
  %v167 = vld [vmem:[%s0 + $0x408] sm:$0xff]
  %v168 = vld [vmem:[%s0 + $0x410] sm:$0xff]
  %v169 = vld [vmem:[%s0 + $0x418] sm:$0xff]
  %v170 = vld [vmem:[%s0 + $0x420] sm:$0xff]
  %v171 = vld [vmem:[%s0 + $0x428] sm:$0xff]
  %v172 = vld [vmem:[%s0 + $0x430] sm:$0xff]
  %v173 = vld [vmem:[%s0 + $0x438] sm:$0xff]
  %v174 = vld [vmem:[%s0 + $0x440] sm:$0xff]
  %v175 = vld [vmem:[%s0 + $0x448] sm:$0xff]
  %v176 = vld [vmem:[%s0 + $0x450] sm:$0xff]
  %v177 = vld [vmem:[%s0 + $0x458] sm:$0xff]
  %v178 = vld [vmem:[%s0 + $0x460] sm:$0xff]
  %v179 = vld [vmem:[%s0 + $0x468] sm:$0xff]
  %v180 = vld [vmem:[%s0 + $0x470] sm:$0xff]
  %v181 = vld [vmem:[%s0 + $0x478] sm:$0xff]
  %v182 = vld [vmem:[%s0 + $0x480] sm:$0xff]
  %v183 = vld [vmem:[%s0 + $0x488] sm:$0xff]
  %v184 = vld [vmem:[%s0 + $0x490] sm:$0xff]
  %v185 = vld [vmem:[%s0 + $0x498] sm:$0xff]
  %v186 = vld [vmem:[%s0 + $0x4a0] sm:$0xff]
  %v187 = vld [vmem:[%s0 + $0x4a8] sm:$0xff]
  %v188 = vld [vmem:[%s0 + $0x4b0] sm:$0xff]
  %v189 = vld [vmem:[%s0 + $0x4b8] sm:$0xff]
  %v190 = vld [vmem:[%s0 + $0x4c0] sm:$0xff]
  %v191 = vld [vmem:[%s0 + $0x4c8] sm:$0xff]
  %v192 = vld [vmem:[%s0 + $0x4d0] sm:$0xff]
  %v193 = vld [vmem:[%s0 + $0x4d8] sm:$0xff]
  %v194 = vld [vmem:[%s0 + $0x4e0] sm:$0xff]
  %v195 = vld [vmem:[%s0 + $0x4e8] sm:$0xff]
  %v196 = vld [vmem:[%s0 + $0x4f0] sm:$0xff]
  %v197 = vld [vmem:[%s0 + $0x4f8] sm:$0xff]
  %v198 = vld [vmem:[%s0 + $0x500] sm:$0xff]
  %v199 = vld [vmem:[%s0 + $0x508] sm:$0xff]
  %v200 = vld [vmem:[%s0 + $0x510] sm:$0xff]
  %v201 = vld [vmem:[%s0 + $0x518] sm:$0xff]
  %v202 = vld [vmem:[%s0 + $0x520] sm:$0xff]
  %v203 = vld [vmem:[%s0 + $0x528] sm:$0xff]
  %v204 = vld [vmem:[%s0 + $0x530] sm:$0xff]
  %v205 = vld [vmem:[%s0 + $0x538] sm:$0xff]
  %v206 = vld [vmem:[%s0 + $0x540] sm:$0xff]
  %v207 = vld [vmem:[%s0 + $0x548] sm:$0xff]
  %v208 = vld [vmem:[%s0 + $0x550] sm:$0xff]
  %v209 = vld [vmem:[%s0 + $0x558] sm:$0xff]
  %v210 = vld [vmem:[%s0 + $0x560] sm:$0xff]
  %v211 = vld [vmem:[%s0 + $0x568] sm:$0xff]
  %v212 = vld [vmem:[%s0 + $0x570] sm:$0xff]
  %v213 = vld [vmem:[%s0 + $0x578] sm:$0xff]
  %v214 = vld [vmem:[%s0 + $0x580] sm:$0xff]
  %v215 = vld [vmem:[%s0 + $0x588] sm:$0xff]
  %v216 = vld [vmem:[%s0 + $0x590] sm:$0xff]
  %v217 = vld [vmem:[%s0 + $0x598] sm:$0xff]
  %v218 = vld [vmem:[%s0 + $0x5a0] sm:$0xff]
  %v219 = vld [vmem:[%s0 + $0x5a8] sm:$0xff]
  %v220 = vld [vmem:[%s0 + $0x5b0] sm:$0xff]
  %v221 = vld [vmem:[%s0 + $0x5b8] sm:$0xff]
  %v222 = vld [vmem:[%s0 + $0x5c0] sm:$0xff]
  %v223 = vld [vmem:[%s0 + $0x5c8] sm:$0xff]
  %v224 = vld [vmem:[%s0 + $0x5d0] sm:$0xff]
  %v225 = vld [vmem:[%s0 + $0x5d8] sm:$0xff]
  %v226 = vld [vmem:[%s0 + $0x5e0] sm:$0xff]
  %v227 = vld [vmem:[%s0 + $0x5e8] sm:$0xff]
  %v228 = vld [vmem:[%s0 + $0x5f0] sm:$0xff]
  %v229 = vld [vmem:[%s0 + $0x5f8] sm:$0xff]
  %v230 = vld [vmem:[%s0 + $0x600] sm:$0xff]
  %v231 = vld [vmem:[%s0 + $0x608] sm:$0xff]
  %v232 = vld [vmem:[%s0 + $0x610] sm:$0xff]
  %v233 = vld [vmem:[%s0 + $0x618] sm:$0xff]
  %v234 = vld [vmem:[%s0 + $0x620] sm:$0xff]
  %v235 = vld [vmem:[%s0 + $0x628] sm:$0xff]
  %v236 = vld [vmem:[%s0 + $0x630] sm:$0xff]
  %v237 = vld [vmem:[%s0 + $0x638] sm:$0xff]
  %v238 = vld [vmem:[%s0 + $0x640] sm:$0xff]
  %v239 = vld [vmem:[%s0 + $0x648] sm:$0xff]
  %v240 = vld [vmem:[%s0 + $0x650] sm:$0xff]
  %v241 = vld [vmem:[%s0 + $0x658] sm:$0xff]
  %v242 = vld [vmem:[%s0 + $0x660] sm:$0xff]
  %v243 = vld [vmem:[%s0 + $0x668] sm:$0xff]
  %v244 = vld [vmem:[%s0 + $0x670] sm:$0xff]
  %v245 = vld [vmem:[%s0 + $0x678] sm:$0xff]
  %v246 = vld [vmem:[%s0 + $0x680] sm:$0xff]
  %v247 = vld [vmem:[%s0 + $0x688] sm:$0xff]
  %v248 = vld [vmem:[%s0 + $0x690] sm:$0xff]
  %v249 = vld [vmem:[%s0 + $0x698] sm:$0xff]
  %v250 = vld [vmem:[%s0 + $0x6a0] sm:$0xff]
  %v251 = vld [vmem:[%s0 + $0x6a8] sm:$0xff]
  %v252 = vld [vmem:[%s0 + $0x6b0] sm:$0xff]
  %v253 = vld [vmem:[%s0 + $0x6b8] sm:$0xff]
  %v254 = vld [vmem:[%s0 + $0x6c0] sm:$0xff]
  %v255 = vld [vmem:[%s0 + $0x6c8] sm:$0xff]
  %v256 = vld [vmem:[%s0 + $0x6d0] sm:$0xff]
  %v257 = vld [vmem:[%s0 + $0x6d8] sm:$0xff]
  %v258 = vld [vmem:[%s0 + $0x6e0] sm:$0xff]
  %v259 = vld [vmem:[%s0 + $0x6e8] sm:$0xff]
  %v260 = vld [vmem:[%s0 + $0x6f0] sm:$0xff]
  %v261 = vld [vmem:[%s0 + $0x6f8] sm:$0xff]
  %v262 = vld [vmem:[%s0 + $0x700] sm:$0xff]
  %v263 = vld [vmem:[%s0 + $0x708] sm:$0xff]
  %v264 = vld [vmem:[%s0 + $0x710] sm:$0xff]
  %v265 = vld [vmem:[%s0 + $0x718] sm:$0xff]
  %v266 = vld [vmem:[%s0 + $0x720] sm:$0xff]
  %v267 = vld [vmem:[%s0 + $0x728] sm:$0xff]
  %v268 = vld [vmem:[%s0 + $0x730] sm:$0xff]
  %v269 = vld [vmem:[%s0 + $0x738] sm:$0xff]
  %v270 = vld [vmem:[%s0 + $0x740] sm:$0xff]
  %v271 = vld [vmem:[%s0 + $0x748] sm:$0xff]
  %v272 = vld [vmem:[%s0 + $0x750] sm:$0xff]
  %v273 = vld [vmem:[%s0 + $0x758] sm:$0xff]
  %v274 = vld [vmem:[%s0 + $0x760] sm:$0xff]
  %v275 = vld [vmem:[%s0 + $0x768] sm:$0xff]
  %v276 = vld [vmem:[%s0 + $0x770] sm:$0xff]
  %v277 = vld [vmem:[%s0 + $0x778] sm:$0xff]
  %v278 = vld [vmem:[%s0 + $0x780] sm:$0xff]
  %v279 = vld [vmem:[%s0 + $0x788] sm:$0xff]
  %v280 = vld [vmem:[%s0 + $0x790] sm:$0xff]
  %v281 = vld [vmem:[%s0 + $0x798] sm:$0xff]
  %v282 = vld [vmem:[%s0 + $0x7a0] sm:$0xff]
  %v283 = vld [vmem:[%s0 + $0x7a8] sm:$0xff]
  %v284 = vld [vmem:[%s0 + $0x7b0] sm:$0xff]
  %v285 = vld [vmem:[%s0 + $0x7b8] sm:$0xff]
  %v286 = vld [vmem:[%s0 + $0x7c0] sm:$0xff]
  %v287 = vld [vmem:[%s0 + $0x7c8] sm:$0xff]
  %v288 = vld [vmem:[%s0 + $0x7d0] sm:$0xff]
  %v289 = vld [vmem:[%s0 + $0x7d8] sm:$0xff]
  %v290 = vld [vmem:[%s0 + $0x7e0] sm:$0xff]
  %v291 = vld [vmem:[%s0 + $0x7e8] sm:$0xff]
  %v292 = vld [vmem:[%s0 + $0x7f0] sm:$0xff]
  %v293 = vld [vmem:[%s0 + $0x7f8] sm:$0xff]
  %v294 = vld [vmem:[%s0 + $0x800] sm:$0xff]
  %v295 = vld [vmem:[%s0 + $0x808] sm:$0xff]
  %v296 = vld [vmem:[%s0 + $0x810] sm:$0xff]
  %v297 = vld [vmem:[%s0 + $0x818] sm:$0xff]
  %v298 = vld [vmem:[%s0 + $0x820] sm:$0xff]
  %v299 = vld [vmem:[%s0 + $0x828] sm:$0xff]
  %v300 = vld [vmem:[%s0 + $0x830] sm:$0xff]
  %v301 = vld [vmem:[%s0 + $0x838] sm:$0xff]
  %v302 = vld [vmem:[%s0 + $0x840] sm:$0xff]
  %v303 = vld [vmem:[%s0 + $0x848] sm:$0xff]
  %v304 = vld [vmem:[%s0 + $0x850] sm:$0xff]
  %v305 = vld [vmem:[%s0 + $0x858] sm:$0xff]
  %v306 = vld [vmem:[%s0 + $0x860] sm:$0xff]
  %v307 = vld [vmem:[%s0 + $0x868] sm:$0xff]
  %v308 = vld [vmem:[%s0 + $0x870] sm:$0xff]
  %v309 = vld [vmem:[%s0 + $0x878] sm:$0xff]
  %v310 = vld [vmem:[%s0 + $0x880] sm:$0xff]
  %v311 = vld [vmem:[%s0 + $0x888] sm:$0xff]
  %v312 = vld [vmem:[%s0 + $0x890] sm:$0xff]
  %v313 = vld [vmem:[%s0 + $0x898] sm:$0xff]
  %v314 = vld [vmem:[%s0 + $0x8a0] sm:$0xff]
  %v315 = vld [vmem:[%s0 + $0x8a8] sm:$0xff]
  %v316 = vld [vmem:[%s0 + $0x8b0] sm:$0xff]
  %v317 = vld [vmem:[%s0 + $0x8b8] sm:$0xff]
  %v318 = vld [vmem:[%s0 + $0x8c0] sm:$0xff]
  %v319 = vld [vmem:[%s0 + $0x8c8] sm:$0xff]
  %v320 = vld [vmem:[%s0 + $0x8d0] sm:$0xff]
  %v321 = vld [vmem:[%s0 + $0x8d8] sm:$0xff]
  %v322 = vld [vmem:[%s0 + $0x8e0] sm:$0xff]
  %v323 = vld [vmem:[%s0 + $0x8e8] sm:$0xff]
  %v324 = vld [vmem:[%s0 + $0x8f0] sm:$0xff]
  %v325 = vld [vmem:[%s0 + $0x8f8] sm:$0xff]
  %v326 = vld [vmem:[%s1] sm:$0xff]
  %v327 = vld [vmem:[%s1 + $0x8] sm:$0xff]
  %v328 = vld [vmem:[%s1 + $0x10] sm:$0xff]
  %v329 = vld [vmem:[%s1 + $0x18] sm:$0xff]
  %v330 = vld [vmem:[%s1 + $0x20] sm:$0xff]
  %v331 = vld [vmem:[%s1 + $0x28] sm:$0xff]
  %v332 = vld [vmem:[%s1 + $0x30] sm:$0xff]
  %v333 = vld [vmem:[%s1 + $0x38] sm:$0xff]
  %v334 = vld [vmem:[%s1 + $0x40] sm:$0xff]
  %v335 = vld [vmem:[%s1 + $0x48] sm:$0xff]
  %v336 = vld [vmem:[%s1 + $0x50] sm:$0xff]
  %v337 = vld [vmem:[%s1 + $0x58] sm:$0xff]
  %v338 = vld [vmem:[%s1 + $0x60] sm:$0xff]
  %v339 = vld [vmem:[%s1 + $0x68] sm:$0xff]
  %v340 = vld [vmem:[%s1 + $0x70] sm:$0xff]
  %v341 = vld [vmem:[%s1 + $0x78] sm:$0xff]
  %v342 = vld [vmem:[%s1 + $0x80] sm:$0xff]
  %v343 = vld [vmem:[%s1 + $0x88] sm:$0xff]
  %v344 = vld [vmem:[%s1 + $0x90] sm:$0xff]
  %v345 = vld [vmem:[%s1 + $0x98] sm:$0xff]
  %v346 = vld [vmem:[%s1 + $0xa0] sm:$0xff]
  %v347 = vld [vmem:[%s1 + $0xa8] sm:$0xff]
  %v348 = vld [vmem:[%s1 + $0xb0] sm:$0xff]
  %v349 = vld [vmem:[%s1 + $0xb8] sm:$0xff]
  %v350 = vld [vmem:[%s1 + $0xc0] sm:$0xff]
  %v351 = vld [vmem:[%s1 + $0xc8] sm:$0xff]
  %v352 = vld [vmem:[%s1 + $0xd0] sm:$0xff]
  %v353 = vld [vmem:[%s1 + $0xd8] sm:$0xff]
  %v354 = vld [vmem:[%s1 + $0xe0] sm:$0xff]
  %v355 = vld [vmem:[%s1 + $0xe8] sm:$0xff]
  %v356 = vld [vmem:[%s1 + $0xf0] sm:$0xff]
  %v357 = vld [vmem:[%s1 + $0xf8] sm:$0xff]
  %v358 = vld [vmem:[%s2] sm:$0x1]
  %v360 = vlaneseq
  %v361 = vshrl.u32 %v360, 7
  %v362 = vsub.s32 0, %v361
  %v363 = vrot.slane %v358, %v362
  %365 = vmatprep.subr.mxu0 0.0
  %366 = vmatpush1.msra.mxu0 %v341
  %367 = vmatprep.subr.mxu0 0.0
  %368 = vmatpush1.msra.mxu0 %v340
  %369 = vmatprep.subr.mxu0 0.0
  %370 = vmatpush1.msra.mxu0 %v339
  %371 = vmatprep.subr.mxu0 0.0
  %372 = vmatpush1.msra.mxu0 %v338
  %373 = vmatprep.subr.mxu0 0.0
  %374 = vmatpush1.msra.mxu0 %v337
  %375 = vmatprep.subr.mxu0 0.0
  %376 = vmatpush1.msra.mxu0 %v336
  %377 = vmatprep.subr.mxu0 0.0
  %378 = vmatpush1.msra.mxu0 %v335
  %379 = vmatprep.subr.mxu0 0.0
  %380 = vmatpush1.msra.mxu0 %v334
  %381 = vmatprep.subr.mxu0 0.0
  %382 = vmatpush1.msra.mxu0 %v333
  %383 = vmatprep.subr.mxu0 0.0
  %384 = vmatpush1.msra.mxu0 %v332
  %385 = vmatprep.subr.mxu0 0.0
  %386 = vmatpush1.msra.mxu0 %v331
  %387 = vmatprep.subr.mxu0 0.0
  %388 = vmatpush1.msra.mxu0 %v330
  %389 = vmatprep.subr.mxu0 0.0
  %390 = vmatpush1.msra.mxu0 %v329
  %391 = vmatprep.subr.mxu0 0.0
  %392 = vmatpush1.msra.mxu0 %v328
  %393 = vmatprep.subr.mxu0 0.0
  %394 = vmatpush1.msra.mxu0 %v327
  %395 = vmatprep.subr.mxu0 0.0
  %396 = vmatpush1.msra.mxu0 %v326
  %397 = vmatprep.subr.mxu0 0.0
  %398 = vmatpush2.msra.mxu0 %v357
  %399 = vmatprep.subr.mxu0 0.0
  %400 = vmatpush2.msra.mxu0 %v356
  %401 = vmatprep.subr.mxu0 0.0
  %402 = vmatpush2.msra.mxu0 %v355
  %403 = vmatprep.subr.mxu0 0.0
  %404 = vmatpush2.msra.mxu0 %v354
  %405 = vmatprep.subr.mxu0 0.0
  %406 = vmatpush2.msra.mxu0 %v353
  %407 = vmatprep.subr.mxu0 0.0
  %408 = vmatpush2.msra.mxu0 %v352
  %409 = vmatprep.subr.mxu0 0.0
  %410 = vmatpush2.msra.mxu0 %v351
  %411 = vmatprep.subr.mxu0 0.0
  %412 = vmatpush2.msra.mxu0 %v350
  %413 = vmatprep.subr.mxu0 0.0
  %414 = vmatpush2.msra.mxu0 %v349
  %415 = vmatprep.subr.mxu0 0.0
  %416 = vmatpush2.msra.mxu0 %v348
  %417 = vmatprep.subr.mxu0 0.0
  %418 = vmatpush2.msra.mxu0 %v347
  %419 = vmatprep.subr.mxu0 0.0
  %420 = vmatpush2.msra.mxu0 %v346
  %421 = vmatprep.subr.mxu0 0.0
  %422 = vmatpush2.msra.mxu0 %v345
  %423 = vmatprep.subr.mxu0 0.0
  %424 = vmatpush2.msra.mxu0 %v344
  %425 = vmatprep.subr.mxu0 0.0
  %426 = vmatpush2.msra.mxu0 %v343
  %427 = vmatprep.subr.mxu0 0.0
  %428 = vmatpush2.msra.mxu0 %v342
  %429 = vmatprep.mubr.f32.mxu0 %v39
  %430 = vmatmul.mubr.f32.gmra.mxu0 %v38
  %v431 = vpop.f32.mrf.mxu0
  %v432 = vadd.f32 %v363, %v431
  %v433 = vpop.f32.mrf.mxu0
  %434 = vmatprep.mubr.f32.mxu0 %v41
  %435 = vmatmul.mubr.f32.gmra.mxu0 %v40
  %v436 = vpop.f32.mrf.mxu0
  %v437 = vadd.f32 %v363, %v436
  %v438 = vpop.f32.mrf.mxu0
  %439 = vmatprep.mubr.f32.mxu0 %v43
  %440 = vmatmul.mubr.f32.gmra.mxu0 %v42
  %v441 = vpop.f32.mrf.mxu0
  %v442 = vadd.f32 %v363, %v441
  %v443 = vpop.f32.mrf.mxu0
  %444 = vmatprep.mubr.f32.mxu0 %v45
  %445 = vmatmul.mubr.f32.gmra.mxu0 %v44
  %v446 = vpop.f32.mrf.mxu0
  %v447 = vadd.f32 %v363, %v446
  %v448 = vpop.f32.mrf.mxu0
  %449 = vmatprep.mubr.f32.mxu0 %v47
  %450 = vmatmul.mubr.f32.gmra.mxu0 %v46
  %v451 = vpop.f32.mrf.mxu0
  %v452 = vadd.f32 %v363, %v451
  %v453 = vpop.f32.mrf.mxu0
  %454 = vmatprep.mubr.f32.mxu0 %v49
  %455 = vmatmul.mubr.f32.gmra.mxu0 %v48
  %v456 = vpop.f32.mrf.mxu0
  %v457 = vadd.f32 %v363, %v456
  %v458 = vpop.f32.mrf.mxu0
  %459 = vmatprep.mubr.f32.mxu0 %v51
  %460 = vmatmul.mubr.f32.gmra.mxu0 %v50
  %v461 = vpop.f32.mrf.mxu0
  %v462 = vadd.f32 %v363, %v461
  %v463 = vpop.f32.mrf.mxu0
  %464 = vmatprep.mubr.f32.mxu0 %v53
  %465 = vmatmul.mubr.f32.gmra.mxu0 %v52
  %v466 = vpop.f32.mrf.mxu0
  %v467 = vadd.f32 %v363, %v466
  %v468 = vpop.f32.mrf.mxu0
  %469 = vmatprep.mubr.f32.mxu0 %v55
  %470 = vmatmul.mubr.f32.gmra.mxu0 %v54
  %v471 = vpop.f32.mrf.mxu0
  %v472 = vadd.f32 %v363, %v471
  %v473 = vpop.f32.mrf.mxu0
  %474 = vmatprep.mubr.f32.mxu0 %v57
  %475 = vmatmul.mubr.f32.gmra.mxu0 %v56
  %v476 = vpop.f32.mrf.mxu0
  %v477 = vadd.f32 %v363, %v476
  %v478 = vpop.f32.mrf.mxu0
  %479 = vmatprep.mubr.f32.mxu0 %v59
  %480 = vmatmul.mubr.f32.gmra.mxu0 %v58
  %v481 = vpop.f32.mrf.mxu0
  %v482 = vadd.f32 %v363, %v481
  %v483 = vpop.f32.mrf.mxu0
  %484 = vmatprep.mubr.f32.mxu0 %v61
  %485 = vmatmul.mubr.f32.gmra.mxu0 %v60
  %v486 = vpop.f32.mrf.mxu0
  %v487 = vadd.f32 %v363, %v486
  %v488 = vpop.f32.mrf.mxu0
  %489 = vmatprep.mubr.f32.mxu0 %v63
  %490 = vmatmul.mubr.f32.gmra.mxu0 %v62
  %v491 = vpop.f32.mrf.mxu0
  %v492 = vadd.f32 %v363, %v491
  %v493 = vpop.f32.mrf.mxu0
  %494 = vmatprep.mubr.f32.mxu0 %v65
  %495 = vmatmul.mubr.f32.gmra.mxu0 %v64
  %v496 = vpop.f32.mrf.mxu0
  %v497 = vadd.f32 %v363, %v496
  %v498 = vpop.f32.mrf.mxu0
  %499 = vmatprep.mubr.f32.mxu0 %v67
  %500 = vmatmul.mubr.f32.gmra.mxu0 %v66
  %v501 = vpop.f32.mrf.mxu0
  %v502 = vadd.f32 %v363, %v501
  %v503 = vpop.f32.mrf.mxu0
  %504 = vmatprep.mubr.f32.mxu0 %v69
  %505 = vmatmul.mubr.f32.gmra.mxu0 %v68
  %v506 = vpop.f32.mrf.mxu0
  %v507 = vadd.f32 %v363, %v506
  %v508 = vpop.f32.mrf.mxu0
  %509 = vmatprep.mubr.f32.mxu0 %v71
  %510 = vmatmul.mubr.f32.gmra.mxu0 %v70
  %v511 = vpop.f32.mrf.mxu0
  %v512 = vadd.f32 %v363, %v511
  %v513 = vpop.f32.mrf.mxu0
  %514 = vmatprep.mubr.f32.mxu0 %v73
  %515 = vmatmul.mubr.f32.gmra.mxu0 %v72
  %v516 = vpop.f32.mrf.mxu0
  %v517 = vadd.f32 %v363, %v516
  %v518 = vpop.f32.mrf.mxu0
  %519 = vmatprep.mubr.f32.mxu0 %v75
  %520 = vmatmul.mubr.f32.gmra.mxu0 %v74
  %v521 = vpop.f32.mrf.mxu0
  %v522 = vadd.f32 %v363, %v521
  %v523 = vpop.f32.mrf.mxu0
  %524 = vmatprep.mubr.f32.mxu0 %v77
  %525 = vmatmul.mubr.f32.gmra.mxu0 %v76
  %v526 = vpop.f32.mrf.mxu0
  %v527 = vadd.f32 %v363, %v526
  %v528 = vpop.f32.mrf.mxu0
  %529 = vmatprep.mubr.f32.mxu0 %v79
  %530 = vmatmul.mubr.f32.gmra.mxu0 %v78
  %v531 = vpop.f32.mrf.mxu0
  %v532 = vadd.f32 %v363, %v531
  %v533 = vpop.f32.mrf.mxu0
  %534 = vmatprep.mubr.f32.mxu0 %v81
  %535 = vmatmul.mubr.f32.gmra.mxu0 %v80
  %v536 = vpop.f32.mrf.mxu0
  %v537 = vadd.f32 %v363, %v536
  %v538 = vpop.f32.mrf.mxu0
  %539 = vmatprep.mubr.f32.mxu0 %v83
  %540 = vmatmul.mubr.f32.gmra.mxu0 %v82
  %v541 = vpop.f32.mrf.mxu0
  %v542 = vadd.f32 %v363, %v541
  %v543 = vpop.f32.mrf.mxu0
  %544 = vmatprep.mubr.f32.mxu0 %v85
  %545 = vmatmul.mubr.f32.gmra.mxu0 %v84
  %v546 = vpop.f32.mrf.mxu0
  %v547 = vadd.f32 %v363, %v546
  %v548 = vpop.f32.mrf.mxu0
  %549 = vmatprep.mubr.f32.mxu0 %v87
  %550 = vmatmul.mubr.f32.gmra.mxu0 %v86
  %v551 = vpop.f32.mrf.mxu0
  %v552 = vadd.f32 %v363, %v551
  %v553 = vpop.f32.mrf.mxu0
  %554 = vmatprep.mubr.f32.mxu0 %v89
  %555 = vmatmul.mubr.f32.gmra.mxu0 %v88
  %v556 = vpop.f32.mrf.mxu0
  %v557 = vadd.f32 %v363, %v556
  %v558 = vpop.f32.mrf.mxu0
  %559 = vmatprep.mubr.f32.mxu0 %v91
  %560 = vmatmul.mubr.f32.gmra.mxu0 %v90
  %v561 = vpop.f32.mrf.mxu0
  %v562 = vadd.f32 %v363, %v561
  %v563 = vpop.f32.mrf.mxu0
  %564 = vmatprep.mubr.f32.mxu0 %v93
  %565 = vmatmul.mubr.f32.gmra.mxu0 %v92
  %v566 = vpop.f32.mrf.mxu0
  %v567 = vadd.f32 %v363, %v566
  %v568 = vpop.f32.mrf.mxu0
  %569 = vmatprep.mubr.f32.mxu0 %v95
  %570 = vmatmul.mubr.f32.gmra.mxu0 %v94
  %v571 = vpop.f32.mrf.mxu0
  %v572 = vadd.f32 %v363, %v571
  %v573 = vpop.f32.mrf.mxu0
  %574 = vmatprep.mubr.f32.mxu0 %v97
  %575 = vmatmul.mubr.f32.gmra.mxu0 %v96
  %v576 = vpop.f32.mrf.mxu0
  %v577 = vadd.f32 %v363, %v576
  %v578 = vpop.f32.mrf.mxu0
  %579 = vmatprep.mubr.f32.mxu0 %v99
  %580 = vmatmul.mubr.f32.gmra.mxu0 %v98
  %v581 = vpop.f32.mrf.mxu0
  %v582 = vadd.f32 %v363, %v581
  %v583 = vpop.f32.mrf.mxu0
  %584 = vmatprep.mubr.f32.mxu0 %v101
  %585 = vmatmul.mubr.f32.gmra.mxu0 %v100
  %v586 = vpop.f32.mrf.mxu0
  %v587 = vadd.f32 %v363, %v586
  %v588 = vpop.f32.mrf.mxu0
  %589 = vmatprep.mubr.f32.mxu0 %v103
  %590 = vmatmul.mubr.f32.gmra.mxu0 %v102
  %v591 = vpop.f32.mrf.mxu0
  %v592 = vadd.f32 %v363, %v591
  %v593 = vpop.f32.mrf.mxu0
  %594 = vmatprep.mubr.f32.mxu0 %v105
  %595 = vmatmul.mubr.f32.gmra.mxu0 %v104
  %v596 = vpop.f32.mrf.mxu0
  %v597 = vadd.f32 %v363, %v596
  %v598 = vpop.f32.mrf.mxu0
  %599 = vmatprep.mubr.f32.mxu0 %v107
  %600 = vmatmul.mubr.f32.gmra.mxu0 %v106
  %v601 = vpop.f32.mrf.mxu0
  %v602 = vadd.f32 %v363, %v601
  %v603 = vpop.f32.mrf.mxu0
  %604 = vmatprep.mubr.f32.mxu0 %v109
  %605 = vmatmul.mubr.f32.gmra.mxu0 %v108
  %v606 = vpop.f32.mrf.mxu0
  %v607 = vadd.f32 %v363, %v606
  %v608 = vpop.f32.mrf.mxu0
  %609 = vmatprep.mubr.f32.mxu0 %v111
  %610 = vmatmul.mubr.f32.gmra.mxu0 %v110
  %v611 = vpop.f32.mrf.mxu0
  %v612 = vadd.f32 %v363, %v611
  %v613 = vpop.f32.mrf.mxu0
  %614 = vmatprep.mubr.f32.mxu0 %v113
  %615 = vmatmul.mubr.f32.gmra.mxu0 %v112
  %v616 = vpop.f32.mrf.mxu0
  %v617 = vadd.f32 %v363, %v616
  %v618 = vpop.f32.mrf.mxu0
  %619 = vmatprep.mubr.f32.mxu0 %v115
  %620 = vmatmul.mubr.f32.gmra.mxu0 %v114
  %v621 = vpop.f32.mrf.mxu0
  %v622 = vadd.f32 %v363, %v621
  %v623 = vpop.f32.mrf.mxu0
  %624 = vmatprep.mubr.f32.mxu0 %v117
  %625 = vmatmul.mubr.f32.gmra.mxu0 %v116
  %v626 = vpop.f32.mrf.mxu0
  %v627 = vadd.f32 %v363, %v626
  %v628 = vpop.f32.mrf.mxu0
  %629 = vmatprep.mubr.f32.mxu0 %v119
  %630 = vmatmul.mubr.f32.gmra.mxu0 %v118
  %v631 = vpop.f32.mrf.mxu0
  %v632 = vadd.f32 %v363, %v631
  %v633 = vpop.f32.mrf.mxu0
  %634 = vmatprep.mubr.f32.mxu0 %v121
  %635 = vmatmul.mubr.f32.gmra.mxu0 %v120
  %v636 = vpop.f32.mrf.mxu0
  %v637 = vadd.f32 %v363, %v636
  %v638 = vpop.f32.mrf.mxu0
  %639 = vmatprep.mubr.f32.mxu0 %v123
  %640 = vmatmul.mubr.f32.gmra.mxu0 %v122
  %v641 = vpop.f32.mrf.mxu0
  %v642 = vadd.f32 %v363, %v641
  %v643 = vpop.f32.mrf.mxu0
  %644 = vmatprep.mubr.f32.mxu0 %v125
  %645 = vmatmul.mubr.f32.gmra.mxu0 %v124
  %v646 = vpop.f32.mrf.mxu0
  %v647 = vadd.f32 %v363, %v646
  %v648 = vpop.f32.mrf.mxu0
  %649 = vmatprep.mubr.f32.mxu0 %v127
  %650 = vmatmul.mubr.f32.gmra.mxu0 %v126
  %v651 = vpop.f32.mrf.mxu0
  %v652 = vadd.f32 %v363, %v651
  %v653 = vpop.f32.mrf.mxu0
  %654 = vmatprep.mubr.f32.mxu0 %v129
  %655 = vmatmul.mubr.f32.gmra.mxu0 %v128
  %v656 = vpop.f32.mrf.mxu0
  %v657 = vadd.f32 %v363, %v656
  %v658 = vpop.f32.mrf.mxu0
  %659 = vmatprep.mubr.f32.mxu0 %v131
  %660 = vmatmul.mubr.f32.gmra.mxu0 %v130
  %v661 = vpop.f32.mrf.mxu0
  %v662 = vadd.f32 %v363, %v661
  %v663 = vpop.f32.mrf.mxu0
  %664 = vmatprep.mubr.f32.mxu0 %v133
  %665 = vmatmul.mubr.f32.gmra.mxu0 %v132
  %v666 = vpop.f32.mrf.mxu0
  %v667 = vadd.f32 %v363, %v666
  %v668 = vpop.f32.mrf.mxu0
  %669 = vmatprep.mubr.f32.mxu0 %v135
  %670 = vmatmul.mubr.f32.gmra.mxu0 %v134
  %v671 = vpop.f32.mrf.mxu0
  %v672 = vadd.f32 %v363, %v671
  %v673 = vpop.f32.mrf.mxu0
  %674 = vmatprep.mubr.f32.mxu0 %v137
  %675 = vmatmul.mubr.f32.gmra.mxu0 %v136
  %v676 = vpop.f32.mrf.mxu0
  %v677 = vadd.f32 %v363, %v676
  %v678 = vpop.f32.mrf.mxu0
  %679 = vmatprep.mubr.f32.mxu0 %v139
  %680 = vmatmul.mubr.f32.gmra.mxu0 %v138
  %v681 = vpop.f32.mrf.mxu0
  %v682 = vadd.f32 %v363, %v681
  %v683 = vpop.f32.mrf.mxu0
  %684 = vmatprep.mubr.f32.mxu0 %v141
  %685 = vmatmul.mubr.f32.gmra.mxu0 %v140
  %v686 = vpop.f32.mrf.mxu0
  %v687 = vadd.f32 %v363, %v686
  %v688 = vpop.f32.mrf.mxu0
  %689 = vmatprep.mubr.f32.mxu0 %v143
  %690 = vmatmul.mubr.f32.gmra.mxu0 %v142
  %v691 = vpop.f32.mrf.mxu0
  %v692 = vadd.f32 %v363, %v691
  %v693 = vpop.f32.mrf.mxu0
  %694 = vmatprep.mubr.f32.mxu0 %v145
  %695 = vmatmul.mubr.f32.gmra.mxu0 %v144
  %v696 = vpop.f32.mrf.mxu0
  %v697 = vadd.f32 %v363, %v696
  %v698 = vpop.f32.mrf.mxu0
  %699 = vmatprep.mubr.f32.mxu0 %v147
  %700 = vmatmul.mubr.f32.gmra.mxu0 %v146
  %v701 = vpop.f32.mrf.mxu0
  %v702 = vadd.f32 %v363, %v701
  %v703 = vpop.f32.mrf.mxu0
  %704 = vmatprep.mubr.f32.mxu0 %v149
  %705 = vmatmul.mubr.f32.gmra.mxu0 %v148
  %v706 = vpop.f32.mrf.mxu0
  %v707 = vadd.f32 %v363, %v706
  %v708 = vpop.f32.mrf.mxu0
  %709 = vmatprep.mubr.f32.mxu0 %v151
  %710 = vmatmul.mubr.f32.gmra.mxu0 %v150
  %v711 = vpop.f32.mrf.mxu0
  %v712 = vadd.f32 %v363, %v711
  %v713 = vpop.f32.mrf.mxu0
  %714 = vmatprep.mubr.f32.mxu0 %v153
  %715 = vmatmul.mubr.f32.gmra.mxu0 %v152
  %v716 = vpop.f32.mrf.mxu0
  %v717 = vadd.f32 %v363, %v716
  %v718 = vpop.f32.mrf.mxu0
  %719 = vmatprep.mubr.f32.mxu0 %v155
  %720 = vmatmul.mubr.f32.gmra.mxu0 %v154
  %v721 = vpop.f32.mrf.mxu0
  %v722 = vadd.f32 %v363, %v721
  %v723 = vpop.f32.mrf.mxu0
  %724 = vmatprep.mubr.f32.mxu0 %v157
  %725 = vmatmul.mubr.f32.gmra.mxu0 %v156
  %v726 = vpop.f32.mrf.mxu0
  %v727 = vadd.f32 %v363, %v726
  %v728 = vpop.f32.mrf.mxu0
  %729 = vmatprep.mubr.f32.mxu0 %v159
  %730 = vmatmul.mubr.f32.gmra.mxu0 %v158
  %v731 = vpop.f32.mrf.mxu0
  %v732 = vadd.f32 %v363, %v731
  %v733 = vpop.f32.mrf.mxu0
  %734 = vmatprep.mubr.f32.mxu0 %v161
  %735 = vmatmul.mubr.f32.gmra.mxu0 %v160
  %v736 = vpop.f32.mrf.mxu0
  %v737 = vadd.f32 %v363, %v736
  %v738 = vpop.f32.mrf.mxu0
  %739 = vmatprep.mubr.f32.mxu0 %v163
  %740 = vmatmul.mubr.f32.gmra.mxu0 %v162
  %v741 = vpop.f32.mrf.mxu0
  %v742 = vadd.f32 %v363, %v741
  %v743 = vpop.f32.mrf.mxu0
  %744 = vmatprep.mubr.f32.mxu0 %v165
  %745 = vmatmul.mubr.f32.gmra.mxu0 %v164
  %v746 = vpop.f32.mrf.mxu0
  %v747 = vadd.f32 %v363, %v746
  %v748 = vpop.f32.mrf.mxu0
  %749 = vmatprep.mubr.f32.mxu0 %v167
  %750 = vmatmul.mubr.f32.gmra.mxu0 %v166
  %v751 = vpop.f32.mrf.mxu0
  %v752 = vadd.f32 %v363, %v751
  %v753 = vpop.f32.mrf.mxu0
  %754 = vmatprep.mubr.f32.mxu0 %v169
  %755 = vmatmul.mubr.f32.gmra.mxu0 %v168
  %v756 = vpop.f32.mrf.mxu0
  %v757 = vadd.f32 %v363, %v756
  %v758 = vpop.f32.mrf.mxu0
  %759 = vmatprep.mubr.f32.mxu0 %v171
  %760 = vmatmul.mubr.f32.gmra.mxu0 %v170
  %v761 = vpop.f32.mrf.mxu0
  %v762 = vadd.f32 %v363, %v761
  %v763 = vpop.f32.mrf.mxu0
  %764 = vmatprep.mubr.f32.mxu0 %v173
  %765 = vmatmul.mubr.f32.gmra.mxu0 %v172
  %v766 = vpop.f32.mrf.mxu0
  %v767 = vadd.f32 %v363, %v766
  %v768 = vpop.f32.mrf.mxu0
  %769 = vmatprep.mubr.f32.mxu0 %v175
  %770 = vmatmul.mubr.f32.gmra.mxu0 %v174
  %v771 = vpop.f32.mrf.mxu0
  %v772 = vadd.f32 %v363, %v771
  %v773 = vpop.f32.mrf.mxu0
  %774 = vmatprep.mubr.f32.mxu0 %v177
  %775 = vmatmul.mubr.f32.gmra.mxu0 %v176
  %v776 = vpop.f32.mrf.mxu0
  %v777 = vadd.f32 %v363, %v776
  %v778 = vpop.f32.mrf.mxu0
  %779 = vmatprep.mubr.f32.mxu0 %v179
  %780 = vmatmul.mubr.f32.gmra.mxu0 %v178
  %v781 = vpop.f32.mrf.mxu0
  %v782 = vadd.f32 %v363, %v781
  %v783 = vpop.f32.mrf.mxu0
  %784 = vmatprep.mubr.f32.mxu0 %v181
  %785 = vmatmul.mubr.f32.gmra.mxu0 %v180
  %v786 = vpop.f32.mrf.mxu0
  %v787 = vadd.f32 %v363, %v786
  %v788 = vpop.f32.mrf.mxu0
  %789 = vmatprep.mubr.f32.mxu0 %v183
  %790 = vmatmul.mubr.f32.gmra.mxu0 %v182
  %v791 = vpop.f32.mrf.mxu0
  %v792 = vadd.f32 %v363, %v791
  %v793 = vpop.f32.mrf.mxu0
  %794 = vmatprep.mubr.f32.mxu0 %v185
  %795 = vmatmul.mubr.f32.gmra.mxu0 %v184
  %v796 = vpop.f32.mrf.mxu0
  %v797 = vadd.f32 %v363, %v796
  %v798 = vpop.f32.mrf.mxu0
  %799 = vmatprep.mubr.f32.mxu0 %v187
  %800 = vmatmul.mubr.f32.gmra.mxu0 %v186
  %v801 = vpop.f32.mrf.mxu0
  %v802 = vadd.f32 %v363, %v801
  %v803 = vpop.f32.mrf.mxu0
  %804 = vmatprep.mubr.f32.mxu0 %v189
  %805 = vmatmul.mubr.f32.gmra.mxu0 %v188
  %v806 = vpop.f32.mrf.mxu0
  %v807 = vadd.f32 %v363, %v806
  %v808 = vpop.f32.mrf.mxu0
  %809 = vmatprep.mubr.f32.mxu0 %v191
  %810 = vmatmul.mubr.f32.gmra.mxu0 %v190
  %v811 = vpop.f32.mrf.mxu0
  %v812 = vadd.f32 %v363, %v811
  %v813 = vpop.f32.mrf.mxu0
  %814 = vmatprep.mubr.f32.mxu0 %v193
  %815 = vmatmul.mubr.f32.gmra.mxu0 %v192
  %v816 = vpop.f32.mrf.mxu0
  %v817 = vadd.f32 %v363, %v816
  %v818 = vpop.f32.mrf.mxu0
  %819 = vmatprep.mubr.f32.mxu0 %v195
  %820 = vmatmul.mubr.f32.gmra.mxu0 %v194
  %v821 = vpop.f32.mrf.mxu0
  %v822 = vadd.f32 %v363, %v821
  %v823 = vpop.f32.mrf.mxu0
  %824 = vmatprep.mubr.f32.mxu0 %v197
  %825 = vmatmul.mubr.f32.gmra.mxu0 %v196
  %v826 = vpop.f32.mrf.mxu0
  %v827 = vadd.f32 %v363, %v826
  %v828 = vpop.f32.mrf.mxu0
  %829 = vmatprep.mubr.f32.mxu0 %v199
  %830 = vmatmul.mubr.f32.gmra.mxu0 %v198
  %v831 = vpop.f32.mrf.mxu0
  %v832 = vadd.f32 %v363, %v831
  %v833 = vpop.f32.mrf.mxu0
  %834 = vmatprep.mubr.f32.mxu0 %v201
  %835 = vmatmul.mubr.f32.gmra.mxu0 %v200
  %v836 = vpop.f32.mrf.mxu0
  %v837 = vadd.f32 %v363, %v836
  %v838 = vpop.f32.mrf.mxu0
  %839 = vmatprep.mubr.f32.mxu0 %v203
  %840 = vmatmul.mubr.f32.gmra.mxu0 %v202
  %v841 = vpop.f32.mrf.mxu0
  %v842 = vadd.f32 %v363, %v841
  %v843 = vpop.f32.mrf.mxu0
  %844 = vmatprep.mubr.f32.mxu0 %v205
  %845 = vmatmul.mubr.f32.gmra.mxu0 %v204
  %v846 = vpop.f32.mrf.mxu0
  %v847 = vadd.f32 %v363, %v846
  %v848 = vpop.f32.mrf.mxu0
  %849 = vmatprep.mubr.f32.mxu0 %v207
  %850 = vmatmul.mubr.f32.gmra.mxu0 %v206
  %v851 = vpop.f32.mrf.mxu0
  %v852 = vadd.f32 %v363, %v851
  %v853 = vpop.f32.mrf.mxu0
  %854 = vmatprep.mubr.f32.mxu0 %v209
  %855 = vmatmul.mubr.f32.gmra.mxu0 %v208
  %v856 = vpop.f32.mrf.mxu0
  %v857 = vadd.f32 %v363, %v856
  %v858 = vpop.f32.mrf.mxu0
  %859 = vmatprep.mubr.f32.mxu0 %v211
  %860 = vmatmul.mubr.f32.gmra.mxu0 %v210
  %v861 = vpop.f32.mrf.mxu0
  %v862 = vadd.f32 %v363, %v861
  %v863 = vpop.f32.mrf.mxu0
  %864 = vmatprep.mubr.f32.mxu0 %v213
  %865 = vmatmul.mubr.f32.gmra.mxu0 %v212
  %v866 = vpop.f32.mrf.mxu0
  %v867 = vadd.f32 %v363, %v866
  %v868 = vpop.f32.mrf.mxu0
  %869 = vmatprep.mubr.f32.mxu0 %v215
  %870 = vmatmul.mubr.f32.gmra.mxu0 %v214
  %v871 = vpop.f32.mrf.mxu0
  %v872 = vadd.f32 %v363, %v871
  %v873 = vpop.f32.mrf.mxu0
  %874 = vmatprep.mubr.f32.mxu0 %v217
  %875 = vmatmul.mubr.f32.gmra.mxu0 %v216
  %v876 = vpop.f32.mrf.mxu0
  %v877 = vadd.f32 %v363, %v876
  %v878 = vpop.f32.mrf.mxu0
  %879 = vmatprep.mubr.f32.mxu0 %v219
  %880 = vmatmul.mubr.f32.gmra.mxu0 %v218
  %v881 = vpop.f32.mrf.mxu0
  %v882 = vadd.f32 %v363, %v881
  %v883 = vpop.f32.mrf.mxu0
  %884 = vmatprep.mubr.f32.mxu0 %v221
  %885 = vmatmul.mubr.f32.gmra.mxu0 %v220
  %v886 = vpop.f32.mrf.mxu0
  %v887 = vadd.f32 %v363, %v886
  %v888 = vpop.f32.mrf.mxu0
  %889 = vmatprep.mubr.f32.mxu0 %v223
  %890 = vmatmul.mubr.f32.gmra.mxu0 %v222
  %v891 = vpop.f32.mrf.mxu0
  %v892 = vadd.f32 %v363, %v891
  %v893 = vpop.f32.mrf.mxu0
  %894 = vmatprep.mubr.f32.mxu0 %v225
  %895 = vmatmul.mubr.f32.gmra.mxu0 %v224
  %v896 = vpop.f32.mrf.mxu0
  %v897 = vadd.f32 %v363, %v896
  %v898 = vpop.f32.mrf.mxu0
  %899 = vmatprep.mubr.f32.mxu0 %v227
  %900 = vmatmul.mubr.f32.gmra.mxu0 %v226
  %v901 = vpop.f32.mrf.mxu0
  %v902 = vadd.f32 %v363, %v901
  %v903 = vpop.f32.mrf.mxu0
  %904 = vmatprep.mubr.f32.mxu0 %v229
  %905 = vmatmul.mubr.f32.gmra.mxu0 %v228
  %v906 = vpop.f32.mrf.mxu0
  %v907 = vadd.f32 %v363, %v906
  %v908 = vpop.f32.mrf.mxu0
  %909 = vmatprep.mubr.f32.mxu0 %v231
  %910 = vmatmul.mubr.f32.gmra.mxu0 %v230
  %v911 = vpop.f32.mrf.mxu0
  %v912 = vadd.f32 %v363, %v911
  %v913 = vpop.f32.mrf.mxu0
  %914 = vmatprep.mubr.f32.mxu0 %v233
  %915 = vmatmul.mubr.f32.gmra.mxu0 %v232
  %v916 = vpop.f32.mrf.mxu0
  %v917 = vadd.f32 %v363, %v916
  %v918 = vpop.f32.mrf.mxu0
  %919 = vmatprep.mubr.f32.mxu0 %v235
  %920 = vmatmul.mubr.f32.gmra.mxu0 %v234
  %v921 = vpop.f32.mrf.mxu0
  %v922 = vadd.f32 %v363, %v921
  %v923 = vpop.f32.mrf.mxu0
  %924 = vmatprep.mubr.f32.mxu0 %v237
  %925 = vmatmul.mubr.f32.gmra.mxu0 %v236
  %v926 = vpop.f32.mrf.mxu0
  %v927 = vadd.f32 %v363, %v926
  %v928 = vpop.f32.mrf.mxu0
  %929 = vmatprep.mubr.f32.mxu0 %v239
  %930 = vmatmul.mubr.f32.gmra.mxu0 %v238
  %v931 = vpop.f32.mrf.mxu0
  %v932 = vadd.f32 %v363, %v931
  %v933 = vpop.f32.mrf.mxu0
  %934 = vmatprep.mubr.f32.mxu0 %v241
  %935 = vmatmul.mubr.f32.gmra.mxu0 %v240
  %v936 = vpop.f32.mrf.mxu0
  %v937 = vadd.f32 %v363, %v936
  %v938 = vpop.f32.mrf.mxu0
  %939 = vmatprep.mubr.f32.mxu0 %v243
  %940 = vmatmul.mubr.f32.gmra.mxu0 %v242
  %v941 = vpop.f32.mrf.mxu0
  %v942 = vadd.f32 %v363, %v941
  %v943 = vpop.f32.mrf.mxu0
  %944 = vmatprep.mubr.f32.mxu0 %v245
  %945 = vmatmul.mubr.f32.gmra.mxu0 %v244
  %v946 = vpop.f32.mrf.mxu0
  %v947 = vadd.f32 %v363, %v946
  %v948 = vpop.f32.mrf.mxu0
  %949 = vmatprep.mubr.f32.mxu0 %v247
  %950 = vmatmul.mubr.f32.gmra.mxu0 %v246
  %v951 = vpop.f32.mrf.mxu0
  %v952 = vadd.f32 %v363, %v951
  %v953 = vpop.f32.mrf.mxu0
  %954 = vmatprep.mubr.f32.mxu0 %v249
  %955 = vmatmul.mubr.f32.gmra.mxu0 %v248
  %v956 = vpop.f32.mrf.mxu0
  %v957 = vadd.f32 %v363, %v956
  %v958 = vpop.f32.mrf.mxu0
  %959 = vmatprep.mubr.f32.mxu0 %v251
  %960 = vmatmul.mubr.f32.gmra.mxu0 %v250
  %v961 = vpop.f32.mrf.mxu0
  %v962 = vadd.f32 %v363, %v961
  %v963 = vpop.f32.mrf.mxu0
  %964 = vmatprep.mubr.f32.mxu0 %v253
  %965 = vmatmul.mubr.f32.gmra.mxu0 %v252
  %v966 = vpop.f32.mrf.mxu0
  %v967 = vadd.f32 %v363, %v966
  %v968 = vpop.f32.mrf.mxu0
  %969 = vmatprep.mubr.f32.mxu0 %v255
  %970 = vmatmul.mubr.f32.gmra.mxu0 %v254
  %v971 = vpop.f32.mrf.mxu0
  %v972 = vadd.f32 %v363, %v971
  %v973 = vpop.f32.mrf.mxu0
  %974 = vmatprep.mubr.f32.mxu0 %v257
  %975 = vmatmul.mubr.f32.gmra.mxu0 %v256
  %v976 = vpop.f32.mrf.mxu0
  %v977 = vadd.f32 %v363, %v976
  %v978 = vpop.f32.mrf.mxu0
  %979 = vmatprep.mubr.f32.mxu0 %v259
  %980 = vmatmul.mubr.f32.gmra.mxu0 %v258
  %v981 = vpop.f32.mrf.mxu0
  %v982 = vadd.f32 %v363, %v981
  %v983 = vpop.f32.mrf.mxu0
  %984 = vmatprep.mubr.f32.mxu0 %v261
  %985 = vmatmul.mubr.f32.gmra.mxu0 %v260
  %v986 = vpop.f32.mrf.mxu0
  %v987 = vadd.f32 %v363, %v986
  %v988 = vpop.f32.mrf.mxu0
  %989 = vmatprep.mubr.f32.mxu0 %v263
  %990 = vmatmul.mubr.f32.gmra.mxu0 %v262
  %v991 = vpop.f32.mrf.mxu0
  %v992 = vadd.f32 %v363, %v991
  %v993 = vpop.f32.mrf.mxu0
  %994 = vmatprep.mubr.f32.mxu0 %v265
  %995 = vmatmul.mubr.f32.gmra.mxu0 %v264
  %v996 = vpop.f32.mrf.mxu0
  %v997 = vadd.f32 %v363, %v996
  %v998 = vpop.f32.mrf.mxu0
  %999 = vmatprep.mubr.f32.mxu0 %v267
  %1000 = vmatmul.mubr.f32.gmra.mxu0 %v266
  %v1001 = vpop.f32.mrf.mxu0
  %v1002 = vadd.f32 %v363, %v1001
  %v1003 = vpop.f32.mrf.mxu0
  %1004 = vmatprep.mubr.f32.mxu0 %v269
  %1005 = vmatmul.mubr.f32.gmra.mxu0 %v268
  %v1006 = vpop.f32.mrf.mxu0
  %v1007 = vadd.f32 %v363, %v1006
  %v1008 = vpop.f32.mrf.mxu0
  %1009 = vmatprep.mubr.f32.mxu0 %v271
  %1010 = vmatmul.mubr.f32.gmra.mxu0 %v270
  %v1011 = vpop.f32.mrf.mxu0
  %v1012 = vadd.f32 %v363, %v1011
  %v1013 = vpop.f32.mrf.mxu0
  %1014 = vmatprep.mubr.f32.mxu0 %v273
  %1015 = vmatmul.mubr.f32.gmra.mxu0 %v272
  %v1016 = vpop.f32.mrf.mxu0
  %v1017 = vadd.f32 %v363, %v1016
  %v1018 = vpop.f32.mrf.mxu0
  %1019 = vmatprep.mubr.f32.mxu0 %v275
  %1020 = vmatmul.mubr.f32.gmra.mxu0 %v274
  %v1021 = vpop.f32.mrf.mxu0
  %v1022 = vadd.f32 %v363, %v1021
  %v1023 = vpop.f32.mrf.mxu0
  %1024 = vmatprep.mubr.f32.mxu0 %v277
  %1025 = vmatmul.mubr.f32.gmra.mxu0 %v276
  %v1026 = vpop.f32.mrf.mxu0
  %v1027 = vadd.f32 %v363, %v1026
  %v1028 = vpop.f32.mrf.mxu0
  %1029 = vmatprep.mubr.f32.mxu0 %v279
  %1030 = vmatmul.mubr.f32.gmra.mxu0 %v278
  %v1031 = vpop.f32.mrf.mxu0
  %v1032 = vadd.f32 %v363, %v1031
  %v1033 = vpop.f32.mrf.mxu0
  %1034 = vmatprep.mubr.f32.mxu0 %v281
  %1035 = vmatmul.mubr.f32.gmra.mxu0 %v280
  %v1036 = vpop.f32.mrf.mxu0
  %v1037 = vadd.f32 %v363, %v1036
  %v1038 = vpop.f32.mrf.mxu0
  %1039 = vmatprep.mubr.f32.mxu0 %v283
  %1040 = vmatmul.mubr.f32.gmra.mxu0 %v282
  %v1041 = vpop.f32.mrf.mxu0
  %v1042 = vadd.f32 %v363, %v1041
  %v1043 = vpop.f32.mrf.mxu0
  %1044 = vmatprep.mubr.f32.mxu0 %v285
  %1045 = vmatmul.mubr.f32.gmra.mxu0 %v284
  %v1046 = vpop.f32.mrf.mxu0
  %v1047 = vadd.f32 %v363, %v1046
  %v1048 = vpop.f32.mrf.mxu0
  %1049 = vmatprep.mubr.f32.mxu0 %v287
  %1050 = vmatmul.mubr.f32.gmra.mxu0 %v286
  %v1051 = vpop.f32.mrf.mxu0
  %v1052 = vadd.f32 %v363, %v1051
  %v1053 = vpop.f32.mrf.mxu0
  %1054 = vmatprep.mubr.f32.mxu0 %v289
  %1055 = vmatmul.mubr.f32.gmra.mxu0 %v288
  %v1056 = vpop.f32.mrf.mxu0
  %v1057 = vadd.f32 %v363, %v1056
  %v1058 = vpop.f32.mrf.mxu0
  %1059 = vmatprep.mubr.f32.mxu0 %v291
  %1060 = vmatmul.mubr.f32.gmra.mxu0 %v290
  %v1061 = vpop.f32.mrf.mxu0
  %v1062 = vadd.f32 %v363, %v1061
  %v1063 = vpop.f32.mrf.mxu0
  %1064 = vmatprep.mubr.f32.mxu0 %v293
  %1065 = vmatmul.mubr.f32.gmra.mxu0 %v292
  %v1066 = vpop.f32.mrf.mxu0
  %v1067 = vadd.f32 %v363, %v1066
  %v1068 = vpop.f32.mrf.mxu0
  %1069 = vmatprep.mubr.f32.mxu0 %v295
  %1070 = vmatmul.mubr.f32.gmra.mxu0 %v294
  %v1071 = vpop.f32.mrf.mxu0
  %v1072 = vadd.f32 %v363, %v1071
  %v1073 = vpop.f32.mrf.mxu0
  %1074 = vmatprep.mubr.f32.mxu0 %v297
  %1075 = vmatmul.mubr.f32.gmra.mxu0 %v296
  %v1076 = vpop.f32.mrf.mxu0
  %v1077 = vadd.f32 %v363, %v1076
  %v1078 = vpop.f32.mrf.mxu0
  %1079 = vmatprep.mubr.f32.mxu0 %v299
  %1080 = vmatmul.mubr.f32.gmra.mxu0 %v298
  %v1081 = vpop.f32.mrf.mxu0
  %v1082 = vadd.f32 %v363, %v1081
  %v1083 = vpop.f32.mrf.mxu0
  %1084 = vmatprep.mubr.f32.mxu0 %v301
  %1085 = vmatmul.mubr.f32.gmra.mxu0 %v300
  %v1086 = vpop.f32.mrf.mxu0
  %v1087 = vadd.f32 %v363, %v1086
  %v1088 = vpop.f32.mrf.mxu0
  %1089 = vmatprep.mubr.f32.mxu0 %v303
  %1090 = vmatmul.mubr.f32.gmra.mxu0 %v302
  %v1091 = vpop.f32.mrf.mxu0
  %v1092 = vadd.f32 %v363, %v1091
  %v1093 = vpop.f32.mrf.mxu0
  %1094 = vmatprep.mubr.f32.mxu0 %v305
  %1095 = vmatmul.mubr.f32.gmra.mxu0 %v304
  %v1096 = vpop.f32.mrf.mxu0
  %v1097 = vadd.f32 %v363, %v1096
  %v1098 = vpop.f32.mrf.mxu0
  %1099 = vmatprep.mubr.f32.mxu0 %v307
  %1100 = vmatmul.mubr.f32.gmra.mxu0 %v306
  %v1101 = vpop.f32.mrf.mxu0
  %v1102 = vadd.f32 %v363, %v1101
  %v1103 = vpop.f32.mrf.mxu0
  %1104 = vmatprep.mubr.f32.mxu0 %v309
  %1105 = vmatmul.mubr.f32.gmra.mxu0 %v308
  %v1106 = vpop.f32.mrf.mxu0
  %v1107 = vadd.f32 %v363, %v1106
  %v1108 = vpop.f32.mrf.mxu0
  %1109 = vmatprep.mubr.f32.mxu0 %v311
  %1110 = vmatmul.mubr.f32.gmra.mxu0 %v310
  %v1111 = vpop.f32.mrf.mxu0
  %v1112 = vadd.f32 %v363, %v1111
  %v1113 = vpop.f32.mrf.mxu0
  %1114 = vmatprep.mubr.f32.mxu0 %v313
  %1115 = vmatmul.mubr.f32.gmra.mxu0 %v312
  %v1116 = vpop.f32.mrf.mxu0
  %v1117 = vadd.f32 %v363, %v1116
  %v1118 = vpop.f32.mrf.mxu0
  %1119 = vmatprep.mubr.f32.mxu0 %v315
  %1120 = vmatmul.mubr.f32.gmra.mxu0 %v314
  %v1121 = vpop.f32.mrf.mxu0
  %v1122 = vadd.f32 %v363, %v1121
  %v1123 = vpop.f32.mrf.mxu0
  %1124 = vmatprep.mubr.f32.mxu0 %v317
  %1125 = vmatmul.mubr.f32.gmra.mxu0 %v316
  %v1126 = vpop.f32.mrf.mxu0
  %v1127 = vadd.f32 %v363, %v1126
  %v1128 = vpop.f32.mrf.mxu0
  %1129 = vmatprep.mubr.f32.mxu0 %v319
  %1130 = vmatmul.mubr.f32.gmra.mxu0 %v318
  %v1131 = vpop.f32.mrf.mxu0
  %v1132 = vadd.f32 %v363, %v1131
  %v1133 = vpop.f32.mrf.mxu0
  %1134 = vmatprep.mubr.f32.mxu0 %v321
  %1135 = vmatmul.mubr.f32.gmra.mxu0 %v320
  %v1136 = vpop.f32.mrf.mxu0
  %v1137 = vadd.f32 %v363, %v1136
  %v1138 = vpop.f32.mrf.mxu0
  %1139 = vmatprep.mubr.f32.mxu0 %v323
  %1140 = vmatmul.mubr.f32.gmra.mxu0 %v322
  %v1141 = vpop.f32.mrf.mxu0
  %v1142 = vadd.f32 %v363, %v1141
  %v1143 = vpop.f32.mrf.mxu0
  %1144 = vmatprep.mubr.f32.mxu0 %v325
  %1145 = vmatmul.mubr.f32.gmra.mxu0 %v324
  %v1146 = vpop.f32.mrf.mxu0
  %v1147 = vadd.f32 %v363, %v1146
  %v1148 = vpop.f32.mrf.mxu0
  %1149 = vdwg.mxu0
  %v1150 = vmax.f32 %v432, 0.0
  %v1151 = vmax.f32 %v437, 0.0
  %v1152 = vmax.f32 %v442, 0.0
  %v1153 = vmax.f32 %v447, 0.0
  %v1154 = vmax.f32 %v452, 0.0
  %v1155 = vmax.f32 %v457, 0.0
  %v1156 = vmax.f32 %v462, 0.0
  %v1157 = vmax.f32 %v467, 0.0
  %v1158 = vmax.f32 %v472, 0.0
  %v1159 = vmax.f32 %v477, 0.0
  %v1160 = vmax.f32 %v482, 0.0
  %v1161 = vmax.f32 %v487, 0.0
  %v1162 = vmax.f32 %v492, 0.0
  %v1163 = vmax.f32 %v497, 0.0
  %v1164 = vmax.f32 %v502, 0.0
  %v1165 = vmax.f32 %v507, 0.0
  %v1166 = vmax.f32 %v512, 0.0
  %v1167 = vmax.f32 %v517, 0.0
  %v1168 = vmax.f32 %v522, 0.0
  %v1169 = vmax.f32 %v527, 0.0
  %v1170 = vmax.f32 %v532, 0.0
  %v1171 = vmax.f32 %v537, 0.0
  %v1172 = vmax.f32 %v542, 0.0
  %v1173 = vmax.f32 %v547, 0.0
  %v1174 = vmax.f32 %v552, 0.0
  %v1175 = vmax.f32 %v557, 0.0
  %v1176 = vmax.f32 %v562, 0.0
  %v1177 = vmax.f32 %v567, 0.0
  %v1178 = vmax.f32 %v572, 0.0
  %v1179 = vmax.f32 %v577, 0.0
  %v1180 = vmax.f32 %v582, 0.0
  %v1181 = vmax.f32 %v587, 0.0
  %v1182 = vmax.f32 %v592, 0.0
  %v1183 = vmax.f32 %v597, 0.0
  %v1184 = vmax.f32 %v602, 0.0
  %v1185 = vmax.f32 %v607, 0.0
  %v1186 = vmax.f32 %v612, 0.0
  %v1187 = vmax.f32 %v617, 0.0
  %v1188 = vmax.f32 %v622, 0.0
  %v1189 = vmax.f32 %v627, 0.0
  %v1190 = vmax.f32 %v632, 0.0
  %v1191 = vmax.f32 %v637, 0.0
  %v1192 = vmax.f32 %v642, 0.0
  %v1193 = vmax.f32 %v647, 0.0
  %v1194 = vmax.f32 %v652, 0.0
  %v1195 = vmax.f32 %v657, 0.0
  %v1196 = vmax.f32 %v662, 0.0
  %v1197 = vmax.f32 %v667, 0.0
  %v1198 = vmax.f32 %v672, 0.0
  %v1199 = vmax.f32 %v677, 0.0
  %v1200 = vmax.f32 %v682, 0.0
  %v1201 = vmax.f32 %v687, 0.0
  %v1202 = vmax.f32 %v692, 0.0
  %v1203 = vmax.f32 %v697, 0.0
  %v1204 = vmax.f32 %v702, 0.0
  %v1205 = vmax.f32 %v707, 0.0
  %v1206 = vmax.f32 %v712, 0.0
  %v1207 = vmax.f32 %v717, 0.0
  %v1208 = vmax.f32 %v722, 0.0
  %v1209 = vmax.f32 %v727, 0.0
  %v1210 = vmax.f32 %v732, 0.0
  %v1211 = vmax.f32 %v737, 0.0
  %v1212 = vmax.f32 %v742, 0.0
  %v1213 = vmax.f32 %v747, 0.0
  %v1214 = vmax.f32 %v752, 0.0
  %v1215 = vmax.f32 %v757, 0.0
  %v1216 = vmax.f32 %v762, 0.0
  %v1217 = vmax.f32 %v767, 0.0
  %v1218 = vmax.f32 %v772, 0.0
  %v1219 = vmax.f32 %v777, 0.0
  %v1220 = vmax.f32 %v782, 0.0
  %v1221 = vmax.f32 %v787, 0.0
  %v1222 = vmax.f32 %v792, 0.0
  %v1223 = vmax.f32 %v797, 0.0
  %v1224 = vmax.f32 %v802, 0.0
  %v1225 = vmax.f32 %v807, 0.0
  %v1226 = vmax.f32 %v812, 0.0
  %v1227 = vmax.f32 %v817, 0.0
  %v1228 = vmax.f32 %v822, 0.0
  %v1229 = vmax.f32 %v827, 0.0
  %v1230 = vmax.f32 %v832, 0.0
  %v1231 = vmax.f32 %v837, 0.0
  %v1232 = vmax.f32 %v842, 0.0
  %v1233 = vmax.f32 %v847, 0.0
  %v1234 = vmax.f32 %v852, 0.0
  %v1235 = vmax.f32 %v857, 0.0
  %v1236 = vmax.f32 %v862, 0.0
  %v1237 = vmax.f32 %v867, 0.0
  %v1238 = vmax.f32 %v872, 0.0
  %v1239 = vmax.f32 %v877, 0.0
  %v1240 = vmax.f32 %v882, 0.0
  %v1241 = vmax.f32 %v887, 0.0
  %v1242 = vmax.f32 %v892, 0.0
  %v1243 = vmax.f32 %v897, 0.0
  %v1244 = vmax.f32 %v902, 0.0
  %v1245 = vmax.f32 %v907, 0.0
  %v1246 = vmax.f32 %v912, 0.0
  %v1247 = vmax.f32 %v917, 0.0
  %v1248 = vmax.f32 %v922, 0.0
  %v1249 = vmax.f32 %v927, 0.0
  %v1250 = vmax.f32 %v932, 0.0
  %v1251 = vmax.f32 %v937, 0.0
  %v1252 = vmax.f32 %v942, 0.0
  %v1253 = vmax.f32 %v947, 0.0
  %v1254 = vmax.f32 %v952, 0.0
  %v1255 = vmax.f32 %v957, 0.0
  %v1256 = vmax.f32 %v962, 0.0
  %v1257 = vmax.f32 %v967, 0.0
  %v1258 = vmax.f32 %v972, 0.0
  %v1259 = vmax.f32 %v977, 0.0
  %v1260 = vmax.f32 %v982, 0.0
  %v1261 = vmax.f32 %v987, 0.0
  %v1262 = vmax.f32 %v992, 0.0
  %v1263 = vmax.f32 %v997, 0.0
  %v1264 = vmax.f32 %v1002, 0.0
  %v1265 = vmax.f32 %v1007, 0.0
  %v1266 = vmax.f32 %v1012, 0.0
  %v1267 = vmax.f32 %v1017, 0.0
  %v1268 = vmax.f32 %v1022, 0.0
  %v1269 = vmax.f32 %v1027, 0.0
  %v1270 = vmax.f32 %v1032, 0.0
  %v1271 = vmax.f32 %v1037, 0.0
  %v1272 = vmax.f32 %v1042, 0.0
  %v1273 = vmax.f32 %v1047, 0.0
  %v1274 = vmax.f32 %v1052, 0.0
  %v1275 = vmax.f32 %v1057, 0.0
  %v1276 = vmax.f32 %v1062, 0.0
  %v1277 = vmax.f32 %v1067, 0.0
  %v1278 = vmax.f32 %v1072, 0.0
  %v1279 = vmax.f32 %v1077, 0.0
  %v1280 = vmax.f32 %v1082, 0.0
  %v1281 = vmax.f32 %v1087, 0.0
  %v1282 = vmax.f32 %v1092, 0.0
  %v1283 = vmax.f32 %v1097, 0.0
  %v1284 = vmax.f32 %v1102, 0.0
  %v1285 = vmax.f32 %v1107, 0.0
  %v1286 = vmax.f32 %v1112, 0.0
  %v1287 = vmax.f32 %v1117, 0.0
  %v1288 = vmax.f32 %v1122, 0.0
  %v1289 = vmax.f32 %v1127, 0.0
  %v1290 = vmax.f32 %v1132, 0.0
  %v1291 = vmax.f32 %v1137, 0.0
  %v1292 = vmax.f32 %v1142, 0.0
  %v1293 = vmax.f32 %v1147, 0.0
  %v1294 = vld [vmem:[%s3] sm:$0xff]
  %v1295 = vld [vmem:[%s3 + $0x8] sm:$0xff]
  %v1296 = vld [vmem:[%s3 + $0x10] sm:$0xff]
  %v1297 = vld [vmem:[%s3 + $0x18] sm:$0xff]
  %v1298 = vld [vmem:[%s3 + $0x20] sm:$0xff]
  %v1299 = vld [vmem:[%s3 + $0x28] sm:$0xff]
  %v1300 = vld [vmem:[%s3 + $0x30] sm:$0xff]
  %v1301 = vld [vmem:[%s3 + $0x38] sm:$0xff]
  %vm1302 = vcmask 261120
  %v1304 = vsel %vm1302, %v1159, 0
  %v1307 = vsel %vm1302, %v1160, 0
  %v1310 = vsel %vm1302, %v1161, 0
  %v1313 = vsel %vm1302, %v1162, 0
  %v1316 = vsel %vm1302, %v1163, 0
  %v1319 = vsel %vm1302, %v1164, 0
  %v1322 = vsel %vm1302, %v1165, 0
  %v1325 = vsel %vm1302, %v1166, 0
  %v1328 = vsel %vm1302, %v1167, 0
  %1330 = vmatprep.subr.mxu0 0.0
  %1331 = vmatpush1.msra.mxu0 0.0
  %1332 = vmatprep.subr.mxu0 0.0
  %1333 = vmatpush1.msra.mxu0 0.0
  %1334 = vmatprep.subr.mxu0 0.0
  %1335 = vmatpush1.msra.mxu0 0.0
  %1336 = vmatprep.subr.mxu0 0.0
  %1337 = vmatpush1.msra.mxu0 0.0
  %1338 = vmatprep.subr.mxu0 0.0
  %1339 = vmatpush1.msra.mxu0 0.0
  %1340 = vmatprep.subr.mxu0 0.0
  %1341 = vmatpush1.msra.mxu0 0.0
  %1342 = vmatprep.subr.mxu0 0.0
  %1343 = vmatpush1.msra.mxu0 0.0
  %1344 = vmatprep.subr.mxu0 0.0
  %1345 = vmatpush1.msra.mxu0 0.0
  %1346 = vmatprep.subr.mxu0 0.0
  %1347 = vmatpush1.msra.mxu0 0.0
  %1348 = vmatprep.subr.mxu0 0.0
  %1349 = vmatpush1.msra.mxu0 0.0
  %1350 = vmatprep.subr.mxu0 0.0
  %1351 = vmatpush1.msra.mxu0 0.0
  %1352 = vmatprep.subr.mxu0 0.0
  %1353 = vmatpush1.msra.mxu0 0.0
  %1354 = vmatprep.subr.mxu0 0.0
  %1355 = vmatpush1.msra.mxu0 %v1301
  %1356 = vmatprep.subr.mxu0 0.0
  %1357 = vmatpush1.msra.mxu0 %v1300
  %1358 = vmatprep.subr.mxu0 0.0
  %1359 = vmatpush1.msra.mxu0 %v1299
  %1360 = vmatprep.subr.mxu0 0.0
  %1361 = vmatpush1.msra.mxu0 %v1298
  %1362 = vmatprep.subr.mxu0 0.0
  %1363 = vmatpush2.msra.mxu0 0.0
  %1364 = vmatprep.subr.mxu0 0.0
  %1365 = vmatpush2.msra.mxu0 0.0
  %1366 = vmatprep.subr.mxu0 0.0
  %1367 = vmatpush2.msra.mxu0 0.0
  %1368 = vmatprep.subr.mxu0 0.0
  %1369 = vmatpush2.msra.mxu0 0.0
  %1370 = vmatprep.subr.mxu0 0.0
  %1371 = vmatpush2.msra.mxu0 0.0
  %1372 = vmatprep.subr.mxu0 0.0
  %1373 = vmatpush2.msra.mxu0 0.0
  %1374 = vmatprep.subr.mxu0 0.0
  %1375 = vmatpush2.msra.mxu0 0.0
  %1376 = vmatprep.subr.mxu0 0.0
  %1377 = vmatpush2.msra.mxu0 0.0
  %1378 = vmatprep.subr.mxu0 0.0
  %1379 = vmatpush2.msra.mxu0 0.0
  %1380 = vmatprep.subr.mxu0 0.0
  %1381 = vmatpush2.msra.mxu0 0.0
  %1382 = vmatprep.subr.mxu0 0.0
  %1383 = vmatpush2.msra.mxu0 0.0
  %1384 = vmatprep.subr.mxu0 0.0
  %1385 = vmatpush2.msra.mxu0 0.0
  %1386 = vmatprep.subr.mxu0 0.0
  %1387 = vmatpush2.msra.mxu0 0.0
  %1388 = vmatprep.subr.mxu0 0.0
  %1389 = vmatpush2.msra.mxu0 0.0
  %1390 = vmatprep.subr.mxu0 0.0
  %1391 = vmatpush2.msra.mxu0 0.0
  %1392 = vmatprep.subr.mxu0 0.0
  %1393 = vmatpush2.msra.mxu0 0.0
  %1394 = vmatprep.mubr.f32.mxu0 0.0
  %1395 = vmatmul.mubr.f32.gmra.mxu0 %v1304
  %v1396 = vpop.f32.mrf.mxu0
  %v1397 = vadd.f32 0.0, %v1396
  %v1398 = vpop.f32.mrf.mxu0
  %1399 = vmatprep.mubr.f32.mxu0 0.0
  %1400 = vmatmul.mubr.f32.gmra.mxu0 %v1307
  %v1401 = vpop.f32.mrf.mxu0
  %v1402 = vadd.f32 0.0, %v1401
  %v1403 = vpop.f32.mrf.mxu0
  %1404 = vmatprep.mubr.f32.mxu0 0.0
  %1405 = vmatmul.mubr.f32.gmra.mxu0 %v1310
  %v1406 = vpop.f32.mrf.mxu0
  %v1407 = vadd.f32 0.0, %v1406
  %v1408 = vpop.f32.mrf.mxu0
  %1409 = vmatprep.mubr.f32.mxu0 0.0
  %1410 = vmatmul.mubr.f32.gmra.mxu0 %v1313
  %v1411 = vpop.f32.mrf.mxu0
  %v1412 = vadd.f32 0.0, %v1411
  %v1413 = vpop.f32.mrf.mxu0
  %1414 = vmatprep.mubr.f32.mxu0 0.0
  %1415 = vmatmul.mubr.f32.gmra.mxu0 %v1316
  %v1416 = vpop.f32.mrf.mxu0
  %v1417 = vadd.f32 0.0, %v1416
  %v1418 = vpop.f32.mrf.mxu0
  %1419 = vmatprep.mubr.f32.mxu0 0.0
  %1420 = vmatmul.mubr.f32.gmra.mxu0 %v1319
  %v1421 = vpop.f32.mrf.mxu0
  %v1422 = vadd.f32 0.0, %v1421
  %v1423 = vpop.f32.mrf.mxu0
  %1424 = vmatprep.mubr.f32.mxu0 0.0
  %1425 = vmatmul.mubr.f32.gmra.mxu0 %v1322
  %v1426 = vpop.f32.mrf.mxu0
  %v1427 = vadd.f32 0.0, %v1426
  %v1428 = vpop.f32.mrf.mxu0
  %1429 = vmatprep.mubr.f32.mxu0 0.0
  %1430 = vmatmul.mubr.f32.gmra.mxu0 %v1325
  %v1431 = vpop.f32.mrf.mxu0
  %v1432 = vadd.f32 0.0, %v1431
  %v1433 = vpop.f32.mrf.mxu0
  %1434 = vmatprep.mubr.f32.mxu0 0.0
  %1435 = vmatmul.mubr.f32.gmra.mxu0 %v1328
  %v1436 = vpop.f32.mrf.mxu0
  %v1437 = vadd.f32 0.0, %v1436
  %v1438 = vpop.f32.mrf.mxu0
  %1439 = vdwg.mxu0
  %v1441 = vsel %vm1302, %v1150, 0
  %v1444 = vsel %vm1302, %v1151, 0
  %v1447 = vsel %vm1302, %v1152, 0
  %v1450 = vsel %vm1302, %v1153, 0
  %v1453 = vsel %vm1302, %v1154, 0
  %v1456 = vsel %vm1302, %v1155, 0
  %v1459 = vsel %vm1302, %v1156, 0
  %v1462 = vsel %vm1302, %v1157, 0
  %v1465 = vsel %vm1302, %v1158, 0
  %1467 = vmatprep.subr.mxu0 0.0
  %1468 = vmatpush1.msra.mxu0 0.0
  %1469 = vmatprep.subr.mxu0 0.0
  %1470 = vmatpush1.msra.mxu0 0.0
  %1471 = vmatprep.subr.mxu0 0.0
  %1472 = vmatpush1.msra.mxu0 0.0
  %1473 = vmatprep.subr.mxu0 0.0
  %1474 = vmatpush1.msra.mxu0 0.0
  %1475 = vmatprep.subr.mxu0 0.0
  %1476 = vmatpush1.msra.mxu0 0.0
  %1477 = vmatprep.subr.mxu0 0.0
  %1478 = vmatpush1.msra.mxu0 0.0
  %1479 = vmatprep.subr.mxu0 0.0
  %1480 = vmatpush1.msra.mxu0 0.0
  %1481 = vmatprep.subr.mxu0 0.0
  %1482 = vmatpush1.msra.mxu0 0.0
  %1483 = vmatprep.subr.mxu0 0.0
  %1484 = vmatpush1.msra.mxu0 0.0
  %1485 = vmatprep.subr.mxu0 0.0
  %1486 = vmatpush1.msra.mxu0 0.0
  %1487 = vmatprep.subr.mxu0 0.0
  %1488 = vmatpush1.msra.mxu0 0.0
  %1489 = vmatprep.subr.mxu0 0.0
  %1490 = vmatpush1.msra.mxu0 0.0
  %1491 = vmatprep.subr.mxu0 0.0
  %1492 = vmatpush1.msra.mxu0 %v1297
  %1493 = vmatprep.subr.mxu0 0.0
  %1494 = vmatpush1.msra.mxu0 %v1296
  %1495 = vmatprep.subr.mxu0 0.0
  %1496 = vmatpush1.msra.mxu0 %v1295
  %1497 = vmatprep.subr.mxu0 0.0
  %1498 = vmatpush1.msra.mxu0 %v1294
  %1499 = vmatprep.subr.mxu0 0.0
  %1500 = vmatpush2.msra.mxu0 0.0
  %1501 = vmatprep.subr.mxu0 0.0
  %1502 = vmatpush2.msra.mxu0 0.0
  %1503 = vmatprep.subr.mxu0 0.0
  %1504 = vmatpush2.msra.mxu0 0.0
  %1505 = vmatprep.subr.mxu0 0.0
  %1506 = vmatpush2.msra.mxu0 0.0
  %1507 = vmatprep.subr.mxu0 0.0
  %1508 = vmatpush2.msra.mxu0 0.0
  %1509 = vmatprep.subr.mxu0 0.0
  %1510 = vmatpush2.msra.mxu0 0.0
  %1511 = vmatprep.subr.mxu0 0.0
  %1512 = vmatpush2.msra.mxu0 0.0
  %1513 = vmatprep.subr.mxu0 0.0
  %1514 = vmatpush2.msra.mxu0 0.0
  %1515 = vmatprep.subr.mxu0 0.0
  %1516 = vmatpush2.msra.mxu0 0.0
  %1517 = vmatprep.subr.mxu0 0.0
  %1518 = vmatpush2.msra.mxu0 0.0
  %1519 = vmatprep.subr.mxu0 0.0
  %1520 = vmatpush2.msra.mxu0 0.0
  %1521 = vmatprep.subr.mxu0 0.0
  %1522 = vmatpush2.msra.mxu0 0.0
  %1523 = vmatprep.subr.mxu0 0.0
  %1524 = vmatpush2.msra.mxu0 0.0
  %1525 = vmatprep.subr.mxu0 0.0
  %1526 = vmatpush2.msra.mxu0 0.0
  %1527 = vmatprep.subr.mxu0 0.0
  %1528 = vmatpush2.msra.mxu0 0.0
  %1529 = vmatprep.subr.mxu0 0.0
  %1530 = vmatpush2.msra.mxu0 0.0
  %1531 = vmatprep.mubr.f32.mxu0 0.0
  %1532 = vmatmul.mubr.f32.gmra.mxu0 %v1441
  %v1533 = vpop.f32.mrf.mxu0
  %v1534 = vadd.f32 %v1397, %v1533
  %v1535 = vpop.f32.mrf.mxu0
  %1536 = vmatprep.mubr.f32.mxu0 0.0
  %1537 = vmatmul.mubr.f32.gmra.mxu0 %v1444
  %v1538 = vpop.f32.mrf.mxu0
  %v1539 = vadd.f32 %v1402, %v1538
  %v1540 = vpop.f32.mrf.mxu0
  %1541 = vmatprep.mubr.f32.mxu0 0.0
  %1542 = vmatmul.mubr.f32.gmra.mxu0 %v1447
  %v1543 = vpop.f32.mrf.mxu0
  %v1544 = vadd.f32 %v1407, %v1543
  %v1545 = vpop.f32.mrf.mxu0
  %1546 = vmatprep.mubr.f32.mxu0 0.0
  %1547 = vmatmul.mubr.f32.gmra.mxu0 %v1450
  %v1548 = vpop.f32.mrf.mxu0
  %v1549 = vadd.f32 %v1412, %v1548
  %v1550 = vpop.f32.mrf.mxu0
  %1551 = vmatprep.mubr.f32.mxu0 0.0
  %1552 = vmatmul.mubr.f32.gmra.mxu0 %v1453
  %v1553 = vpop.f32.mrf.mxu0
  %v1554 = vadd.f32 %v1417, %v1553
  %v1555 = vpop.f32.mrf.mxu0
  %1556 = vmatprep.mubr.f32.mxu0 0.0
  %1557 = vmatmul.mubr.f32.gmra.mxu0 %v1456
  %v1558 = vpop.f32.mrf.mxu0
  %v1559 = vadd.f32 %v1422, %v1558
  %v1560 = vpop.f32.mrf.mxu0
  %1561 = vmatprep.mubr.f32.mxu0 0.0
  %1562 = vmatmul.mubr.f32.gmra.mxu0 %v1459
  %v1563 = vpop.f32.mrf.mxu0
  %v1564 = vadd.f32 %v1427, %v1563
  %v1565 = vpop.f32.mrf.mxu0
  %1566 = vmatprep.mubr.f32.mxu0 0.0
  %1567 = vmatmul.mubr.f32.gmra.mxu0 %v1462
  %v1568 = vpop.f32.mrf.mxu0
  %v1569 = vadd.f32 %v1432, %v1568
  %v1570 = vpop.f32.mrf.mxu0
  %1571 = vmatprep.mubr.f32.mxu0 0.0
  %1572 = vmatmul.mubr.f32.gmra.mxu0 %v1465
  %v1573 = vpop.f32.mrf.mxu0
  %v1574 = vadd.f32 %v1437, %v1573
  %v1575 = vpop.f32.mrf.mxu0
  %1576 = vdwg.mxu0
  %v1577 = vld [vmem:[%s3 + $0x40] sm:$0xff]
  %v1578 = vld [vmem:[%s3 + $0x48] sm:$0xff]
  %v1579 = vld [vmem:[%s3 + $0x50] sm:$0xff]
  %v1580 = vld [vmem:[%s3 + $0x58] sm:$0xff]
  %v1582 = vsel %vm1302, %v1168, 0
  %v1585 = vsel %vm1302, %v1169, 0
  %v1588 = vsel %vm1302, %v1170, 0
  %v1591 = vsel %vm1302, %v1171, 0
  %v1594 = vsel %vm1302, %v1172, 0
  %v1597 = vsel %vm1302, %v1173, 0
  %v1600 = vsel %vm1302, %v1174, 0
  %v1603 = vsel %vm1302, %v1175, 0
  %v1606 = vsel %vm1302, %v1176, 0
  %1608 = vmatprep.subr.mxu0 0.0
  %1609 = vmatpush1.msra.mxu0 0.0
  %1610 = vmatprep.subr.mxu0 0.0
  %1611 = vmatpush1.msra.mxu0 0.0
  %1612 = vmatprep.subr.mxu0 0.0
  %1613 = vmatpush1.msra.mxu0 0.0
  %1614 = vmatprep.subr.mxu0 0.0
  %1615 = vmatpush1.msra.mxu0 0.0
  %1616 = vmatprep.subr.mxu0 0.0
  %1617 = vmatpush1.msra.mxu0 0.0
  %1618 = vmatprep.subr.mxu0 0.0
  %1619 = vmatpush1.msra.mxu0 0.0
  %1620 = vmatprep.subr.mxu0 0.0
  %1621 = vmatpush1.msra.mxu0 0.0
  %1622 = vmatprep.subr.mxu0 0.0
  %1623 = vmatpush1.msra.mxu0 0.0
  %1624 = vmatprep.subr.mxu0 0.0
  %1625 = vmatpush1.msra.mxu0 0.0
  %1626 = vmatprep.subr.mxu0 0.0
  %1627 = vmatpush1.msra.mxu0 0.0
  %1628 = vmatprep.subr.mxu0 0.0
  %1629 = vmatpush1.msra.mxu0 0.0
  %1630 = vmatprep.subr.mxu0 0.0
  %1631 = vmatpush1.msra.mxu0 0.0
  %1632 = vmatprep.subr.mxu0 0.0
  %1633 = vmatpush1.msra.mxu0 %v1580
  %1634 = vmatprep.subr.mxu0 0.0
  %1635 = vmatpush1.msra.mxu0 %v1579
  %1636 = vmatprep.subr.mxu0 0.0
  %1637 = vmatpush1.msra.mxu0 %v1578
  %1638 = vmatprep.subr.mxu0 0.0
  %1639 = vmatpush1.msra.mxu0 %v1577
  %1640 = vmatprep.subr.mxu0 0.0
  %1641 = vmatpush2.msra.mxu0 0.0
  %1642 = vmatprep.subr.mxu0 0.0
  %1643 = vmatpush2.msra.mxu0 0.0
  %1644 = vmatprep.subr.mxu0 0.0
  %1645 = vmatpush2.msra.mxu0 0.0
  %1646 = vmatprep.subr.mxu0 0.0
  %1647 = vmatpush2.msra.mxu0 0.0
  %1648 = vmatprep.subr.mxu0 0.0
  %1649 = vmatpush2.msra.mxu0 0.0
  %1650 = vmatprep.subr.mxu0 0.0
  %1651 = vmatpush2.msra.mxu0 0.0
  %1652 = vmatprep.subr.mxu0 0.0
  %1653 = vmatpush2.msra.mxu0 0.0
  %1654 = vmatprep.subr.mxu0 0.0
  %1655 = vmatpush2.msra.mxu0 0.0
  %1656 = vmatprep.subr.mxu0 0.0
  %1657 = vmatpush2.msra.mxu0 0.0
  %1658 = vmatprep.subr.mxu0 0.0
  %1659 = vmatpush2.msra.mxu0 0.0
  %1660 = vmatprep.subr.mxu0 0.0
  %1661 = vmatpush2.msra.mxu0 0.0
  %1662 = vmatprep.subr.mxu0 0.0
  %1663 = vmatpush2.msra.mxu0 0.0
  %1664 = vmatprep.subr.mxu0 0.0
  %1665 = vmatpush2.msra.mxu0 0.0
  %1666 = vmatprep.subr.mxu0 0.0
  %1667 = vmatpush2.msra.mxu0 0.0
  %1668 = vmatprep.subr.mxu0 0.0
  %1669 = vmatpush2.msra.mxu0 0.0
  %1670 = vmatprep.subr.mxu0 0.0
  %1671 = vmatpush2.msra.mxu0 0.0
  %1672 = vmatprep.mubr.f32.mxu0 0.0
  %1673 = vmatmul.mubr.f32.gmra.mxu0 %v1582
  %v1674 = vpop.f32.mrf.mxu0
  %v1675 = vadd.f32 0.0, %v1674
  %v1676 = vpop.f32.mrf.mxu0
  %1677 = vmatprep.mubr.f32.mxu0 0.0
  %1678 = vmatmul.mubr.f32.gmra.mxu0 %v1585
  %v1679 = vpop.f32.mrf.mxu0
  %v1680 = vadd.f32 0.0, %v1679
  %v1681 = vpop.f32.mrf.mxu0
  %1682 = vmatprep.mubr.f32.mxu0 0.0
  %1683 = vmatmul.mubr.f32.gmra.mxu0 %v1588
  %v1684 = vpop.f32.mrf.mxu0
  %v1685 = vadd.f32 0.0, %v1684
  %v1686 = vpop.f32.mrf.mxu0
  %1687 = vmatprep.mubr.f32.mxu0 0.0
  %1688 = vmatmul.mubr.f32.gmra.mxu0 %v1591
  %v1689 = vpop.f32.mrf.mxu0
  %v1690 = vadd.f32 0.0, %v1689
  %v1691 = vpop.f32.mrf.mxu0
  %1692 = vmatprep.mubr.f32.mxu0 0.0
  %1693 = vmatmul.mubr.f32.gmra.mxu0 %v1594
  %v1694 = vpop.f32.mrf.mxu0
  %v1695 = vadd.f32 0.0, %v1694
  %v1696 = vpop.f32.mrf.mxu0
  %1697 = vmatprep.mubr.f32.mxu0 0.0
  %1698 = vmatmul.mubr.f32.gmra.mxu0 %v1597
  %v1699 = vpop.f32.mrf.mxu0
  %v1700 = vadd.f32 0.0, %v1699
  %v1701 = vpop.f32.mrf.mxu0
  %1702 = vmatprep.mubr.f32.mxu0 0.0
  %1703 = vmatmul.mubr.f32.gmra.mxu0 %v1600
  %v1704 = vpop.f32.mrf.mxu0
  %v1705 = vadd.f32 0.0, %v1704
  %v1706 = vpop.f32.mrf.mxu0
  %1707 = vmatprep.mubr.f32.mxu0 0.0
  %1708 = vmatmul.mubr.f32.gmra.mxu0 %v1603
  %v1709 = vpop.f32.mrf.mxu0
  %v1710 = vadd.f32 0.0, %v1709
  %v1711 = vpop.f32.mrf.mxu0
  %1712 = vmatprep.mubr.f32.mxu0 0.0
  %1713 = vmatmul.mubr.f32.gmra.mxu0 %v1606
  %v1714 = vpop.f32.mrf.mxu0
  %v1715 = vadd.f32 0.0, %v1714
  %v1716 = vpop.f32.mrf.mxu0
  %1717 = vdwg.mxu0
  %v1718 = vadd.f32 %v1534, %v1675
  %v1719 = vadd.f32 %v1539, %v1680
  %v1720 = vadd.f32 %v1544, %v1685
  %v1721 = vadd.f32 %v1549, %v1690
  %v1722 = vadd.f32 %v1554, %v1695
  %v1723 = vadd.f32 %v1559, %v1700
  %v1724 = vadd.f32 %v1564, %v1705
  %v1725 = vadd.f32 %v1569, %v1710
  %v1726 = vadd.f32 %v1574, %v1715
  %v1727 = vld [vmem:[%s3 + $0x60] sm:$0xff]
  %v1728 = vld [vmem:[%s3 + $0x68] sm:$0xff]
  %v1729 = vld [vmem:[%s3 + $0x70] sm:$0xff]
  %v1730 = vld [vmem:[%s3 + $0x78] sm:$0xff]
  %v1732 = vsel %vm1302, %v1177, 0
  %v1735 = vsel %vm1302, %v1178, 0
  %v1738 = vsel %vm1302, %v1179, 0
  %v1741 = vsel %vm1302, %v1180, 0
  %v1744 = vsel %vm1302, %v1181, 0
  %v1747 = vsel %vm1302, %v1182, 0
  %v1750 = vsel %vm1302, %v1183, 0
  %v1753 = vsel %vm1302, %v1184, 0
  %v1756 = vsel %vm1302, %v1185, 0
  %1758 = vmatprep.subr.mxu0 0.0
  %1759 = vmatpush1.msra.mxu0 0.0
  %1760 = vmatprep.subr.mxu0 0.0
  %1761 = vmatpush1.msra.mxu0 0.0
  %1762 = vmatprep.subr.mxu0 0.0
  %1763 = vmatpush1.msra.mxu0 0.0
  %1764 = vmatprep.subr.mxu0 0.0
  %1765 = vmatpush1.msra.mxu0 0.0
  %1766 = vmatprep.subr.mxu0 0.0
  %1767 = vmatpush1.msra.mxu0 0.0
  %1768 = vmatprep.subr.mxu0 0.0
  %1769 = vmatpush1.msra.mxu0 0.0
  %1770 = vmatprep.subr.mxu0 0.0
  %1771 = vmatpush1.msra.mxu0 0.0
  %1772 = vmatprep.subr.mxu0 0.0
  %1773 = vmatpush1.msra.mxu0 0.0
  %1774 = vmatprep.subr.mxu0 0.0
  %1775 = vmatpush1.msra.mxu0 0.0
  %1776 = vmatprep.subr.mxu0 0.0
  %1777 = vmatpush1.msra.mxu0 0.0
  %1778 = vmatprep.subr.mxu0 0.0
  %1779 = vmatpush1.msra.mxu0 0.0
  %1780 = vmatprep.subr.mxu0 0.0
  %1781 = vmatpush1.msra.mxu0 0.0
  %1782 = vmatprep.subr.mxu0 0.0
  %1783 = vmatpush1.msra.mxu0 %v1730
  %1784 = vmatprep.subr.mxu0 0.0
  %1785 = vmatpush1.msra.mxu0 %v1729
  %1786 = vmatprep.subr.mxu0 0.0
  %1787 = vmatpush1.msra.mxu0 %v1728
  %1788 = vmatprep.subr.mxu0 0.0
  %1789 = vmatpush1.msra.mxu0 %v1727
  %1790 = vmatprep.subr.mxu0 0.0
  %1791 = vmatpush2.msra.mxu0 0.0
  %1792 = vmatprep.subr.mxu0 0.0
  %1793 = vmatpush2.msra.mxu0 0.0
  %1794 = vmatprep.subr.mxu0 0.0
  %1795 = vmatpush2.msra.mxu0 0.0
  %1796 = vmatprep.subr.mxu0 0.0
  %1797 = vmatpush2.msra.mxu0 0.0
  %1798 = vmatprep.subr.mxu0 0.0
  %1799 = vmatpush2.msra.mxu0 0.0
  %1800 = vmatprep.subr.mxu0 0.0
  %1801 = vmatpush2.msra.mxu0 0.0
  %1802 = vmatprep.subr.mxu0 0.0
  %1803 = vmatpush2.msra.mxu0 0.0
  %1804 = vmatprep.subr.mxu0 0.0
  %1805 = vmatpush2.msra.mxu0 0.0
  %1806 = vmatprep.subr.mxu0 0.0
  %1807 = vmatpush2.msra.mxu0 0.0
  %1808 = vmatprep.subr.mxu0 0.0
  %1809 = vmatpush2.msra.mxu0 0.0
  %1810 = vmatprep.subr.mxu0 0.0
  %1811 = vmatpush2.msra.mxu0 0.0
  %1812 = vmatprep.subr.mxu0 0.0
  %1813 = vmatpush2.msra.mxu0 0.0
  %1814 = vmatprep.subr.mxu0 0.0
  %1815 = vmatpush2.msra.mxu0 0.0
  %1816 = vmatprep.subr.mxu0 0.0
  %1817 = vmatpush2.msra.mxu0 0.0
  %1818 = vmatprep.subr.mxu0 0.0
  %1819 = vmatpush2.msra.mxu0 0.0
  %1820 = vmatprep.subr.mxu0 0.0
  %1821 = vmatpush2.msra.mxu0 0.0
  %1822 = vmatprep.mubr.f32.mxu0 0.0
  %1823 = vmatmul.mubr.f32.gmra.mxu0 %v1732
  %v1824 = vpop.f32.mrf.mxu0
  %v1825 = vadd.f32 0.0, %v1824
  %v1826 = vpop.f32.mrf.mxu0
  %1827 = vmatprep.mubr.f32.mxu0 0.0
  %1828 = vmatmul.mubr.f32.gmra.mxu0 %v1735
  %v1829 = vpop.f32.mrf.mxu0
  %v1830 = vadd.f32 0.0, %v1829
  %v1831 = vpop.f32.mrf.mxu0
  %1832 = vmatprep.mubr.f32.mxu0 0.0
  %1833 = vmatmul.mubr.f32.gmra.mxu0 %v1738
  %v1834 = vpop.f32.mrf.mxu0
  %v1835 = vadd.f32 0.0, %v1834
  %v1836 = vpop.f32.mrf.mxu0
  %1837 = vmatprep.mubr.f32.mxu0 0.0
  %1838 = vmatmul.mubr.f32.gmra.mxu0 %v1741
  %v1839 = vpop.f32.mrf.mxu0
  %v1840 = vadd.f32 0.0, %v1839
  %v1841 = vpop.f32.mrf.mxu0
  %1842 = vmatprep.mubr.f32.mxu0 0.0
  %1843 = vmatmul.mubr.f32.gmra.mxu0 %v1744
  %v1844 = vpop.f32.mrf.mxu0
  %v1845 = vadd.f32 0.0, %v1844
  %v1846 = vpop.f32.mrf.mxu0
  %1847 = vmatprep.mubr.f32.mxu0 0.0
  %1848 = vmatmul.mubr.f32.gmra.mxu0 %v1747
  %v1849 = vpop.f32.mrf.mxu0
  %v1850 = vadd.f32 0.0, %v1849
  %v1851 = vpop.f32.mrf.mxu0
  %1852 = vmatprep.mubr.f32.mxu0 0.0
  %1853 = vmatmul.mubr.f32.gmra.mxu0 %v1750
  %v1854 = vpop.f32.mrf.mxu0
  %v1855 = vadd.f32 0.0, %v1854
  %v1856 = vpop.f32.mrf.mxu0
  %1857 = vmatprep.mubr.f32.mxu0 0.0
  %1858 = vmatmul.mubr.f32.gmra.mxu0 %v1753
  %v1859 = vpop.f32.mrf.mxu0
  %v1860 = vadd.f32 0.0, %v1859
  %v1861 = vpop.f32.mrf.mxu0
  %1862 = vmatprep.mubr.f32.mxu0 0.0
  %1863 = vmatmul.mubr.f32.gmra.mxu0 %v1756
  %v1864 = vpop.f32.mrf.mxu0
  %v1865 = vadd.f32 0.0, %v1864
  %v1866 = vpop.f32.mrf.mxu0
  %1867 = vdwg.mxu0
  %v1868 = vadd.f32 %v1718, %v1825
  %v1869 = vadd.f32 %v1719, %v1830
  %v1870 = vadd.f32 %v1720, %v1835
  %v1871 = vadd.f32 %v1721, %v1840
  %v1872 = vadd.f32 %v1722, %v1845
  %v1873 = vadd.f32 %v1723, %v1850
  %v1874 = vadd.f32 %v1724, %v1855
  %v1875 = vadd.f32 %v1725, %v1860
  %v1876 = vadd.f32 %v1726, %v1865
  %v1877 = vld [vmem:[%s3 + $0x80] sm:$0xff]
  %v1878 = vld [vmem:[%s3 + $0x88] sm:$0xff]
  %v1879 = vld [vmem:[%s3 + $0x90] sm:$0xff]
  %v1880 = vld [vmem:[%s3 + $0x98] sm:$0xff]
  %v1882 = vsel %vm1302, %v1186, 0
  %v1885 = vsel %vm1302, %v1187, 0
  %v1888 = vsel %vm1302, %v1188, 0
  %v1891 = vsel %vm1302, %v1189, 0
  %v1894 = vsel %vm1302, %v1190, 0
  %v1897 = vsel %vm1302, %v1191, 0
  %v1900 = vsel %vm1302, %v1192, 0
  %v1903 = vsel %vm1302, %v1193, 0
  %v1906 = vsel %vm1302, %v1194, 0
  %1908 = vmatprep.subr.mxu0 0.0
  %1909 = vmatpush1.msra.mxu0 0.0
  %1910 = vmatprep.subr.mxu0 0.0
  %1911 = vmatpush1.msra.mxu0 0.0
  %1912 = vmatprep.subr.mxu0 0.0
  %1913 = vmatpush1.msra.mxu0 0.0
  %1914 = vmatprep.subr.mxu0 0.0
  %1915 = vmatpush1.msra.mxu0 0.0
  %1916 = vmatprep.subr.mxu0 0.0
  %1917 = vmatpush1.msra.mxu0 0.0
  %1918 = vmatprep.subr.mxu0 0.0
  %1919 = vmatpush1.msra.mxu0 0.0
  %1920 = vmatprep.subr.mxu0 0.0
  %1921 = vmatpush1.msra.mxu0 0.0
  %1922 = vmatprep.subr.mxu0 0.0
  %1923 = vmatpush1.msra.mxu0 0.0
  %1924 = vmatprep.subr.mxu0 0.0
  %1925 = vmatpush1.msra.mxu0 0.0
  %1926 = vmatprep.subr.mxu0 0.0
  %1927 = vmatpush1.msra.mxu0 0.0
  %1928 = vmatprep.subr.mxu0 0.0
  %1929 = vmatpush1.msra.mxu0 0.0
  %1930 = vmatprep.subr.mxu0 0.0
  %1931 = vmatpush1.msra.mxu0 0.0
  %1932 = vmatprep.subr.mxu0 0.0
  %1933 = vmatpush1.msra.mxu0 %v1880
  %1934 = vmatprep.subr.mxu0 0.0
  %1935 = vmatpush1.msra.mxu0 %v1879
  %1936 = vmatprep.subr.mxu0 0.0
  %1937 = vmatpush1.msra.mxu0 %v1878
  %1938 = vmatprep.subr.mxu0 0.0
  %1939 = vmatpush1.msra.mxu0 %v1877
  %1940 = vmatprep.subr.mxu0 0.0
  %1941 = vmatpush2.msra.mxu0 0.0
  %1942 = vmatprep.subr.mxu0 0.0
  %1943 = vmatpush2.msra.mxu0 0.0
  %1944 = vmatprep.subr.mxu0 0.0
  %1945 = vmatpush2.msra.mxu0 0.0
  %1946 = vmatprep.subr.mxu0 0.0
  %1947 = vmatpush2.msra.mxu0 0.0
  %1948 = vmatprep.subr.mxu0 0.0
  %1949 = vmatpush2.msra.mxu0 0.0
  %1950 = vmatprep.subr.mxu0 0.0
  %1951 = vmatpush2.msra.mxu0 0.0
  %1952 = vmatprep.subr.mxu0 0.0
  %1953 = vmatpush2.msra.mxu0 0.0
  %1954 = vmatprep.subr.mxu0 0.0
  %1955 = vmatpush2.msra.mxu0 0.0
  %1956 = vmatprep.subr.mxu0 0.0
  %1957 = vmatpush2.msra.mxu0 0.0
  %1958 = vmatprep.subr.mxu0 0.0
  %1959 = vmatpush2.msra.mxu0 0.0
  %1960 = vmatprep.subr.mxu0 0.0
  %1961 = vmatpush2.msra.mxu0 0.0
  %1962 = vmatprep.subr.mxu0 0.0
  %1963 = vmatpush2.msra.mxu0 0.0
  %1964 = vmatprep.subr.mxu0 0.0
  %1965 = vmatpush2.msra.mxu0 0.0
  %1966 = vmatprep.subr.mxu0 0.0
  %1967 = vmatpush2.msra.mxu0 0.0
  %1968 = vmatprep.subr.mxu0 0.0
  %1969 = vmatpush2.msra.mxu0 0.0
  %1970 = vmatprep.subr.mxu0 0.0
  %1971 = vmatpush2.msra.mxu0 0.0
  %1972 = vmatprep.mubr.f32.mxu0 0.0
  %1973 = vmatmul.mubr.f32.gmra.mxu0 %v1882
  %v1974 = vpop.f32.mrf.mxu0
  %v1975 = vadd.f32 0.0, %v1974
  %v1976 = vpop.f32.mrf.mxu0
  %1977 = vmatprep.mubr.f32.mxu0 0.0
  %1978 = vmatmul.mubr.f32.gmra.mxu0 %v1885
  %v1979 = vpop.f32.mrf.mxu0
  %v1980 = vadd.f32 0.0, %v1979
  %v1981 = vpop.f32.mrf.mxu0
  %1982 = vmatprep.mubr.f32.mxu0 0.0
  %1983 = vmatmul.mubr.f32.gmra.mxu0 %v1888
  %v1984 = vpop.f32.mrf.mxu0
  %v1985 = vadd.f32 0.0, %v1984
  %v1986 = vpop.f32.mrf.mxu0
  %1987 = vmatprep.mubr.f32.mxu0 0.0
  %1988 = vmatmul.mubr.f32.gmra.mxu0 %v1891
  %v1989 = vpop.f32.mrf.mxu0
  %v1990 = vadd.f32 0.0, %v1989
  %v1991 = vpop.f32.mrf.mxu0
  %1992 = vmatprep.mubr.f32.mxu0 0.0
  %1993 = vmatmul.mubr.f32.gmra.mxu0 %v1894
  %v1994 = vpop.f32.mrf.mxu0
  %v1995 = vadd.f32 0.0, %v1994
  %v1996 = vpop.f32.mrf.mxu0
  %1997 = vmatprep.mubr.f32.mxu0 0.0
  %1998 = vmatmul.mubr.f32.gmra.mxu0 %v1897
  %v1999 = vpop.f32.mrf.mxu0
  %v2000 = vadd.f32 0.0, %v1999
  %v2001 = vpop.f32.mrf.mxu0
  %2002 = vmatprep.mubr.f32.mxu0 0.0
  %2003 = vmatmul.mubr.f32.gmra.mxu0 %v1900
  %v2004 = vpop.f32.mrf.mxu0
  %v2005 = vadd.f32 0.0, %v2004
  %v2006 = vpop.f32.mrf.mxu0
  %2007 = vmatprep.mubr.f32.mxu0 0.0
  %2008 = vmatmul.mubr.f32.gmra.mxu0 %v1903
  %v2009 = vpop.f32.mrf.mxu0
  %v2010 = vadd.f32 0.0, %v2009
  %v2011 = vpop.f32.mrf.mxu0
  %2012 = vmatprep.mubr.f32.mxu0 0.0
  %2013 = vmatmul.mubr.f32.gmra.mxu0 %v1906
  %v2014 = vpop.f32.mrf.mxu0
  %v2015 = vadd.f32 0.0, %v2014
  %v2016 = vpop.f32.mrf.mxu0
  %2017 = vdwg.mxu0
  %v2018 = vadd.f32 %v1868, %v1975
  %v2019 = vadd.f32 %v1869, %v1980
  %v2020 = vadd.f32 %v1870, %v1985
  %v2021 = vadd.f32 %v1871, %v1990
  %v2022 = vadd.f32 %v1872, %v1995
  %v2023 = vadd.f32 %v1873, %v2000
  %v2024 = vadd.f32 %v1874, %v2005
  %v2025 = vadd.f32 %v1875, %v2010
  %v2026 = vadd.f32 %v1876, %v2015
  %v2027 = vld [vmem:[%s3 + $0xa0] sm:$0xff]
  %v2028 = vld [vmem:[%s3 + $0xa8] sm:$0xff]
  %v2029 = vld [vmem:[%s3 + $0xb0] sm:$0xff]
  %v2030 = vld [vmem:[%s3 + $0xb8] sm:$0xff]
  %v2032 = vsel %vm1302, %v1195, 0
  %v2035 = vsel %vm1302, %v1196, 0
  %v2038 = vsel %vm1302, %v1197, 0
  %v2041 = vsel %vm1302, %v1198, 0
  %v2044 = vsel %vm1302, %v1199, 0
  %v2047 = vsel %vm1302, %v1200, 0
  %v2050 = vsel %vm1302, %v1201, 0
  %v2053 = vsel %vm1302, %v1202, 0
  %v2056 = vsel %vm1302, %v1203, 0
  %2058 = vmatprep.subr.mxu0 0.0
  %2059 = vmatpush1.msra.mxu0 0.0
  %2060 = vmatprep.subr.mxu0 0.0
  %2061 = vmatpush1.msra.mxu0 0.0
  %2062 = vmatprep.subr.mxu0 0.0
  %2063 = vmatpush1.msra.mxu0 0.0
  %2064 = vmatprep.subr.mxu0 0.0
  %2065 = vmatpush1.msra.mxu0 0.0
  %2066 = vmatprep.subr.mxu0 0.0
  %2067 = vmatpush1.msra.mxu0 0.0
  %2068 = vmatprep.subr.mxu0 0.0
  %2069 = vmatpush1.msra.mxu0 0.0
  %2070 = vmatprep.subr.mxu0 0.0
  %2071 = vmatpush1.msra.mxu0 0.0
  %2072 = vmatprep.subr.mxu0 0.0
  %2073 = vmatpush1.msra.mxu0 0.0
  %2074 = vmatprep.subr.mxu0 0.0
  %2075 = vmatpush1.msra.mxu0 0.0
  %2076 = vmatprep.subr.mxu0 0.0
  %2077 = vmatpush1.msra.mxu0 0.0
  %2078 = vmatprep.subr.mxu0 0.0
  %2079 = vmatpush1.msra.mxu0 0.0
  %2080 = vmatprep.subr.mxu0 0.0
  %2081 = vmatpush1.msra.mxu0 0.0
  %2082 = vmatprep.subr.mxu0 0.0
  %2083 = vmatpush1.msra.mxu0 %v2030
  %2084 = vmatprep.subr.mxu0 0.0
  %2085 = vmatpush1.msra.mxu0 %v2029
  %2086 = vmatprep.subr.mxu0 0.0
  %2087 = vmatpush1.msra.mxu0 %v2028
  %2088 = vmatprep.subr.mxu0 0.0
  %2089 = vmatpush1.msra.mxu0 %v2027
  %2090 = vmatprep.subr.mxu0 0.0
  %2091 = vmatpush2.msra.mxu0 0.0
  %2092 = vmatprep.subr.mxu0 0.0
  %2093 = vmatpush2.msra.mxu0 0.0
  %2094 = vmatprep.subr.mxu0 0.0
  %2095 = vmatpush2.msra.mxu0 0.0
  %2096 = vmatprep.subr.mxu0 0.0
  %2097 = vmatpush2.msra.mxu0 0.0
  %2098 = vmatprep.subr.mxu0 0.0
  %2099 = vmatpush2.msra.mxu0 0.0
  %2100 = vmatprep.subr.mxu0 0.0
  %2101 = vmatpush2.msra.mxu0 0.0
  %2102 = vmatprep.subr.mxu0 0.0
  %2103 = vmatpush2.msra.mxu0 0.0
  %2104 = vmatprep.subr.mxu0 0.0
  %2105 = vmatpush2.msra.mxu0 0.0
  %2106 = vmatprep.subr.mxu0 0.0
  %2107 = vmatpush2.msra.mxu0 0.0
  %2108 = vmatprep.subr.mxu0 0.0
  %2109 = vmatpush2.msra.mxu0 0.0
  %2110 = vmatprep.subr.mxu0 0.0
  %2111 = vmatpush2.msra.mxu0 0.0
  %2112 = vmatprep.subr.mxu0 0.0
  %2113 = vmatpush2.msra.mxu0 0.0
  %2114 = vmatprep.subr.mxu0 0.0
  %2115 = vmatpush2.msra.mxu0 0.0
  %2116 = vmatprep.subr.mxu0 0.0
  %2117 = vmatpush2.msra.mxu0 0.0
  %2118 = vmatprep.subr.mxu0 0.0
  %2119 = vmatpush2.msra.mxu0 0.0
  %2120 = vmatprep.subr.mxu0 0.0
  %2121 = vmatpush2.msra.mxu0 0.0
  %2122 = vmatprep.mubr.f32.mxu0 0.0
  %2123 = vmatmul.mubr.f32.gmra.mxu0 %v2032
  %v2124 = vpop.f32.mrf.mxu0
  %v2125 = vadd.f32 0.0, %v2124
  %v2126 = vpop.f32.mrf.mxu0
  %2127 = vmatprep.mubr.f32.mxu0 0.0
  %2128 = vmatmul.mubr.f32.gmra.mxu0 %v2035
  %v2129 = vpop.f32.mrf.mxu0
  %v2130 = vadd.f32 0.0, %v2129
  %v2131 = vpop.f32.mrf.mxu0
  %2132 = vmatprep.mubr.f32.mxu0 0.0
  %2133 = vmatmul.mubr.f32.gmra.mxu0 %v2038
  %v2134 = vpop.f32.mrf.mxu0
  %v2135 = vadd.f32 0.0, %v2134
  %v2136 = vpop.f32.mrf.mxu0
  %2137 = vmatprep.mubr.f32.mxu0 0.0
  %2138 = vmatmul.mubr.f32.gmra.mxu0 %v2041
  %v2139 = vpop.f32.mrf.mxu0
  %v2140 = vadd.f32 0.0, %v2139
  %v2141 = vpop.f32.mrf.mxu0
  %2142 = vmatprep.mubr.f32.mxu0 0.0
  %2143 = vmatmul.mubr.f32.gmra.mxu0 %v2044
  %v2144 = vpop.f32.mrf.mxu0
  %v2145 = vadd.f32 0.0, %v2144
  %v2146 = vpop.f32.mrf.mxu0
  %2147 = vmatprep.mubr.f32.mxu0 0.0
  %2148 = vmatmul.mubr.f32.gmra.mxu0 %v2047
  %v2149 = vpop.f32.mrf.mxu0
  %v2150 = vadd.f32 0.0, %v2149
  %v2151 = vpop.f32.mrf.mxu0
  %2152 = vmatprep.mubr.f32.mxu0 0.0
  %2153 = vmatmul.mubr.f32.gmra.mxu0 %v2050
  %v2154 = vpop.f32.mrf.mxu0
  %v2155 = vadd.f32 0.0, %v2154
  %v2156 = vpop.f32.mrf.mxu0
  %2157 = vmatprep.mubr.f32.mxu0 0.0
  %2158 = vmatmul.mubr.f32.gmra.mxu0 %v2053
  %v2159 = vpop.f32.mrf.mxu0
  %v2160 = vadd.f32 0.0, %v2159
  %v2161 = vpop.f32.mrf.mxu0
  %2162 = vmatprep.mubr.f32.mxu0 0.0
  %2163 = vmatmul.mubr.f32.gmra.mxu0 %v2056
  %v2164 = vpop.f32.mrf.mxu0
  %v2165 = vadd.f32 0.0, %v2164
  %v2166 = vpop.f32.mrf.mxu0
  %2167 = vdwg.mxu0
  %v2168 = vadd.f32 %v2018, %v2125
  %v2169 = vadd.f32 %v2019, %v2130
  %v2170 = vadd.f32 %v2020, %v2135
  %v2171 = vadd.f32 %v2021, %v2140
  %v2172 = vadd.f32 %v2022, %v2145
  %v2173 = vadd.f32 %v2023, %v2150
  %v2174 = vadd.f32 %v2024, %v2155
  %v2175 = vadd.f32 %v2025, %v2160
  %v2176 = vadd.f32 %v2026, %v2165
  %v2177 = vld [vmem:[%s3 + $0xc0] sm:$0xff]
  %v2178 = vld [vmem:[%s3 + $0xc8] sm:$0xff]
  %v2179 = vld [vmem:[%s3 + $0xd0] sm:$0xff]
  %v2180 = vld [vmem:[%s3 + $0xd8] sm:$0xff]
  %v2182 = vsel %vm1302, %v1204, 0
  %v2185 = vsel %vm1302, %v1205, 0
  %v2188 = vsel %vm1302, %v1206, 0
  %v2191 = vsel %vm1302, %v1207, 0
  %v2194 = vsel %vm1302, %v1208, 0
  %v2197 = vsel %vm1302, %v1209, 0
  %v2200 = vsel %vm1302, %v1210, 0
  %v2203 = vsel %vm1302, %v1211, 0
  %v2206 = vsel %vm1302, %v1212, 0
  %2208 = vmatprep.subr.mxu0 0.0
  %2209 = vmatpush1.msra.mxu0 0.0
  %2210 = vmatprep.subr.mxu0 0.0
  %2211 = vmatpush1.msra.mxu0 0.0
  %2212 = vmatprep.subr.mxu0 0.0
  %2213 = vmatpush1.msra.mxu0 0.0
  %2214 = vmatprep.subr.mxu0 0.0
  %2215 = vmatpush1.msra.mxu0 0.0
  %2216 = vmatprep.subr.mxu0 0.0
  %2217 = vmatpush1.msra.mxu0 0.0
  %2218 = vmatprep.subr.mxu0 0.0
  %2219 = vmatpush1.msra.mxu0 0.0
  %2220 = vmatprep.subr.mxu0 0.0
  %2221 = vmatpush1.msra.mxu0 0.0
  %2222 = vmatprep.subr.mxu0 0.0
  %2223 = vmatpush1.msra.mxu0 0.0
  %2224 = vmatprep.subr.mxu0 0.0
  %2225 = vmatpush1.msra.mxu0 0.0
  %2226 = vmatprep.subr.mxu0 0.0
  %2227 = vmatpush1.msra.mxu0 0.0
  %2228 = vmatprep.subr.mxu0 0.0
  %2229 = vmatpush1.msra.mxu0 0.0
  %2230 = vmatprep.subr.mxu0 0.0
  %2231 = vmatpush1.msra.mxu0 0.0
  %2232 = vmatprep.subr.mxu0 0.0
  %2233 = vmatpush1.msra.mxu0 %v2180
  %2234 = vmatprep.subr.mxu0 0.0
  %2235 = vmatpush1.msra.mxu0 %v2179
  %2236 = vmatprep.subr.mxu0 0.0
  %2237 = vmatpush1.msra.mxu0 %v2178
  %2238 = vmatprep.subr.mxu0 0.0
  %2239 = vmatpush1.msra.mxu0 %v2177
  %2240 = vmatprep.subr.mxu0 0.0
  %2241 = vmatpush2.msra.mxu0 0.0
  %2242 = vmatprep.subr.mxu0 0.0
  %2243 = vmatpush2.msra.mxu0 0.0
  %2244 = vmatprep.subr.mxu0 0.0
  %2245 = vmatpush2.msra.mxu0 0.0
  %2246 = vmatprep.subr.mxu0 0.0
  %2247 = vmatpush2.msra.mxu0 0.0
  %2248 = vmatprep.subr.mxu0 0.0
  %2249 = vmatpush2.msra.mxu0 0.0
  %2250 = vmatprep.subr.mxu0 0.0
  %2251 = vmatpush2.msra.mxu0 0.0
  %2252 = vmatprep.subr.mxu0 0.0
  %2253 = vmatpush2.msra.mxu0 0.0
  %2254 = vmatprep.subr.mxu0 0.0
  %2255 = vmatpush2.msra.mxu0 0.0
  %2256 = vmatprep.subr.mxu0 0.0
  %2257 = vmatpush2.msra.mxu0 0.0
  %2258 = vmatprep.subr.mxu0 0.0
  %2259 = vmatpush2.msra.mxu0 0.0
  %2260 = vmatprep.subr.mxu0 0.0
  %2261 = vmatpush2.msra.mxu0 0.0
  %2262 = vmatprep.subr.mxu0 0.0
  %2263 = vmatpush2.msra.mxu0 0.0
  %2264 = vmatprep.subr.mxu0 0.0
  %2265 = vmatpush2.msra.mxu0 0.0
  %2266 = vmatprep.subr.mxu0 0.0
  %2267 = vmatpush2.msra.mxu0 0.0
  %2268 = vmatprep.subr.mxu0 0.0
  %2269 = vmatpush2.msra.mxu0 0.0
  %2270 = vmatprep.subr.mxu0 0.0
  %2271 = vmatpush2.msra.mxu0 0.0
  %2272 = vmatprep.mubr.f32.mxu0 0.0
  %2273 = vmatmul.mubr.f32.gmra.mxu0 %v2182
  %v2274 = vpop.f32.mrf.mxu0
  %v2275 = vadd.f32 0.0, %v2274
  %v2276 = vpop.f32.mrf.mxu0
  %2277 = vmatprep.mubr.f32.mxu0 0.0
  %2278 = vmatmul.mubr.f32.gmra.mxu0 %v2185
  %v2279 = vpop.f32.mrf.mxu0
  %v2280 = vadd.f32 0.0, %v2279
  %v2281 = vpop.f32.mrf.mxu0
  %2282 = vmatprep.mubr.f32.mxu0 0.0
  %2283 = vmatmul.mubr.f32.gmra.mxu0 %v2188
  %v2284 = vpop.f32.mrf.mxu0
  %v2285 = vadd.f32 0.0, %v2284
  %v2286 = vpop.f32.mrf.mxu0
  %2287 = vmatprep.mubr.f32.mxu0 0.0
  %2288 = vmatmul.mubr.f32.gmra.mxu0 %v2191
  %v2289 = vpop.f32.mrf.mxu0
  %v2290 = vadd.f32 0.0, %v2289
  %v2291 = vpop.f32.mrf.mxu0
  %2292 = vmatprep.mubr.f32.mxu0 0.0
  %2293 = vmatmul.mubr.f32.gmra.mxu0 %v2194
  %v2294 = vpop.f32.mrf.mxu0
  %v2295 = vadd.f32 0.0, %v2294
  %v2296 = vpop.f32.mrf.mxu0
  %2297 = vmatprep.mubr.f32.mxu0 0.0
  %2298 = vmatmul.mubr.f32.gmra.mxu0 %v2197
  %v2299 = vpop.f32.mrf.mxu0
  %v2300 = vadd.f32 0.0, %v2299
  %v2301 = vpop.f32.mrf.mxu0
  %2302 = vmatprep.mubr.f32.mxu0 0.0
  %2303 = vmatmul.mubr.f32.gmra.mxu0 %v2200
  %v2304 = vpop.f32.mrf.mxu0
  %v2305 = vadd.f32 0.0, %v2304
  %v2306 = vpop.f32.mrf.mxu0
  %2307 = vmatprep.mubr.f32.mxu0 0.0
  %2308 = vmatmul.mubr.f32.gmra.mxu0 %v2203
  %v2309 = vpop.f32.mrf.mxu0
  %v2310 = vadd.f32 0.0, %v2309
  %v2311 = vpop.f32.mrf.mxu0
  %2312 = vmatprep.mubr.f32.mxu0 0.0
  %2313 = vmatmul.mubr.f32.gmra.mxu0 %v2206
  %v2314 = vpop.f32.mrf.mxu0
  %v2315 = vadd.f32 0.0, %v2314
  %v2316 = vpop.f32.mrf.mxu0
  %2317 = vdwg.mxu0
  %v2318 = vadd.f32 %v2168, %v2275
  %v2319 = vadd.f32 %v2169, %v2280
  %v2320 = vadd.f32 %v2170, %v2285
  %v2321 = vadd.f32 %v2171, %v2290
  %v2322 = vadd.f32 %v2172, %v2295
  %v2323 = vadd.f32 %v2173, %v2300
  %v2324 = vadd.f32 %v2174, %v2305
  %v2325 = vadd.f32 %v2175, %v2310
  %v2326 = vadd.f32 %v2176, %v2315
  %v2327 = vld [vmem:[%s3 + $0xe0] sm:$0xff]
  %v2328 = vld [vmem:[%s3 + $0xe8] sm:$0xff]
  %v2329 = vld [vmem:[%s3 + $0xf0] sm:$0xff]
  %v2330 = vld [vmem:[%s3 + $0xf8] sm:$0xff]
  %v2332 = vsel %vm1302, %v1213, 0
  %v2335 = vsel %vm1302, %v1214, 0
  %v2338 = vsel %vm1302, %v1215, 0
  %v2341 = vsel %vm1302, %v1216, 0
  %v2344 = vsel %vm1302, %v1217, 0
  %v2347 = vsel %vm1302, %v1218, 0
  %v2350 = vsel %vm1302, %v1219, 0
  %v2353 = vsel %vm1302, %v1220, 0
  %v2356 = vsel %vm1302, %v1221, 0
  %2358 = vmatprep.subr.mxu0 0.0
  %2359 = vmatpush1.msra.mxu0 0.0
  %2360 = vmatprep.subr.mxu0 0.0
  %2361 = vmatpush1.msra.mxu0 0.0
  %2362 = vmatprep.subr.mxu0 0.0
  %2363 = vmatpush1.msra.mxu0 0.0
  %2364 = vmatprep.subr.mxu0 0.0
  %2365 = vmatpush1.msra.mxu0 0.0
  %2366 = vmatprep.subr.mxu0 0.0
  %2367 = vmatpush1.msra.mxu0 0.0
  %2368 = vmatprep.subr.mxu0 0.0
  %2369 = vmatpush1.msra.mxu0 0.0
  %2370 = vmatprep.subr.mxu0 0.0
  %2371 = vmatpush1.msra.mxu0 0.0
  %2372 = vmatprep.subr.mxu0 0.0
  %2373 = vmatpush1.msra.mxu0 0.0
  %2374 = vmatprep.subr.mxu0 0.0
  %2375 = vmatpush1.msra.mxu0 0.0
  %2376 = vmatprep.subr.mxu0 0.0
  %2377 = vmatpush1.msra.mxu0 0.0
  %2378 = vmatprep.subr.mxu0 0.0
  %2379 = vmatpush1.msra.mxu0 0.0
  %2380 = vmatprep.subr.mxu0 0.0
  %2381 = vmatpush1.msra.mxu0 0.0
  %2382 = vmatprep.subr.mxu0 0.0
  %2383 = vmatpush1.msra.mxu0 %v2330
  %2384 = vmatprep.subr.mxu0 0.0
  %2385 = vmatpush1.msra.mxu0 %v2329
  %2386 = vmatprep.subr.mxu0 0.0
  %2387 = vmatpush1.msra.mxu0 %v2328
  %2388 = vmatprep.subr.mxu0 0.0
  %2389 = vmatpush1.msra.mxu0 %v2327
  %2390 = vmatprep.subr.mxu0 0.0
  %2391 = vmatpush2.msra.mxu0 0.0
  %2392 = vmatprep.subr.mxu0 0.0
  %2393 = vmatpush2.msra.mxu0 0.0
  %2394 = vmatprep.subr.mxu0 0.0
  %2395 = vmatpush2.msra.mxu0 0.0
  %2396 = vmatprep.subr.mxu0 0.0
  %2397 = vmatpush2.msra.mxu0 0.0
  %2398 = vmatprep.subr.mxu0 0.0
  %2399 = vmatpush2.msra.mxu0 0.0
  %2400 = vmatprep.subr.mxu0 0.0
  %2401 = vmatpush2.msra.mxu0 0.0
  %2402 = vmatprep.subr.mxu0 0.0
  %2403 = vmatpush2.msra.mxu0 0.0
  %2404 = vmatprep.subr.mxu0 0.0
  %2405 = vmatpush2.msra.mxu0 0.0
  %2406 = vmatprep.subr.mxu0 0.0
  %2407 = vmatpush2.msra.mxu0 0.0
  %2408 = vmatprep.subr.mxu0 0.0
  %2409 = vmatpush2.msra.mxu0 0.0
  %2410 = vmatprep.subr.mxu0 0.0
  %2411 = vmatpush2.msra.mxu0 0.0
  %2412 = vmatprep.subr.mxu0 0.0
  %2413 = vmatpush2.msra.mxu0 0.0
  %2414 = vmatprep.subr.mxu0 0.0
  %2415 = vmatpush2.msra.mxu0 0.0
  %2416 = vmatprep.subr.mxu0 0.0
  %2417 = vmatpush2.msra.mxu0 0.0
  %2418 = vmatprep.subr.mxu0 0.0
  %2419 = vmatpush2.msra.mxu0 0.0
  %2420 = vmatprep.subr.mxu0 0.0
  %2421 = vmatpush2.msra.mxu0 0.0
  %2422 = vmatprep.mubr.f32.mxu0 0.0
  %2423 = vmatmul.mubr.f32.gmra.mxu0 %v2332
  %v2424 = vpop.f32.mrf.mxu0
  %v2425 = vadd.f32 0.0, %v2424
  %v2426 = vpop.f32.mrf.mxu0
  %2427 = vmatprep.mubr.f32.mxu0 0.0
  %2428 = vmatmul.mubr.f32.gmra.mxu0 %v2335
  %v2429 = vpop.f32.mrf.mxu0
  %v2430 = vadd.f32 0.0, %v2429
  %v2431 = vpop.f32.mrf.mxu0
  %2432 = vmatprep.mubr.f32.mxu0 0.0
  %2433 = vmatmul.mubr.f32.gmra.mxu0 %v2338
  %v2434 = vpop.f32.mrf.mxu0
  %v2435 = vadd.f32 0.0, %v2434
  %v2436 = vpop.f32.mrf.mxu0
  %2437 = vmatprep.mubr.f32.mxu0 0.0
  %2438 = vmatmul.mubr.f32.gmra.mxu0 %v2341
  %v2439 = vpop.f32.mrf.mxu0
  %v2440 = vadd.f32 0.0, %v2439
  %v2441 = vpop.f32.mrf.mxu0
  %2442 = vmatprep.mubr.f32.mxu0 0.0
  %2443 = vmatmul.mubr.f32.gmra.mxu0 %v2344
  %v2444 = vpop.f32.mrf.mxu0
  %v2445 = vadd.f32 0.0, %v2444
  %v2446 = vpop.f32.mrf.mxu0
  %2447 = vmatprep.mubr.f32.mxu0 0.0
  %2448 = vmatmul.mubr.f32.gmra.mxu0 %v2347
  %v2449 = vpop.f32.mrf.mxu0
  %v2450 = vadd.f32 0.0, %v2449
  %v2451 = vpop.f32.mrf.mxu0
  %2452 = vmatprep.mubr.f32.mxu0 0.0
  %2453 = vmatmul.mubr.f32.gmra.mxu0 %v2350
  %v2454 = vpop.f32.mrf.mxu0
  %v2455 = vadd.f32 0.0, %v2454
  %v2456 = vpop.f32.mrf.mxu0
  %2457 = vmatprep.mubr.f32.mxu0 0.0
  %2458 = vmatmul.mubr.f32.gmra.mxu0 %v2353
  %v2459 = vpop.f32.mrf.mxu0
  %v2460 = vadd.f32 0.0, %v2459
  %v2461 = vpop.f32.mrf.mxu0
  %2462 = vmatprep.mubr.f32.mxu0 0.0
  %2463 = vmatmul.mubr.f32.gmra.mxu0 %v2356
  %v2464 = vpop.f32.mrf.mxu0
  %v2465 = vadd.f32 0.0, %v2464
  %v2466 = vpop.f32.mrf.mxu0
  %2467 = vdwg.mxu0
  %v2468 = vadd.f32 %v2318, %v2425
  %v2469 = vadd.f32 %v2319, %v2430
  %v2470 = vadd.f32 %v2320, %v2435
  %v2471 = vadd.f32 %v2321, %v2440
  %v2472 = vadd.f32 %v2322, %v2445
  %v2473 = vadd.f32 %v2323, %v2450
  %v2474 = vadd.f32 %v2324, %v2455
  %v2475 = vadd.f32 %v2325, %v2460
  %v2476 = vadd.f32 %v2326, %v2465
  %v2477 = vld [vmem:[%s3 + $0x100] sm:$0xff]
  %v2478 = vld [vmem:[%s3 + $0x108] sm:$0xff]
  %v2479 = vld [vmem:[%s3 + $0x110] sm:$0xff]
  %v2480 = vld [vmem:[%s3 + $0x118] sm:$0xff]
  %v2482 = vsel %vm1302, %v1222, 0
  %v2485 = vsel %vm1302, %v1223, 0
  %v2488 = vsel %vm1302, %v1224, 0
  %v2491 = vsel %vm1302, %v1225, 0
  %v2494 = vsel %vm1302, %v1226, 0
  %v2497 = vsel %vm1302, %v1227, 0
  %v2500 = vsel %vm1302, %v1228, 0
  %v2503 = vsel %vm1302, %v1229, 0
  %v2506 = vsel %vm1302, %v1230, 0
  %2508 = vmatprep.subr.mxu0 0.0
  %2509 = vmatpush1.msra.mxu0 0.0
  %2510 = vmatprep.subr.mxu0 0.0
  %2511 = vmatpush1.msra.mxu0 0.0
  %2512 = vmatprep.subr.mxu0 0.0
  %2513 = vmatpush1.msra.mxu0 0.0
  %2514 = vmatprep.subr.mxu0 0.0
  %2515 = vmatpush1.msra.mxu0 0.0
  %2516 = vmatprep.subr.mxu0 0.0
  %2517 = vmatpush1.msra.mxu0 0.0
  %2518 = vmatprep.subr.mxu0 0.0
  %2519 = vmatpush1.msra.mxu0 0.0
  %2520 = vmatprep.subr.mxu0 0.0
  %2521 = vmatpush1.msra.mxu0 0.0
  %2522 = vmatprep.subr.mxu0 0.0
  %2523 = vmatpush1.msra.mxu0 0.0
  %2524 = vmatprep.subr.mxu0 0.0
  %2525 = vmatpush1.msra.mxu0 0.0
  %2526 = vmatprep.subr.mxu0 0.0
  %2527 = vmatpush1.msra.mxu0 0.0
  %2528 = vmatprep.subr.mxu0 0.0
  %2529 = vmatpush1.msra.mxu0 0.0
  %2530 = vmatprep.subr.mxu0 0.0
  %2531 = vmatpush1.msra.mxu0 0.0
  %2532 = vmatprep.subr.mxu0 0.0
  %2533 = vmatpush1.msra.mxu0 %v2480
  %2534 = vmatprep.subr.mxu0 0.0
  %2535 = vmatpush1.msra.mxu0 %v2479
  %2536 = vmatprep.subr.mxu0 0.0
  %2537 = vmatpush1.msra.mxu0 %v2478
  %2538 = vmatprep.subr.mxu0 0.0
  %2539 = vmatpush1.msra.mxu0 %v2477
  %2540 = vmatprep.subr.mxu0 0.0
  %2541 = vmatpush2.msra.mxu0 0.0
  %2542 = vmatprep.subr.mxu0 0.0
  %2543 = vmatpush2.msra.mxu0 0.0
  %2544 = vmatprep.subr.mxu0 0.0
  %2545 = vmatpush2.msra.mxu0 0.0
  %2546 = vmatprep.subr.mxu0 0.0
  %2547 = vmatpush2.msra.mxu0 0.0
  %2548 = vmatprep.subr.mxu0 0.0
  %2549 = vmatpush2.msra.mxu0 0.0
  %2550 = vmatprep.subr.mxu0 0.0
  %2551 = vmatpush2.msra.mxu0 0.0
  %2552 = vmatprep.subr.mxu0 0.0
  %2553 = vmatpush2.msra.mxu0 0.0
  %2554 = vmatprep.subr.mxu0 0.0
  %2555 = vmatpush2.msra.mxu0 0.0
  %2556 = vmatprep.subr.mxu0 0.0
  %2557 = vmatpush2.msra.mxu0 0.0
  %2558 = vmatprep.subr.mxu0 0.0
  %2559 = vmatpush2.msra.mxu0 0.0
  %2560 = vmatprep.subr.mxu0 0.0
  %2561 = vmatpush2.msra.mxu0 0.0
  %2562 = vmatprep.subr.mxu0 0.0
  %2563 = vmatpush2.msra.mxu0 0.0
  %2564 = vmatprep.subr.mxu0 0.0
  %2565 = vmatpush2.msra.mxu0 0.0
  %2566 = vmatprep.subr.mxu0 0.0
  %2567 = vmatpush2.msra.mxu0 0.0
  %2568 = vmatprep.subr.mxu0 0.0
  %2569 = vmatpush2.msra.mxu0 0.0
  %2570 = vmatprep.subr.mxu0 0.0
  %2571 = vmatpush2.msra.mxu0 0.0
  %2572 = vmatprep.mubr.f32.mxu0 0.0
  %2573 = vmatmul.mubr.f32.gmra.mxu0 %v2482
  %v2574 = vpop.f32.mrf.mxu0
  %v2575 = vadd.f32 0.0, %v2574
  %v2576 = vpop.f32.mrf.mxu0
  %2577 = vmatprep.mubr.f32.mxu0 0.0
  %2578 = vmatmul.mubr.f32.gmra.mxu0 %v2485
  %v2579 = vpop.f32.mrf.mxu0
  %v2580 = vadd.f32 0.0, %v2579
  %v2581 = vpop.f32.mrf.mxu0
  %2582 = vmatprep.mubr.f32.mxu0 0.0
  %2583 = vmatmul.mubr.f32.gmra.mxu0 %v2488
  %v2584 = vpop.f32.mrf.mxu0
  %v2585 = vadd.f32 0.0, %v2584
  %v2586 = vpop.f32.mrf.mxu0
  %2587 = vmatprep.mubr.f32.mxu0 0.0
  %2588 = vmatmul.mubr.f32.gmra.mxu0 %v2491
  %v2589 = vpop.f32.mrf.mxu0
  %v2590 = vadd.f32 0.0, %v2589
  %v2591 = vpop.f32.mrf.mxu0
  %2592 = vmatprep.mubr.f32.mxu0 0.0
  %2593 = vmatmul.mubr.f32.gmra.mxu0 %v2494
  %v2594 = vpop.f32.mrf.mxu0
  %v2595 = vadd.f32 0.0, %v2594
  %v2596 = vpop.f32.mrf.mxu0
  %2597 = vmatprep.mubr.f32.mxu0 0.0
  %2598 = vmatmul.mubr.f32.gmra.mxu0 %v2497
  %v2599 = vpop.f32.mrf.mxu0
  %v2600 = vadd.f32 0.0, %v2599
  %v2601 = vpop.f32.mrf.mxu0
  %2602 = vmatprep.mubr.f32.mxu0 0.0
  %2603 = vmatmul.mubr.f32.gmra.mxu0 %v2500
  %v2604 = vpop.f32.mrf.mxu0
  %v2605 = vadd.f32 0.0, %v2604
  %v2606 = vpop.f32.mrf.mxu0
  %2607 = vmatprep.mubr.f32.mxu0 0.0
  %2608 = vmatmul.mubr.f32.gmra.mxu0 %v2503
  %v2609 = vpop.f32.mrf.mxu0
  %v2610 = vadd.f32 0.0, %v2609
  %v2611 = vpop.f32.mrf.mxu0
  %2612 = vmatprep.mubr.f32.mxu0 0.0
  %2613 = vmatmul.mubr.f32.gmra.mxu0 %v2506
  %v2614 = vpop.f32.mrf.mxu0
  %v2615 = vadd.f32 0.0, %v2614
  %v2616 = vpop.f32.mrf.mxu0
  %2617 = vdwg.mxu0
  %v2618 = vadd.f32 %v2468, %v2575
  %v2619 = vadd.f32 %v2469, %v2580
  %v2620 = vadd.f32 %v2470, %v2585
  %v2621 = vadd.f32 %v2471, %v2590
  %v2622 = vadd.f32 %v2472, %v2595
  %v2623 = vadd.f32 %v2473, %v2600
  %v2624 = vadd.f32 %v2474, %v2605
  %v2625 = vadd.f32 %v2475, %v2610
  %v2626 = vadd.f32 %v2476, %v2615
  %v2627 = vld [vmem:[%s3 + $0x120] sm:$0xff]
  %v2628 = vld [vmem:[%s3 + $0x128] sm:$0xff]
  %v2629 = vld [vmem:[%s3 + $0x130] sm:$0xff]
  %v2630 = vld [vmem:[%s3 + $0x138] sm:$0xff]
  %v2632 = vsel %vm1302, %v1231, 0
  %v2635 = vsel %vm1302, %v1232, 0
  %v2638 = vsel %vm1302, %v1233, 0
  %v2641 = vsel %vm1302, %v1234, 0
  %v2644 = vsel %vm1302, %v1235, 0
  %v2647 = vsel %vm1302, %v1236, 0
  %v2650 = vsel %vm1302, %v1237, 0
  %v2653 = vsel %vm1302, %v1238, 0
  %v2656 = vsel %vm1302, %v1239, 0
  %2658 = vmatprep.subr.mxu0 0.0
  %2659 = vmatpush1.msra.mxu0 0.0
  %2660 = vmatprep.subr.mxu0 0.0
  %2661 = vmatpush1.msra.mxu0 0.0
  %2662 = vmatprep.subr.mxu0 0.0
  %2663 = vmatpush1.msra.mxu0 0.0
  %2664 = vmatprep.subr.mxu0 0.0
  %2665 = vmatpush1.msra.mxu0 0.0
  %2666 = vmatprep.subr.mxu0 0.0
  %2667 = vmatpush1.msra.mxu0 0.0
  %2668 = vmatprep.subr.mxu0 0.0
  %2669 = vmatpush1.msra.mxu0 0.0
  %2670 = vmatprep.subr.mxu0 0.0
  %2671 = vmatpush1.msra.mxu0 0.0
  %2672 = vmatprep.subr.mxu0 0.0
  %2673 = vmatpush1.msra.mxu0 0.0
  %2674 = vmatprep.subr.mxu0 0.0
  %2675 = vmatpush1.msra.mxu0 0.0
  %2676 = vmatprep.subr.mxu0 0.0
  %2677 = vmatpush1.msra.mxu0 0.0
  %2678 = vmatprep.subr.mxu0 0.0
  %2679 = vmatpush1.msra.mxu0 0.0
  %2680 = vmatprep.subr.mxu0 0.0
  %2681 = vmatpush1.msra.mxu0 0.0
  %2682 = vmatprep.subr.mxu0 0.0
  %2683 = vmatpush1.msra.mxu0 %v2630
  %2684 = vmatprep.subr.mxu0 0.0
  %2685 = vmatpush1.msra.mxu0 %v2629
  %2686 = vmatprep.subr.mxu0 0.0
  %2687 = vmatpush1.msra.mxu0 %v2628
  %2688 = vmatprep.subr.mxu0 0.0
  %2689 = vmatpush1.msra.mxu0 %v2627
  %2690 = vmatprep.subr.mxu0 0.0
  %2691 = vmatpush2.msra.mxu0 0.0
  %2692 = vmatprep.subr.mxu0 0.0
  %2693 = vmatpush2.msra.mxu0 0.0
  %2694 = vmatprep.subr.mxu0 0.0
  %2695 = vmatpush2.msra.mxu0 0.0
  %2696 = vmatprep.subr.mxu0 0.0
  %2697 = vmatpush2.msra.mxu0 0.0
  %2698 = vmatprep.subr.mxu0 0.0
  %2699 = vmatpush2.msra.mxu0 0.0
  %2700 = vmatprep.subr.mxu0 0.0
  %2701 = vmatpush2.msra.mxu0 0.0
  %2702 = vmatprep.subr.mxu0 0.0
  %2703 = vmatpush2.msra.mxu0 0.0
  %2704 = vmatprep.subr.mxu0 0.0
  %2705 = vmatpush2.msra.mxu0 0.0
  %2706 = vmatprep.subr.mxu0 0.0
  %2707 = vmatpush2.msra.mxu0 0.0
  %2708 = vmatprep.subr.mxu0 0.0
  %2709 = vmatpush2.msra.mxu0 0.0
  %2710 = vmatprep.subr.mxu0 0.0
  %2711 = vmatpush2.msra.mxu0 0.0
  %2712 = vmatprep.subr.mxu0 0.0
  %2713 = vmatpush2.msra.mxu0 0.0
  %2714 = vmatprep.subr.mxu0 0.0
  %2715 = vmatpush2.msra.mxu0 0.0
  %2716 = vmatprep.subr.mxu0 0.0
  %2717 = vmatpush2.msra.mxu0 0.0
  %2718 = vmatprep.subr.mxu0 0.0
  %2719 = vmatpush2.msra.mxu0 0.0
  %2720 = vmatprep.subr.mxu0 0.0
  %2721 = vmatpush2.msra.mxu0 0.0
  %2722 = vmatprep.mubr.f32.mxu0 0.0
  %2723 = vmatmul.mubr.f32.gmra.mxu0 %v2632
  %v2724 = vpop.f32.mrf.mxu0
  %v2725 = vadd.f32 0.0, %v2724
  %v2726 = vpop.f32.mrf.mxu0
  %2727 = vmatprep.mubr.f32.mxu0 0.0
  %2728 = vmatmul.mubr.f32.gmra.mxu0 %v2635
  %v2729 = vpop.f32.mrf.mxu0
  %v2730 = vadd.f32 0.0, %v2729
  %v2731 = vpop.f32.mrf.mxu0
  %2732 = vmatprep.mubr.f32.mxu0 0.0
  %2733 = vmatmul.mubr.f32.gmra.mxu0 %v2638
  %v2734 = vpop.f32.mrf.mxu0
  %v2735 = vadd.f32 0.0, %v2734
  %v2736 = vpop.f32.mrf.mxu0
  %2737 = vmatprep.mubr.f32.mxu0 0.0
  %2738 = vmatmul.mubr.f32.gmra.mxu0 %v2641
  %v2739 = vpop.f32.mrf.mxu0
  %v2740 = vadd.f32 0.0, %v2739
  %v2741 = vpop.f32.mrf.mxu0
  %2742 = vmatprep.mubr.f32.mxu0 0.0
  %2743 = vmatmul.mubr.f32.gmra.mxu0 %v2644
  %v2744 = vpop.f32.mrf.mxu0
  %v2745 = vadd.f32 0.0, %v2744
  %v2746 = vpop.f32.mrf.mxu0
  %2747 = vmatprep.mubr.f32.mxu0 0.0
  %2748 = vmatmul.mubr.f32.gmra.mxu0 %v2647
  %v2749 = vpop.f32.mrf.mxu0
  %v2750 = vadd.f32 0.0, %v2749
  %v2751 = vpop.f32.mrf.mxu0
  %2752 = vmatprep.mubr.f32.mxu0 0.0
  %2753 = vmatmul.mubr.f32.gmra.mxu0 %v2650
  %v2754 = vpop.f32.mrf.mxu0
  %v2755 = vadd.f32 0.0, %v2754
  %v2756 = vpop.f32.mrf.mxu0
  %2757 = vmatprep.mubr.f32.mxu0 0.0
  %2758 = vmatmul.mubr.f32.gmra.mxu0 %v2653
  %v2759 = vpop.f32.mrf.mxu0
  %v2760 = vadd.f32 0.0, %v2759
  %v2761 = vpop.f32.mrf.mxu0
  %2762 = vmatprep.mubr.f32.mxu0 0.0
  %2763 = vmatmul.mubr.f32.gmra.mxu0 %v2656
  %v2764 = vpop.f32.mrf.mxu0
  %v2765 = vadd.f32 0.0, %v2764
  %v2766 = vpop.f32.mrf.mxu0
  %2767 = vdwg.mxu0
  %v2768 = vadd.f32 %v2618, %v2725
  %v2769 = vadd.f32 %v2619, %v2730
  %v2770 = vadd.f32 %v2620, %v2735
  %v2771 = vadd.f32 %v2621, %v2740
  %v2772 = vadd.f32 %v2622, %v2745
  %v2773 = vadd.f32 %v2623, %v2750
  %v2774 = vadd.f32 %v2624, %v2755
  %v2775 = vadd.f32 %v2625, %v2760
  %v2776 = vadd.f32 %v2626, %v2765
  %v2777 = vld [vmem:[%s3 + $0x140] sm:$0xff]
  %v2778 = vld [vmem:[%s3 + $0x148] sm:$0xff]
  %v2779 = vld [vmem:[%s3 + $0x150] sm:$0xff]
  %v2780 = vld [vmem:[%s3 + $0x158] sm:$0xff]
  %v2782 = vsel %vm1302, %v1240, 0
  %v2785 = vsel %vm1302, %v1241, 0
  %v2788 = vsel %vm1302, %v1242, 0
  %v2791 = vsel %vm1302, %v1243, 0
  %v2794 = vsel %vm1302, %v1244, 0
  %v2797 = vsel %vm1302, %v1245, 0
  %v2800 = vsel %vm1302, %v1246, 0
  %v2803 = vsel %vm1302, %v1247, 0
  %v2806 = vsel %vm1302, %v1248, 0
  %2808 = vmatprep.subr.mxu0 0.0
  %2809 = vmatpush1.msra.mxu0 0.0
  %2810 = vmatprep.subr.mxu0 0.0
  %2811 = vmatpush1.msra.mxu0 0.0
  %2812 = vmatprep.subr.mxu0 0.0
  %2813 = vmatpush1.msra.mxu0 0.0
  %2814 = vmatprep.subr.mxu0 0.0
  %2815 = vmatpush1.msra.mxu0 0.0
  %2816 = vmatprep.subr.mxu0 0.0
  %2817 = vmatpush1.msra.mxu0 0.0
  %2818 = vmatprep.subr.mxu0 0.0
  %2819 = vmatpush1.msra.mxu0 0.0
  %2820 = vmatprep.subr.mxu0 0.0
  %2821 = vmatpush1.msra.mxu0 0.0
  %2822 = vmatprep.subr.mxu0 0.0
  %2823 = vmatpush1.msra.mxu0 0.0
  %2824 = vmatprep.subr.mxu0 0.0
  %2825 = vmatpush1.msra.mxu0 0.0
  %2826 = vmatprep.subr.mxu0 0.0
  %2827 = vmatpush1.msra.mxu0 0.0
  %2828 = vmatprep.subr.mxu0 0.0
  %2829 = vmatpush1.msra.mxu0 0.0
  %2830 = vmatprep.subr.mxu0 0.0
  %2831 = vmatpush1.msra.mxu0 0.0
  %2832 = vmatprep.subr.mxu0 0.0
  %2833 = vmatpush1.msra.mxu0 %v2780
  %2834 = vmatprep.subr.mxu0 0.0
  %2835 = vmatpush1.msra.mxu0 %v2779
  %2836 = vmatprep.subr.mxu0 0.0
  %2837 = vmatpush1.msra.mxu0 %v2778
  %2838 = vmatprep.subr.mxu0 0.0
  %2839 = vmatpush1.msra.mxu0 %v2777
  %2840 = vmatprep.subr.mxu0 0.0
  %2841 = vmatpush2.msra.mxu0 0.0
  %2842 = vmatprep.subr.mxu0 0.0
  %2843 = vmatpush2.msra.mxu0 0.0
  %2844 = vmatprep.subr.mxu0 0.0
  %2845 = vmatpush2.msra.mxu0 0.0
  %2846 = vmatprep.subr.mxu0 0.0
  %2847 = vmatpush2.msra.mxu0 0.0
  %2848 = vmatprep.subr.mxu0 0.0
  %2849 = vmatpush2.msra.mxu0 0.0
  %2850 = vmatprep.subr.mxu0 0.0
  %2851 = vmatpush2.msra.mxu0 0.0
  %2852 = vmatprep.subr.mxu0 0.0
  %2853 = vmatpush2.msra.mxu0 0.0
  %2854 = vmatprep.subr.mxu0 0.0
  %2855 = vmatpush2.msra.mxu0 0.0
  %2856 = vmatprep.subr.mxu0 0.0
  %2857 = vmatpush2.msra.mxu0 0.0
  %2858 = vmatprep.subr.mxu0 0.0
  %2859 = vmatpush2.msra.mxu0 0.0
  %2860 = vmatprep.subr.mxu0 0.0
  %2861 = vmatpush2.msra.mxu0 0.0
  %2862 = vmatprep.subr.mxu0 0.0
  %2863 = vmatpush2.msra.mxu0 0.0
  %2864 = vmatprep.subr.mxu0 0.0
  %2865 = vmatpush2.msra.mxu0 0.0
  %2866 = vmatprep.subr.mxu0 0.0
  %2867 = vmatpush2.msra.mxu0 0.0
  %2868 = vmatprep.subr.mxu0 0.0
  %2869 = vmatpush2.msra.mxu0 0.0
  %2870 = vmatprep.subr.mxu0 0.0
  %2871 = vmatpush2.msra.mxu0 0.0
  %2872 = vmatprep.mubr.f32.mxu0 0.0
  %2873 = vmatmul.mubr.f32.gmra.mxu0 %v2782
  %v2874 = vpop.f32.mrf.mxu0
  %v2875 = vadd.f32 0.0, %v2874
  %v2876 = vpop.f32.mrf.mxu0
  %2877 = vmatprep.mubr.f32.mxu0 0.0
  %2878 = vmatmul.mubr.f32.gmra.mxu0 %v2785
  %v2879 = vpop.f32.mrf.mxu0
  %v2880 = vadd.f32 0.0, %v2879
  %v2881 = vpop.f32.mrf.mxu0
  %2882 = vmatprep.mubr.f32.mxu0 0.0
  %2883 = vmatmul.mubr.f32.gmra.mxu0 %v2788
  %v2884 = vpop.f32.mrf.mxu0
  %v2885 = vadd.f32 0.0, %v2884
  %v2886 = vpop.f32.mrf.mxu0
  %2887 = vmatprep.mubr.f32.mxu0 0.0
  %2888 = vmatmul.mubr.f32.gmra.mxu0 %v2791
  %v2889 = vpop.f32.mrf.mxu0
  %v2890 = vadd.f32 0.0, %v2889
  %v2891 = vpop.f32.mrf.mxu0
  %2892 = vmatprep.mubr.f32.mxu0 0.0
  %2893 = vmatmul.mubr.f32.gmra.mxu0 %v2794
  %v2894 = vpop.f32.mrf.mxu0
  %v2895 = vadd.f32 0.0, %v2894
  %v2896 = vpop.f32.mrf.mxu0
  %2897 = vmatprep.mubr.f32.mxu0 0.0
  %2898 = vmatmul.mubr.f32.gmra.mxu0 %v2797
  %v2899 = vpop.f32.mrf.mxu0
  %v2900 = vadd.f32 0.0, %v2899
  %v2901 = vpop.f32.mrf.mxu0
  %2902 = vmatprep.mubr.f32.mxu0 0.0
  %2903 = vmatmul.mubr.f32.gmra.mxu0 %v2800
  %v2904 = vpop.f32.mrf.mxu0
  %v2905 = vadd.f32 0.0, %v2904
  %v2906 = vpop.f32.mrf.mxu0
  %2907 = vmatprep.mubr.f32.mxu0 0.0
  %2908 = vmatmul.mubr.f32.gmra.mxu0 %v2803
  %v2909 = vpop.f32.mrf.mxu0
  %v2910 = vadd.f32 0.0, %v2909
  %v2911 = vpop.f32.mrf.mxu0
  %2912 = vmatprep.mubr.f32.mxu0 0.0
  %2913 = vmatmul.mubr.f32.gmra.mxu0 %v2806
  %v2914 = vpop.f32.mrf.mxu0
  %v2915 = vadd.f32 0.0, %v2914
  %v2916 = vpop.f32.mrf.mxu0
  %2917 = vdwg.mxu0
  %v2918 = vadd.f32 %v2768, %v2875
  %v2919 = vadd.f32 %v2769, %v2880
  %v2920 = vadd.f32 %v2770, %v2885
  %v2921 = vadd.f32 %v2771, %v2890
  %v2922 = vadd.f32 %v2772, %v2895
  %v2923 = vadd.f32 %v2773, %v2900
  %v2924 = vadd.f32 %v2774, %v2905
  %v2925 = vadd.f32 %v2775, %v2910
  %v2926 = vadd.f32 %v2776, %v2915
  %v2927 = vld [vmem:[%s3 + $0x160] sm:$0xff]
  %v2928 = vld [vmem:[%s3 + $0x168] sm:$0xff]
  %v2929 = vld [vmem:[%s3 + $0x170] sm:$0xff]
  %v2930 = vld [vmem:[%s3 + $0x178] sm:$0xff]
  %v2932 = vsel %vm1302, %v1249, 0
  %v2935 = vsel %vm1302, %v1250, 0
  %v2938 = vsel %vm1302, %v1251, 0
  %v2941 = vsel %vm1302, %v1252, 0
  %v2944 = vsel %vm1302, %v1253, 0
  %v2947 = vsel %vm1302, %v1254, 0
  %v2950 = vsel %vm1302, %v1255, 0
  %v2953 = vsel %vm1302, %v1256, 0
  %v2956 = vsel %vm1302, %v1257, 0
  %2958 = vmatprep.subr.mxu0 0.0
  %2959 = vmatpush1.msra.mxu0 0.0
  %2960 = vmatprep.subr.mxu0 0.0
  %2961 = vmatpush1.msra.mxu0 0.0
  %2962 = vmatprep.subr.mxu0 0.0
  %2963 = vmatpush1.msra.mxu0 0.0
  %2964 = vmatprep.subr.mxu0 0.0
  %2965 = vmatpush1.msra.mxu0 0.0
  %2966 = vmatprep.subr.mxu0 0.0
  %2967 = vmatpush1.msra.mxu0 0.0
  %2968 = vmatprep.subr.mxu0 0.0
  %2969 = vmatpush1.msra.mxu0 0.0
  %2970 = vmatprep.subr.mxu0 0.0
  %2971 = vmatpush1.msra.mxu0 0.0
  %2972 = vmatprep.subr.mxu0 0.0
  %2973 = vmatpush1.msra.mxu0 0.0
  %2974 = vmatprep.subr.mxu0 0.0
  %2975 = vmatpush1.msra.mxu0 0.0
  %2976 = vmatprep.subr.mxu0 0.0
  %2977 = vmatpush1.msra.mxu0 0.0
  %2978 = vmatprep.subr.mxu0 0.0
  %2979 = vmatpush1.msra.mxu0 0.0
  %2980 = vmatprep.subr.mxu0 0.0
  %2981 = vmatpush1.msra.mxu0 0.0
  %2982 = vmatprep.subr.mxu0 0.0
  %2983 = vmatpush1.msra.mxu0 %v2930
  %2984 = vmatprep.subr.mxu0 0.0
  %2985 = vmatpush1.msra.mxu0 %v2929
  %2986 = vmatprep.subr.mxu0 0.0
  %2987 = vmatpush1.msra.mxu0 %v2928
  %2988 = vmatprep.subr.mxu0 0.0
  %2989 = vmatpush1.msra.mxu0 %v2927
  %2990 = vmatprep.subr.mxu0 0.0
  %2991 = vmatpush2.msra.mxu0 0.0
  %2992 = vmatprep.subr.mxu0 0.0
  %2993 = vmatpush2.msra.mxu0 0.0
  %2994 = vmatprep.subr.mxu0 0.0
  %2995 = vmatpush2.msra.mxu0 0.0
  %2996 = vmatprep.subr.mxu0 0.0
  %2997 = vmatpush2.msra.mxu0 0.0
  %2998 = vmatprep.subr.mxu0 0.0
  %2999 = vmatpush2.msra.mxu0 0.0
  %3000 = vmatprep.subr.mxu0 0.0
  %3001 = vmatpush2.msra.mxu0 0.0
  %3002 = vmatprep.subr.mxu0 0.0
  %3003 = vmatpush2.msra.mxu0 0.0
  %3004 = vmatprep.subr.mxu0 0.0
  %3005 = vmatpush2.msra.mxu0 0.0
  %3006 = vmatprep.subr.mxu0 0.0
  %3007 = vmatpush2.msra.mxu0 0.0
  %3008 = vmatprep.subr.mxu0 0.0
  %3009 = vmatpush2.msra.mxu0 0.0
  %3010 = vmatprep.subr.mxu0 0.0
  %3011 = vmatpush2.msra.mxu0 0.0
  %3012 = vmatprep.subr.mxu0 0.0
  %3013 = vmatpush2.msra.mxu0 0.0
  %3014 = vmatprep.subr.mxu0 0.0
  %3015 = vmatpush2.msra.mxu0 0.0
  %3016 = vmatprep.subr.mxu0 0.0
  %3017 = vmatpush2.msra.mxu0 0.0
  %3018 = vmatprep.subr.mxu0 0.0
  %3019 = vmatpush2.msra.mxu0 0.0
  %3020 = vmatprep.subr.mxu0 0.0
  %3021 = vmatpush2.msra.mxu0 0.0
  %3022 = vmatprep.mubr.f32.mxu0 0.0
  %3023 = vmatmul.mubr.f32.gmra.mxu0 %v2932
  %v3024 = vpop.f32.mrf.mxu0
  %v3025 = vadd.f32 0.0, %v3024
  %v3026 = vpop.f32.mrf.mxu0
  %3027 = vmatprep.mubr.f32.mxu0 0.0
  %3028 = vmatmul.mubr.f32.gmra.mxu0 %v2935
  %v3029 = vpop.f32.mrf.mxu0
  %v3030 = vadd.f32 0.0, %v3029
  %v3031 = vpop.f32.mrf.mxu0
  %3032 = vmatprep.mubr.f32.mxu0 0.0
  %3033 = vmatmul.mubr.f32.gmra.mxu0 %v2938
  %v3034 = vpop.f32.mrf.mxu0
  %v3035 = vadd.f32 0.0, %v3034
  %v3036 = vpop.f32.mrf.mxu0
  %3037 = vmatprep.mubr.f32.mxu0 0.0
  %3038 = vmatmul.mubr.f32.gmra.mxu0 %v2941
  %v3039 = vpop.f32.mrf.mxu0
  %v3040 = vadd.f32 0.0, %v3039
  %v3041 = vpop.f32.mrf.mxu0
  %3042 = vmatprep.mubr.f32.mxu0 0.0
  %3043 = vmatmul.mubr.f32.gmra.mxu0 %v2944
  %v3044 = vpop.f32.mrf.mxu0
  %v3045 = vadd.f32 0.0, %v3044
  %v3046 = vpop.f32.mrf.mxu0
  %3047 = vmatprep.mubr.f32.mxu0 0.0
  %3048 = vmatmul.mubr.f32.gmra.mxu0 %v2947
  %v3049 = vpop.f32.mrf.mxu0
  %v3050 = vadd.f32 0.0, %v3049
  %v3051 = vpop.f32.mrf.mxu0
  %3052 = vmatprep.mubr.f32.mxu0 0.0
  %3053 = vmatmul.mubr.f32.gmra.mxu0 %v2950
  %v3054 = vpop.f32.mrf.mxu0
  %v3055 = vadd.f32 0.0, %v3054
  %v3056 = vpop.f32.mrf.mxu0
  %3057 = vmatprep.mubr.f32.mxu0 0.0
  %3058 = vmatmul.mubr.f32.gmra.mxu0 %v2953
  %v3059 = vpop.f32.mrf.mxu0
  %v3060 = vadd.f32 0.0, %v3059
  %v3061 = vpop.f32.mrf.mxu0
  %3062 = vmatprep.mubr.f32.mxu0 0.0
  %3063 = vmatmul.mubr.f32.gmra.mxu0 %v2956
  %v3064 = vpop.f32.mrf.mxu0
  %v3065 = vadd.f32 0.0, %v3064
  %v3066 = vpop.f32.mrf.mxu0
  %3067 = vdwg.mxu0
  %v3068 = vadd.f32 %v2918, %v3025
  %v3069 = vadd.f32 %v2919, %v3030
  %v3070 = vadd.f32 %v2920, %v3035
  %v3071 = vadd.f32 %v2921, %v3040
  %v3072 = vadd.f32 %v2922, %v3045
  %v3073 = vadd.f32 %v2923, %v3050
  %v3074 = vadd.f32 %v2924, %v3055
  %v3075 = vadd.f32 %v2925, %v3060
  %v3076 = vadd.f32 %v2926, %v3065
  %v3077 = vld [vmem:[%s3 + $0x180] sm:$0xff]
  %v3078 = vld [vmem:[%s3 + $0x188] sm:$0xff]
  %v3079 = vld [vmem:[%s3 + $0x190] sm:$0xff]
  %v3080 = vld [vmem:[%s3 + $0x198] sm:$0xff]
  %v3082 = vsel %vm1302, %v1258, 0
  %v3085 = vsel %vm1302, %v1259, 0
  %v3088 = vsel %vm1302, %v1260, 0
  %v3091 = vsel %vm1302, %v1261, 0
  %v3094 = vsel %vm1302, %v1262, 0
  %v3097 = vsel %vm1302, %v1263, 0
  %v3100 = vsel %vm1302, %v1264, 0
  %v3103 = vsel %vm1302, %v1265, 0
  %v3106 = vsel %vm1302, %v1266, 0
  %3108 = vmatprep.subr.mxu0 0.0
  %3109 = vmatpush1.msra.mxu0 0.0
  %3110 = vmatprep.subr.mxu0 0.0
  %3111 = vmatpush1.msra.mxu0 0.0
  %3112 = vmatprep.subr.mxu0 0.0
  %3113 = vmatpush1.msra.mxu0 0.0
  %3114 = vmatprep.subr.mxu0 0.0
  %3115 = vmatpush1.msra.mxu0 0.0
  %3116 = vmatprep.subr.mxu0 0.0
  %3117 = vmatpush1.msra.mxu0 0.0
  %3118 = vmatprep.subr.mxu0 0.0
  %3119 = vmatpush1.msra.mxu0 0.0
  %3120 = vmatprep.subr.mxu0 0.0
  %3121 = vmatpush1.msra.mxu0 0.0
  %3122 = vmatprep.subr.mxu0 0.0
  %3123 = vmatpush1.msra.mxu0 0.0
  %3124 = vmatprep.subr.mxu0 0.0
  %3125 = vmatpush1.msra.mxu0 0.0
  %3126 = vmatprep.subr.mxu0 0.0
  %3127 = vmatpush1.msra.mxu0 0.0
  %3128 = vmatprep.subr.mxu0 0.0
  %3129 = vmatpush1.msra.mxu0 0.0
  %3130 = vmatprep.subr.mxu0 0.0
  %3131 = vmatpush1.msra.mxu0 0.0
  %3132 = vmatprep.subr.mxu0 0.0
  %3133 = vmatpush1.msra.mxu0 %v3080
  %3134 = vmatprep.subr.mxu0 0.0
  %3135 = vmatpush1.msra.mxu0 %v3079
  %3136 = vmatprep.subr.mxu0 0.0
  %3137 = vmatpush1.msra.mxu0 %v3078
  %3138 = vmatprep.subr.mxu0 0.0
  %3139 = vmatpush1.msra.mxu0 %v3077
  %3140 = vmatprep.subr.mxu0 0.0
  %3141 = vmatpush2.msra.mxu0 0.0
  %3142 = vmatprep.subr.mxu0 0.0
  %3143 = vmatpush2.msra.mxu0 0.0
  %3144 = vmatprep.subr.mxu0 0.0
  %3145 = vmatpush2.msra.mxu0 0.0
  %3146 = vmatprep.subr.mxu0 0.0
  %3147 = vmatpush2.msra.mxu0 0.0
  %3148 = vmatprep.subr.mxu0 0.0
  %3149 = vmatpush2.msra.mxu0 0.0
  %3150 = vmatprep.subr.mxu0 0.0
  %3151 = vmatpush2.msra.mxu0 0.0
  %3152 = vmatprep.subr.mxu0 0.0
  %3153 = vmatpush2.msra.mxu0 0.0
  %3154 = vmatprep.subr.mxu0 0.0
  %3155 = vmatpush2.msra.mxu0 0.0
  %3156 = vmatprep.subr.mxu0 0.0
  %3157 = vmatpush2.msra.mxu0 0.0
  %3158 = vmatprep.subr.mxu0 0.0
  %3159 = vmatpush2.msra.mxu0 0.0
  %3160 = vmatprep.subr.mxu0 0.0
  %3161 = vmatpush2.msra.mxu0 0.0
  %3162 = vmatprep.subr.mxu0 0.0
  %3163 = vmatpush2.msra.mxu0 0.0
  %3164 = vmatprep.subr.mxu0 0.0
  %3165 = vmatpush2.msra.mxu0 0.0
  %3166 = vmatprep.subr.mxu0 0.0
  %3167 = vmatpush2.msra.mxu0 0.0
  %3168 = vmatprep.subr.mxu0 0.0
  %3169 = vmatpush2.msra.mxu0 0.0
  %3170 = vmatprep.subr.mxu0 0.0
  %3171 = vmatpush2.msra.mxu0 0.0
  %3172 = vmatprep.mubr.f32.mxu0 0.0
  %3173 = vmatmul.mubr.f32.gmra.mxu0 %v3082
  %v3174 = vpop.f32.mrf.mxu0
  %v3175 = vadd.f32 0.0, %v3174
  %v3176 = vpop.f32.mrf.mxu0
  %3177 = vmatprep.mubr.f32.mxu0 0.0
  %3178 = vmatmul.mubr.f32.gmra.mxu0 %v3085
  %v3179 = vpop.f32.mrf.mxu0
  %v3180 = vadd.f32 0.0, %v3179
  %v3181 = vpop.f32.mrf.mxu0
  %3182 = vmatprep.mubr.f32.mxu0 0.0
  %3183 = vmatmul.mubr.f32.gmra.mxu0 %v3088
  %v3184 = vpop.f32.mrf.mxu0
  %v3185 = vadd.f32 0.0, %v3184
  %v3186 = vpop.f32.mrf.mxu0
  %3187 = vmatprep.mubr.f32.mxu0 0.0
  %3188 = vmatmul.mubr.f32.gmra.mxu0 %v3091
  %v3189 = vpop.f32.mrf.mxu0
  %v3190 = vadd.f32 0.0, %v3189
  %v3191 = vpop.f32.mrf.mxu0
  %3192 = vmatprep.mubr.f32.mxu0 0.0
  %3193 = vmatmul.mubr.f32.gmra.mxu0 %v3094
  %v3194 = vpop.f32.mrf.mxu0
  %v3195 = vadd.f32 0.0, %v3194
  %v3196 = vpop.f32.mrf.mxu0
  %3197 = vmatprep.mubr.f32.mxu0 0.0
  %3198 = vmatmul.mubr.f32.gmra.mxu0 %v3097
  %v3199 = vpop.f32.mrf.mxu0
  %v3200 = vadd.f32 0.0, %v3199
  %v3201 = vpop.f32.mrf.mxu0
  %3202 = vmatprep.mubr.f32.mxu0 0.0
  %3203 = vmatmul.mubr.f32.gmra.mxu0 %v3100
  %v3204 = vpop.f32.mrf.mxu0
  %v3205 = vadd.f32 0.0, %v3204
  %v3206 = vpop.f32.mrf.mxu0
  %3207 = vmatprep.mubr.f32.mxu0 0.0
  %3208 = vmatmul.mubr.f32.gmra.mxu0 %v3103
  %v3209 = vpop.f32.mrf.mxu0
  %v3210 = vadd.f32 0.0, %v3209
  %v3211 = vpop.f32.mrf.mxu0
  %3212 = vmatprep.mubr.f32.mxu0 0.0
  %3213 = vmatmul.mubr.f32.gmra.mxu0 %v3106
  %v3214 = vpop.f32.mrf.mxu0
  %v3215 = vadd.f32 0.0, %v3214
  %v3216 = vpop.f32.mrf.mxu0
  %3217 = vdwg.mxu0
  %v3218 = vadd.f32 %v3068, %v3175
  %v3219 = vadd.f32 %v3069, %v3180
  %v3220 = vadd.f32 %v3070, %v3185
  %v3221 = vadd.f32 %v3071, %v3190
  %v3222 = vadd.f32 %v3072, %v3195
  %v3223 = vadd.f32 %v3073, %v3200
  %v3224 = vadd.f32 %v3074, %v3205
  %v3225 = vadd.f32 %v3075, %v3210
  %v3226 = vadd.f32 %v3076, %v3215
  %v3227 = vld [vmem:[%s3 + $0x1a0] sm:$0xff]
  %v3228 = vld [vmem:[%s3 + $0x1a8] sm:$0xff]
  %v3229 = vld [vmem:[%s3 + $0x1b0] sm:$0xff]
  %v3230 = vld [vmem:[%s3 + $0x1b8] sm:$0xff]
  %v3232 = vsel %vm1302, %v1267, 0
  %v3235 = vsel %vm1302, %v1268, 0
  %v3238 = vsel %vm1302, %v1269, 0
  %v3241 = vsel %vm1302, %v1270, 0
  %v3244 = vsel %vm1302, %v1271, 0
  %v3247 = vsel %vm1302, %v1272, 0
  %v3250 = vsel %vm1302, %v1273, 0
  %v3253 = vsel %vm1302, %v1274, 0
  %v3256 = vsel %vm1302, %v1275, 0
  %3258 = vmatprep.subr.mxu0 0.0
  %3259 = vmatpush1.msra.mxu0 0.0
  %3260 = vmatprep.subr.mxu0 0.0
  %3261 = vmatpush1.msra.mxu0 0.0
  %3262 = vmatprep.subr.mxu0 0.0
  %3263 = vmatpush1.msra.mxu0 0.0
  %3264 = vmatprep.subr.mxu0 0.0
  %3265 = vmatpush1.msra.mxu0 0.0
  %3266 = vmatprep.subr.mxu0 0.0
  %3267 = vmatpush1.msra.mxu0 0.0
  %3268 = vmatprep.subr.mxu0 0.0
  %3269 = vmatpush1.msra.mxu0 0.0
  %3270 = vmatprep.subr.mxu0 0.0
  %3271 = vmatpush1.msra.mxu0 0.0
  %3272 = vmatprep.subr.mxu0 0.0
  %3273 = vmatpush1.msra.mxu0 0.0
  %3274 = vmatprep.subr.mxu0 0.0
  %3275 = vmatpush1.msra.mxu0 0.0
  %3276 = vmatprep.subr.mxu0 0.0
  %3277 = vmatpush1.msra.mxu0 0.0
  %3278 = vmatprep.subr.mxu0 0.0
  %3279 = vmatpush1.msra.mxu0 0.0
  %3280 = vmatprep.subr.mxu0 0.0
  %3281 = vmatpush1.msra.mxu0 0.0
  %3282 = vmatprep.subr.mxu0 0.0
  %3283 = vmatpush1.msra.mxu0 %v3230
  %3284 = vmatprep.subr.mxu0 0.0
  %3285 = vmatpush1.msra.mxu0 %v3229
  %3286 = vmatprep.subr.mxu0 0.0
  %3287 = vmatpush1.msra.mxu0 %v3228
  %3288 = vmatprep.subr.mxu0 0.0
  %3289 = vmatpush1.msra.mxu0 %v3227
  %3290 = vmatprep.subr.mxu0 0.0
  %3291 = vmatpush2.msra.mxu0 0.0
  %3292 = vmatprep.subr.mxu0 0.0
  %3293 = vmatpush2.msra.mxu0 0.0
  %3294 = vmatprep.subr.mxu0 0.0
  %3295 = vmatpush2.msra.mxu0 0.0
  %3296 = vmatprep.subr.mxu0 0.0
  %3297 = vmatpush2.msra.mxu0 0.0
  %3298 = vmatprep.subr.mxu0 0.0
  %3299 = vmatpush2.msra.mxu0 0.0
  %3300 = vmatprep.subr.mxu0 0.0
  %3301 = vmatpush2.msra.mxu0 0.0
  %3302 = vmatprep.subr.mxu0 0.0
  %3303 = vmatpush2.msra.mxu0 0.0
  %3304 = vmatprep.subr.mxu0 0.0
  %3305 = vmatpush2.msra.mxu0 0.0
  %3306 = vmatprep.subr.mxu0 0.0
  %3307 = vmatpush2.msra.mxu0 0.0
  %3308 = vmatprep.subr.mxu0 0.0
  %3309 = vmatpush2.msra.mxu0 0.0
  %3310 = vmatprep.subr.mxu0 0.0
  %3311 = vmatpush2.msra.mxu0 0.0
  %3312 = vmatprep.subr.mxu0 0.0
  %3313 = vmatpush2.msra.mxu0 0.0
  %3314 = vmatprep.subr.mxu0 0.0
  %3315 = vmatpush2.msra.mxu0 0.0
  %3316 = vmatprep.subr.mxu0 0.0
  %3317 = vmatpush2.msra.mxu0 0.0
  %3318 = vmatprep.subr.mxu0 0.0
  %3319 = vmatpush2.msra.mxu0 0.0
  %3320 = vmatprep.subr.mxu0 0.0
  %3321 = vmatpush2.msra.mxu0 0.0
  %3322 = vmatprep.mubr.f32.mxu0 0.0
  %3323 = vmatmul.mubr.f32.gmra.mxu0 %v3232
  %v3324 = vpop.f32.mrf.mxu0
  %v3325 = vadd.f32 0.0, %v3324
  %v3326 = vpop.f32.mrf.mxu0
  %3327 = vmatprep.mubr.f32.mxu0 0.0
  %3328 = vmatmul.mubr.f32.gmra.mxu0 %v3235
  %v3329 = vpop.f32.mrf.mxu0
  %v3330 = vadd.f32 0.0, %v3329
  %v3331 = vpop.f32.mrf.mxu0
  %3332 = vmatprep.mubr.f32.mxu0 0.0
  %3333 = vmatmul.mubr.f32.gmra.mxu0 %v3238
  %v3334 = vpop.f32.mrf.mxu0
  %v3335 = vadd.f32 0.0, %v3334
  %v3336 = vpop.f32.mrf.mxu0
  %3337 = vmatprep.mubr.f32.mxu0 0.0
  %3338 = vmatmul.mubr.f32.gmra.mxu0 %v3241
  %v3339 = vpop.f32.mrf.mxu0
  %v3340 = vadd.f32 0.0, %v3339
  %v3341 = vpop.f32.mrf.mxu0
  %3342 = vmatprep.mubr.f32.mxu0 0.0
  %3343 = vmatmul.mubr.f32.gmra.mxu0 %v3244
  %v3344 = vpop.f32.mrf.mxu0
  %v3345 = vadd.f32 0.0, %v3344
  %v3346 = vpop.f32.mrf.mxu0
  %3347 = vmatprep.mubr.f32.mxu0 0.0
  %3348 = vmatmul.mubr.f32.gmra.mxu0 %v3247
  %v3349 = vpop.f32.mrf.mxu0
  %v3350 = vadd.f32 0.0, %v3349
  %v3351 = vpop.f32.mrf.mxu0
  %3352 = vmatprep.mubr.f32.mxu0 0.0
  %3353 = vmatmul.mubr.f32.gmra.mxu0 %v3250
  %v3354 = vpop.f32.mrf.mxu0
  %v3355 = vadd.f32 0.0, %v3354
  %v3356 = vpop.f32.mrf.mxu0
  %3357 = vmatprep.mubr.f32.mxu0 0.0
  %3358 = vmatmul.mubr.f32.gmra.mxu0 %v3253
  %v3359 = vpop.f32.mrf.mxu0
  %v3360 = vadd.f32 0.0, %v3359
  %v3361 = vpop.f32.mrf.mxu0
  %3362 = vmatprep.mubr.f32.mxu0 0.0
  %3363 = vmatmul.mubr.f32.gmra.mxu0 %v3256
  %v3364 = vpop.f32.mrf.mxu0
  %v3365 = vadd.f32 0.0, %v3364
  %v3366 = vpop.f32.mrf.mxu0
  %3367 = vdwg.mxu0
  %v3368 = vadd.f32 %v3218, %v3325
  %v3369 = vadd.f32 %v3219, %v3330
  %v3370 = vadd.f32 %v3220, %v3335
  %v3371 = vadd.f32 %v3221, %v3340
  %v3372 = vadd.f32 %v3222, %v3345
  %v3373 = vadd.f32 %v3223, %v3350
  %v3374 = vadd.f32 %v3224, %v3355
  %v3375 = vadd.f32 %v3225, %v3360
  %v3376 = vadd.f32 %v3226, %v3365
  %v3377 = vld [vmem:[%s3 + $0x1c0] sm:$0xff]
  %v3378 = vld [vmem:[%s3 + $0x1c8] sm:$0xff]
  %v3379 = vld [vmem:[%s3 + $0x1d0] sm:$0xff]
  %v3380 = vld [vmem:[%s3 + $0x1d8] sm:$0xff]
  %v3382 = vsel %vm1302, %v1276, 0
  %v3385 = vsel %vm1302, %v1277, 0
  %v3388 = vsel %vm1302, %v1278, 0
  %v3391 = vsel %vm1302, %v1279, 0
  %v3394 = vsel %vm1302, %v1280, 0
  %v3397 = vsel %vm1302, %v1281, 0
  %v3400 = vsel %vm1302, %v1282, 0
  %v3403 = vsel %vm1302, %v1283, 0
  %v3406 = vsel %vm1302, %v1284, 0
  %3408 = vmatprep.subr.mxu0 0.0
  %3409 = vmatpush1.msra.mxu0 0.0
  %3410 = vmatprep.subr.mxu0 0.0
  %3411 = vmatpush1.msra.mxu0 0.0
  %3412 = vmatprep.subr.mxu0 0.0
  %3413 = vmatpush1.msra.mxu0 0.0
  %3414 = vmatprep.subr.mxu0 0.0
  %3415 = vmatpush1.msra.mxu0 0.0
  %3416 = vmatprep.subr.mxu0 0.0
  %3417 = vmatpush1.msra.mxu0 0.0
  %3418 = vmatprep.subr.mxu0 0.0
  %3419 = vmatpush1.msra.mxu0 0.0
  %3420 = vmatprep.subr.mxu0 0.0
  %3421 = vmatpush1.msra.mxu0 0.0
  %3422 = vmatprep.subr.mxu0 0.0
  %3423 = vmatpush1.msra.mxu0 0.0
  %3424 = vmatprep.subr.mxu0 0.0
  %3425 = vmatpush1.msra.mxu0 0.0
  %3426 = vmatprep.subr.mxu0 0.0
  %3427 = vmatpush1.msra.mxu0 0.0
  %3428 = vmatprep.subr.mxu0 0.0
  %3429 = vmatpush1.msra.mxu0 0.0
  %3430 = vmatprep.subr.mxu0 0.0
  %3431 = vmatpush1.msra.mxu0 0.0
  %3432 = vmatprep.subr.mxu0 0.0
  %3433 = vmatpush1.msra.mxu0 %v3380
  %3434 = vmatprep.subr.mxu0 0.0
  %3435 = vmatpush1.msra.mxu0 %v3379
  %3436 = vmatprep.subr.mxu0 0.0
  %3437 = vmatpush1.msra.mxu0 %v3378
  %3438 = vmatprep.subr.mxu0 0.0
  %3439 = vmatpush1.msra.mxu0 %v3377
  %3440 = vmatprep.subr.mxu0 0.0
  %3441 = vmatpush2.msra.mxu0 0.0
  %3442 = vmatprep.subr.mxu0 0.0
  %3443 = vmatpush2.msra.mxu0 0.0
  %3444 = vmatprep.subr.mxu0 0.0
  %3445 = vmatpush2.msra.mxu0 0.0
  %3446 = vmatprep.subr.mxu0 0.0
  %3447 = vmatpush2.msra.mxu0 0.0
  %3448 = vmatprep.subr.mxu0 0.0
  %3449 = vmatpush2.msra.mxu0 0.0
  %3450 = vmatprep.subr.mxu0 0.0
  %3451 = vmatpush2.msra.mxu0 0.0
  %3452 = vmatprep.subr.mxu0 0.0
  %3453 = vmatpush2.msra.mxu0 0.0
  %3454 = vmatprep.subr.mxu0 0.0
  %3455 = vmatpush2.msra.mxu0 0.0
  %3456 = vmatprep.subr.mxu0 0.0
  %3457 = vmatpush2.msra.mxu0 0.0
  %3458 = vmatprep.subr.mxu0 0.0
  %3459 = vmatpush2.msra.mxu0 0.0
  %3460 = vmatprep.subr.mxu0 0.0
  %3461 = vmatpush2.msra.mxu0 0.0
  %3462 = vmatprep.subr.mxu0 0.0
  %3463 = vmatpush2.msra.mxu0 0.0
  %3464 = vmatprep.subr.mxu0 0.0
  %3465 = vmatpush2.msra.mxu0 0.0
  %3466 = vmatprep.subr.mxu0 0.0
  %3467 = vmatpush2.msra.mxu0 0.0
  %3468 = vmatprep.subr.mxu0 0.0
  %3469 = vmatpush2.msra.mxu0 0.0
  %3470 = vmatprep.subr.mxu0 0.0
  %3471 = vmatpush2.msra.mxu0 0.0
  %3472 = vmatprep.mubr.f32.mxu0 0.0
  %3473 = vmatmul.mubr.f32.gmra.mxu0 %v3382
  %v3474 = vpop.f32.mrf.mxu0
  %v3475 = vadd.f32 0.0, %v3474
  %v3476 = vpop.f32.mrf.mxu0
  %3477 = vmatprep.mubr.f32.mxu0 0.0
  %3478 = vmatmul.mubr.f32.gmra.mxu0 %v3385
  %v3479 = vpop.f32.mrf.mxu0
  %v3480 = vadd.f32 0.0, %v3479
  %v3481 = vpop.f32.mrf.mxu0
  %3482 = vmatprep.mubr.f32.mxu0 0.0
  %3483 = vmatmul.mubr.f32.gmra.mxu0 %v3388
  %v3484 = vpop.f32.mrf.mxu0
  %v3485 = vadd.f32 0.0, %v3484
  %v3486 = vpop.f32.mrf.mxu0
  %3487 = vmatprep.mubr.f32.mxu0 0.0
  %3488 = vmatmul.mubr.f32.gmra.mxu0 %v3391
  %v3489 = vpop.f32.mrf.mxu0
  %v3490 = vadd.f32 0.0, %v3489
  %v3491 = vpop.f32.mrf.mxu0
  %3492 = vmatprep.mubr.f32.mxu0 0.0
  %3493 = vmatmul.mubr.f32.gmra.mxu0 %v3394
  %v3494 = vpop.f32.mrf.mxu0
  %v3495 = vadd.f32 0.0, %v3494
  %v3496 = vpop.f32.mrf.mxu0
  %3497 = vmatprep.mubr.f32.mxu0 0.0
  %3498 = vmatmul.mubr.f32.gmra.mxu0 %v3397
  %v3499 = vpop.f32.mrf.mxu0
  %v3500 = vadd.f32 0.0, %v3499
  %v3501 = vpop.f32.mrf.mxu0
  %3502 = vmatprep.mubr.f32.mxu0 0.0
  %3503 = vmatmul.mubr.f32.gmra.mxu0 %v3400
  %v3504 = vpop.f32.mrf.mxu0
  %v3505 = vadd.f32 0.0, %v3504
  %v3506 = vpop.f32.mrf.mxu0
  %3507 = vmatprep.mubr.f32.mxu0 0.0
  %3508 = vmatmul.mubr.f32.gmra.mxu0 %v3403
  %v3509 = vpop.f32.mrf.mxu0
  %v3510 = vadd.f32 0.0, %v3509
  %v3511 = vpop.f32.mrf.mxu0
  %3512 = vmatprep.mubr.f32.mxu0 0.0
  %3513 = vmatmul.mubr.f32.gmra.mxu0 %v3406
  %v3514 = vpop.f32.mrf.mxu0
  %v3515 = vadd.f32 0.0, %v3514
  %v3516 = vpop.f32.mrf.mxu0
  %3517 = vdwg.mxu0
  %v3518 = vadd.f32 %v3368, %v3475
  %v3519 = vadd.f32 %v3369, %v3480
  %v3520 = vadd.f32 %v3370, %v3485
  %v3521 = vadd.f32 %v3371, %v3490
  %v3522 = vadd.f32 %v3372, %v3495
  %v3523 = vadd.f32 %v3373, %v3500
  %v3524 = vadd.f32 %v3374, %v3505
  %v3525 = vadd.f32 %v3375, %v3510
  %v3526 = vadd.f32 %v3376, %v3515
  %v3527 = vld [vmem:[%s3 + $0x1e0] sm:$0xff]
  %v3528 = vld [vmem:[%s3 + $0x1e8] sm:$0xff]
  %v3529 = vld [vmem:[%s3 + $0x1f0] sm:$0xff]
  %v3530 = vld [vmem:[%s3 + $0x1f8] sm:$0xff]
  %v3532 = vsel %vm1302, %v1285, 0
  %v3535 = vsel %vm1302, %v1286, 0
  %v3538 = vsel %vm1302, %v1287, 0
  %v3541 = vsel %vm1302, %v1288, 0
  %v3544 = vsel %vm1302, %v1289, 0
  %v3547 = vsel %vm1302, %v1290, 0
  %v3550 = vsel %vm1302, %v1291, 0
  %v3553 = vsel %vm1302, %v1292, 0
  %v3556 = vsel %vm1302, %v1293, 0
  %3558 = vmatprep.subr.mxu0 0.0
  %3559 = vmatpush1.msra.mxu0 0.0
  %3560 = vmatprep.subr.mxu0 0.0
  %3561 = vmatpush1.msra.mxu0 0.0
  %3562 = vmatprep.subr.mxu0 0.0
  %3563 = vmatpush1.msra.mxu0 0.0
  %3564 = vmatprep.subr.mxu0 0.0
  %3565 = vmatpush1.msra.mxu0 0.0
  %3566 = vmatprep.subr.mxu0 0.0
  %3567 = vmatpush1.msra.mxu0 0.0
  %3568 = vmatprep.subr.mxu0 0.0
  %3569 = vmatpush1.msra.mxu0 0.0
  %3570 = vmatprep.subr.mxu0 0.0
  %3571 = vmatpush1.msra.mxu0 0.0
  %3572 = vmatprep.subr.mxu0 0.0
  %3573 = vmatpush1.msra.mxu0 0.0
  %3574 = vmatprep.subr.mxu0 0.0
  %3575 = vmatpush1.msra.mxu0 0.0
  %3576 = vmatprep.subr.mxu0 0.0
  %3577 = vmatpush1.msra.mxu0 0.0
  %3578 = vmatprep.subr.mxu0 0.0
  %3579 = vmatpush1.msra.mxu0 0.0
  %3580 = vmatprep.subr.mxu0 0.0
  %3581 = vmatpush1.msra.mxu0 0.0
  %3582 = vmatprep.subr.mxu0 0.0
  %3583 = vmatpush1.msra.mxu0 %v3530
  %3584 = vmatprep.subr.mxu0 0.0
  %3585 = vmatpush1.msra.mxu0 %v3529
  %3586 = vmatprep.subr.mxu0 0.0
  %3587 = vmatpush1.msra.mxu0 %v3528
  %3588 = vmatprep.subr.mxu0 0.0
  %3589 = vmatpush1.msra.mxu0 %v3527
  %3590 = vmatprep.subr.mxu0 0.0
  %3591 = vmatpush2.msra.mxu0 0.0
  %3592 = vmatprep.subr.mxu0 0.0
  %3593 = vmatpush2.msra.mxu0 0.0
  %3594 = vmatprep.subr.mxu0 0.0
  %3595 = vmatpush2.msra.mxu0 0.0
  %3596 = vmatprep.subr.mxu0 0.0
  %3597 = vmatpush2.msra.mxu0 0.0
  %3598 = vmatprep.subr.mxu0 0.0
  %3599 = vmatpush2.msra.mxu0 0.0
  %3600 = vmatprep.subr.mxu0 0.0
  %3601 = vmatpush2.msra.mxu0 0.0
  %3602 = vmatprep.subr.mxu0 0.0
  %3603 = vmatpush2.msra.mxu0 0.0
  %3604 = vmatprep.subr.mxu0 0.0
  %3605 = vmatpush2.msra.mxu0 0.0
  %3606 = vmatprep.subr.mxu0 0.0
  %3607 = vmatpush2.msra.mxu0 0.0
  %3608 = vmatprep.subr.mxu0 0.0
  %3609 = vmatpush2.msra.mxu0 0.0
  %3610 = vmatprep.subr.mxu0 0.0
  %3611 = vmatpush2.msra.mxu0 0.0
  %3612 = vmatprep.subr.mxu0 0.0
  %3613 = vmatpush2.msra.mxu0 0.0
  %3614 = vmatprep.subr.mxu0 0.0
  %3615 = vmatpush2.msra.mxu0 0.0
  %3616 = vmatprep.subr.mxu0 0.0
  %3617 = vmatpush2.msra.mxu0 0.0
  %3618 = vmatprep.subr.mxu0 0.0
  %3619 = vmatpush2.msra.mxu0 0.0
  %3620 = vmatprep.subr.mxu0 0.0
  %3621 = vmatpush2.msra.mxu0 0.0
  %3622 = vmatprep.mubr.f32.mxu0 0.0
  %3623 = vmatmul.mubr.f32.gmra.mxu0 %v3532
  %v3624 = vpop.f32.mrf.mxu0
  %v3625 = vadd.f32 0.0, %v3624
  %v3626 = vpop.f32.mrf.mxu0
  %3627 = vmatprep.mubr.f32.mxu0 0.0
  %3628 = vmatmul.mubr.f32.gmra.mxu0 %v3535
  %v3629 = vpop.f32.mrf.mxu0
  %v3630 = vadd.f32 0.0, %v3629
  %v3631 = vpop.f32.mrf.mxu0
  %3632 = vmatprep.mubr.f32.mxu0 0.0
  %3633 = vmatmul.mubr.f32.gmra.mxu0 %v3538
  %v3634 = vpop.f32.mrf.mxu0
  %v3635 = vadd.f32 0.0, %v3634
  %v3636 = vpop.f32.mrf.mxu0
  %3637 = vmatprep.mubr.f32.mxu0 0.0
  %3638 = vmatmul.mubr.f32.gmra.mxu0 %v3541
  %v3639 = vpop.f32.mrf.mxu0
  %v3640 = vadd.f32 0.0, %v3639
  %v3641 = vpop.f32.mrf.mxu0
  %3642 = vmatprep.mubr.f32.mxu0 0.0
  %3643 = vmatmul.mubr.f32.gmra.mxu0 %v3544
  %v3644 = vpop.f32.mrf.mxu0
  %v3645 = vadd.f32 0.0, %v3644
  %v3646 = vpop.f32.mrf.mxu0
  %3647 = vmatprep.mubr.f32.mxu0 0.0
  %3648 = vmatmul.mubr.f32.gmra.mxu0 %v3547
  %v3649 = vpop.f32.mrf.mxu0
  %v3650 = vadd.f32 0.0, %v3649
  %v3651 = vpop.f32.mrf.mxu0
  %3652 = vmatprep.mubr.f32.mxu0 0.0
  %3653 = vmatmul.mubr.f32.gmra.mxu0 %v3550
  %v3654 = vpop.f32.mrf.mxu0
  %v3655 = vadd.f32 0.0, %v3654
  %v3656 = vpop.f32.mrf.mxu0
  %3657 = vmatprep.mubr.f32.mxu0 0.0
  %3658 = vmatmul.mubr.f32.gmra.mxu0 %v3553
  %v3659 = vpop.f32.mrf.mxu0
  %v3660 = vadd.f32 0.0, %v3659
  %v3661 = vpop.f32.mrf.mxu0
  %3662 = vmatprep.mubr.f32.mxu0 0.0
  %3663 = vmatmul.mubr.f32.gmra.mxu0 %v3556
  %v3664 = vpop.f32.mrf.mxu0
  %v3665 = vadd.f32 0.0, %v3664
  %v3666 = vpop.f32.mrf.mxu0
  %3667 = vdwg.mxu0
  %v3668 = vadd.f32 %v3518, %v3625
  %v3669 = vadd.f32 %v3519, %v3630
  %v3670 = vadd.f32 %v3520, %v3635
  %v3671 = vadd.f32 %v3521, %v3640
  %v3672 = vadd.f32 %v3522, %v3645
  %v3673 = vadd.f32 %v3523, %v3650
  %v3674 = vadd.f32 %v3524, %v3655
  %v3675 = vadd.f32 %v3525, %v3660
  %v3676 = vadd.f32 %v3526, %v3665
  %v3677 = vld [vmem:[%s4] sm:$0x1]
  %v3679 = vlaneseq
  %v3680 = vshrl.u32 %v3679, 7
  %v3681 = vsub.s32 0, %v3680
  %v3682 = vrot.slane %v3677, %v3681
  %v3684 = vadd.f32 %v3668, %v3682
  %v3685 = vadd.f32 %v3669, %v3682
  %v3686 = vadd.f32 %v3670, %v3682
  %v3687 = vadd.f32 %v3671, %v3682
  %v3688 = vadd.f32 %v3672, %v3682
  %v3689 = vadd.f32 %v3673, %v3682
  %v3690 = vadd.f32 %v3674, %v3682
  %v3691 = vadd.f32 %v3675, %v3682
  %v3692 = vadd.f32 %v3676, %v3682
  %v3693 = vmax.f32 %v3684, 0.0
  %v3694 = vmax.f32 %v3685, 0.0
  %v3695 = vmax.f32 %v3686, 0.0
  %v3696 = vmax.f32 %v3687, 0.0
  %v3697 = vmax.f32 %v3688, 0.0
  %v3698 = vmax.f32 %v3689, 0.0
  %v3699 = vmax.f32 %v3690, 0.0
  %v3700 = vmax.f32 %v3691, 0.0
  %v3701 = vmax.f32 %v3692, 0.0
  %v3702 = vld [vmem:[%s5] sm:$0xff]
  %v3703 = vld [vmem:[%s5 + $0x8] sm:$0xff]
  %v3704 = vld [vmem:[%s5 + $0x10] sm:$0xff]
  %v3705 = vld [vmem:[%s5 + $0x18] sm:$0xff]
  %v3706 = vld [vmem:[%s5 + $0x20] sm:$0xff]
  %v3707 = vld [vmem:[%s5 + $0x28] sm:$0xff]
  %v3708 = vld [vmem:[%s5 + $0x30] sm:$0xff]
  %v3709 = vld [vmem:[%s5 + $0x38] sm:$0xff]
  %v3710 = vld [vmem:[%s5 + $0x40] sm:$0xff]
  %v3711 = vld [vmem:[%s5 + $0x48] sm:$0xff]
  %v3712 = vld [vmem:[%s5 + $0x50] sm:$0xff]
  %v3713 = vld [vmem:[%s5 + $0x58] sm:$0xff]
  %v3714 = vld [vmem:[%s5 + $0x60] sm:$0xff]
  %v3715 = vld [vmem:[%s5 + $0x68] sm:$0xff]
  %v3716 = vld [vmem:[%s5 + $0x70] sm:$0xff]
  %v3717 = vld [vmem:[%s5 + $0x78] sm:$0xff]
  %vm3718 = vcmask 523264
  %v3720 = vsel %vm3718, %v3694, 0
  %3722 = vmatprep.subr.mxu0 0.0
  %3723 = vmatpush1.msra.mxu0 0.0
  %3724 = vmatprep.subr.mxu0 0.0
  %3725 = vmatpush1.msra.mxu0 0.0
  %3726 = vmatprep.subr.mxu0 0.0
  %3727 = vmatpush1.msra.mxu0 0.0
  %3728 = vmatprep.subr.mxu0 0.0
  %3729 = vmatpush1.msra.mxu0 0.0
  %3730 = vmatprep.subr.mxu0 0.0
  %3731 = vmatpush1.msra.mxu0 0.0
  %3732 = vmatprep.subr.mxu0 0.0
  %3733 = vmatpush1.msra.mxu0 0.0
  %3734 = vmatprep.subr.mxu0 0.0
  %3735 = vmatpush1.msra.mxu0 0.0
  %3736 = vmatprep.subr.mxu0 0.0
  %3737 = vmatpush1.msra.mxu0 0.0
  %3738 = vmatprep.subr.mxu0 0.0
  %3739 = vmatpush1.msra.mxu0 %v3717
  %3740 = vmatprep.subr.mxu0 0.0
  %3741 = vmatpush1.msra.mxu0 %v3716
  %3742 = vmatprep.subr.mxu0 0.0
  %3743 = vmatpush1.msra.mxu0 %v3715
  %3744 = vmatprep.subr.mxu0 0.0
  %3745 = vmatpush1.msra.mxu0 %v3714
  %3746 = vmatprep.subr.mxu0 0.0
  %3747 = vmatpush1.msra.mxu0 %v3713
  %3748 = vmatprep.subr.mxu0 0.0
  %3749 = vmatpush1.msra.mxu0 %v3712
  %3750 = vmatprep.subr.mxu0 0.0
  %3751 = vmatpush1.msra.mxu0 %v3711
  %3752 = vmatprep.subr.mxu0 0.0
  %3753 = vmatpush1.msra.mxu0 %v3710
  %3754 = vmatprep.subr.mxu0 0.0
  %3755 = vmatpush2.msra.mxu0 0.0
  %3756 = vmatprep.subr.mxu0 0.0
  %3757 = vmatpush2.msra.mxu0 0.0
  %3758 = vmatprep.subr.mxu0 0.0
  %3759 = vmatpush2.msra.mxu0 0.0
  %3760 = vmatprep.subr.mxu0 0.0
  %3761 = vmatpush2.msra.mxu0 0.0
  %3762 = vmatprep.subr.mxu0 0.0
  %3763 = vmatpush2.msra.mxu0 0.0
  %3764 = vmatprep.subr.mxu0 0.0
  %3765 = vmatpush2.msra.mxu0 0.0
  %3766 = vmatprep.subr.mxu0 0.0
  %3767 = vmatpush2.msra.mxu0 0.0
  %3768 = vmatprep.subr.mxu0 0.0
  %3769 = vmatpush2.msra.mxu0 0.0
  %3770 = vmatprep.subr.mxu0 0.0
  %3771 = vmatpush2.msra.mxu0 0.0
  %3772 = vmatprep.subr.mxu0 0.0
  %3773 = vmatpush2.msra.mxu0 0.0
  %3774 = vmatprep.subr.mxu0 0.0
  %3775 = vmatpush2.msra.mxu0 0.0
  %3776 = vmatprep.subr.mxu0 0.0
  %3777 = vmatpush2.msra.mxu0 0.0
  %3778 = vmatprep.subr.mxu0 0.0
  %3779 = vmatpush2.msra.mxu0 0.0
  %3780 = vmatprep.subr.mxu0 0.0
  %3781 = vmatpush2.msra.mxu0 0.0
  %3782 = vmatprep.subr.mxu0 0.0
  %3783 = vmatpush2.msra.mxu0 0.0
  %3784 = vmatprep.subr.mxu0 0.0
  %3785 = vmatpush2.msra.mxu0 0.0
  %3786 = vmatprep.mubr.f32.mxu0 0.0
  %3787 = vmatmul.mubr.f32.gmra.mxu0 %v3720
  %v3788 = vpop.f32.mrf.mxu0
  %v3789 = vadd.f32 0.0, %v3788
  %v3790 = vpop.f32.mrf.mxu0
  %3791 = vdwg.mxu0
  %v3793 = vsel %vm3718, %v3693, 0
  %3795 = vmatprep.subr.mxu0 0.0
  %3796 = vmatpush1.msra.mxu0 0.0
  %3797 = vmatprep.subr.mxu0 0.0
  %3798 = vmatpush1.msra.mxu0 0.0
  %3799 = vmatprep.subr.mxu0 0.0
  %3800 = vmatpush1.msra.mxu0 0.0
  %3801 = vmatprep.subr.mxu0 0.0
  %3802 = vmatpush1.msra.mxu0 0.0
  %3803 = vmatprep.subr.mxu0 0.0
  %3804 = vmatpush1.msra.mxu0 0.0
  %3805 = vmatprep.subr.mxu0 0.0
  %3806 = vmatpush1.msra.mxu0 0.0
  %3807 = vmatprep.subr.mxu0 0.0
  %3808 = vmatpush1.msra.mxu0 0.0
  %3809 = vmatprep.subr.mxu0 0.0
  %3810 = vmatpush1.msra.mxu0 0.0
  %3811 = vmatprep.subr.mxu0 0.0
  %3812 = vmatpush1.msra.mxu0 %v3709
  %3813 = vmatprep.subr.mxu0 0.0
  %3814 = vmatpush1.msra.mxu0 %v3708
  %3815 = vmatprep.subr.mxu0 0.0
  %3816 = vmatpush1.msra.mxu0 %v3707
  %3817 = vmatprep.subr.mxu0 0.0
  %3818 = vmatpush1.msra.mxu0 %v3706
  %3819 = vmatprep.subr.mxu0 0.0
  %3820 = vmatpush1.msra.mxu0 %v3705
  %3821 = vmatprep.subr.mxu0 0.0
  %3822 = vmatpush1.msra.mxu0 %v3704
  %3823 = vmatprep.subr.mxu0 0.0
  %3824 = vmatpush1.msra.mxu0 %v3703
  %3825 = vmatprep.subr.mxu0 0.0
  %3826 = vmatpush1.msra.mxu0 %v3702
  %3827 = vmatprep.subr.mxu0 0.0
  %3828 = vmatpush2.msra.mxu0 0.0
  %3829 = vmatprep.subr.mxu0 0.0
  %3830 = vmatpush2.msra.mxu0 0.0
  %3831 = vmatprep.subr.mxu0 0.0
  %3832 = vmatpush2.msra.mxu0 0.0
  %3833 = vmatprep.subr.mxu0 0.0
  %3834 = vmatpush2.msra.mxu0 0.0
  %3835 = vmatprep.subr.mxu0 0.0
  %3836 = vmatpush2.msra.mxu0 0.0
  %3837 = vmatprep.subr.mxu0 0.0
  %3838 = vmatpush2.msra.mxu0 0.0
  %3839 = vmatprep.subr.mxu0 0.0
  %3840 = vmatpush2.msra.mxu0 0.0
  %3841 = vmatprep.subr.mxu0 0.0
  %3842 = vmatpush2.msra.mxu0 0.0
  %3843 = vmatprep.subr.mxu0 0.0
  %3844 = vmatpush2.msra.mxu0 0.0
  %3845 = vmatprep.subr.mxu0 0.0
  %3846 = vmatpush2.msra.mxu0 0.0
  %3847 = vmatprep.subr.mxu0 0.0
  %3848 = vmatpush2.msra.mxu0 0.0
  %3849 = vmatprep.subr.mxu0 0.0
  %3850 = vmatpush2.msra.mxu0 0.0
  %3851 = vmatprep.subr.mxu0 0.0
  %3852 = vmatpush2.msra.mxu0 0.0
  %3853 = vmatprep.subr.mxu0 0.0
  %3854 = vmatpush2.msra.mxu0 0.0
  %3855 = vmatprep.subr.mxu0 0.0
  %3856 = vmatpush2.msra.mxu0 0.0
  %3857 = vmatprep.subr.mxu0 0.0
  %3858 = vmatpush2.msra.mxu0 0.0
  %3859 = vmatprep.mubr.f32.mxu0 0.0
  %3860 = vmatmul.mubr.f32.gmra.mxu0 %v3793
  %v3861 = vpop.f32.mrf.mxu0
  %v3862 = vadd.f32 %v3789, %v3861
  %v3863 = vpop.f32.mrf.mxu0
  %3864 = vdwg.mxu0
  %v3865 = vld [vmem:[%s5 + $0x80] sm:$0xff]
  %v3866 = vld [vmem:[%s5 + $0x88] sm:$0xff]
  %v3867 = vld [vmem:[%s5 + $0x90] sm:$0xff]
  %v3868 = vld [vmem:[%s5 + $0x98] sm:$0xff]
  %v3869 = vld [vmem:[%s5 + $0xa0] sm:$0xff]
  %v3870 = vld [vmem:[%s5 + $0xa8] sm:$0xff]
  %v3871 = vld [vmem:[%s5 + $0xb0] sm:$0xff]
  %v3872 = vld [vmem:[%s5 + $0xb8] sm:$0xff]
  %v3874 = vsel %vm3718, %v3695, 0
  %3876 = vmatprep.subr.mxu0 0.0
  %3877 = vmatpush1.msra.mxu0 0.0
  %3878 = vmatprep.subr.mxu0 0.0
  %3879 = vmatpush1.msra.mxu0 0.0
  %3880 = vmatprep.subr.mxu0 0.0
  %3881 = vmatpush1.msra.mxu0 0.0
  %3882 = vmatprep.subr.mxu0 0.0
  %3883 = vmatpush1.msra.mxu0 0.0
  %3884 = vmatprep.subr.mxu0 0.0
  %3885 = vmatpush1.msra.mxu0 0.0
  %3886 = vmatprep.subr.mxu0 0.0
  %3887 = vmatpush1.msra.mxu0 0.0
  %3888 = vmatprep.subr.mxu0 0.0
  %3889 = vmatpush1.msra.mxu0 0.0
  %3890 = vmatprep.subr.mxu0 0.0
  %3891 = vmatpush1.msra.mxu0 0.0
  %3892 = vmatprep.subr.mxu0 0.0
  %3893 = vmatpush1.msra.mxu0 %v3872
  %3894 = vmatprep.subr.mxu0 0.0
  %3895 = vmatpush1.msra.mxu0 %v3871
  %3896 = vmatprep.subr.mxu0 0.0
  %3897 = vmatpush1.msra.mxu0 %v3870
  %3898 = vmatprep.subr.mxu0 0.0
  %3899 = vmatpush1.msra.mxu0 %v3869
  %3900 = vmatprep.subr.mxu0 0.0
  %3901 = vmatpush1.msra.mxu0 %v3868
  %3902 = vmatprep.subr.mxu0 0.0
  %3903 = vmatpush1.msra.mxu0 %v3867
  %3904 = vmatprep.subr.mxu0 0.0
  %3905 = vmatpush1.msra.mxu0 %v3866
  %3906 = vmatprep.subr.mxu0 0.0
  %3907 = vmatpush1.msra.mxu0 %v3865
  %3908 = vmatprep.subr.mxu0 0.0
  %3909 = vmatpush2.msra.mxu0 0.0
  %3910 = vmatprep.subr.mxu0 0.0
  %3911 = vmatpush2.msra.mxu0 0.0
  %3912 = vmatprep.subr.mxu0 0.0
  %3913 = vmatpush2.msra.mxu0 0.0
  %3914 = vmatprep.subr.mxu0 0.0
  %3915 = vmatpush2.msra.mxu0 0.0
  %3916 = vmatprep.subr.mxu0 0.0
  %3917 = vmatpush2.msra.mxu0 0.0
  %3918 = vmatprep.subr.mxu0 0.0
  %3919 = vmatpush2.msra.mxu0 0.0
  %3920 = vmatprep.subr.mxu0 0.0
  %3921 = vmatpush2.msra.mxu0 0.0
  %3922 = vmatprep.subr.mxu0 0.0
  %3923 = vmatpush2.msra.mxu0 0.0
  %3924 = vmatprep.subr.mxu0 0.0
  %3925 = vmatpush2.msra.mxu0 0.0
  %3926 = vmatprep.subr.mxu0 0.0
  %3927 = vmatpush2.msra.mxu0 0.0
  %3928 = vmatprep.subr.mxu0 0.0
  %3929 = vmatpush2.msra.mxu0 0.0
  %3930 = vmatprep.subr.mxu0 0.0
  %3931 = vmatpush2.msra.mxu0 0.0
  %3932 = vmatprep.subr.mxu0 0.0
  %3933 = vmatpush2.msra.mxu0 0.0
  %3934 = vmatprep.subr.mxu0 0.0
  %3935 = vmatpush2.msra.mxu0 0.0
  %3936 = vmatprep.subr.mxu0 0.0
  %3937 = vmatpush2.msra.mxu0 0.0
  %3938 = vmatprep.subr.mxu0 0.0
  %3939 = vmatpush2.msra.mxu0 0.0
  %3940 = vmatprep.mubr.f32.mxu0 0.0
  %3941 = vmatmul.mubr.f32.gmra.mxu0 %v3874
  %v3942 = vpop.f32.mrf.mxu0
  %v3943 = vadd.f32 0.0, %v3942
  %v3944 = vpop.f32.mrf.mxu0
  %3945 = vdwg.mxu0
  %v3946 = vadd.f32 %v3862, %v3943
  %v3947 = vld [vmem:[%s5 + $0xc0] sm:$0xff]
  %v3948 = vld [vmem:[%s5 + $0xc8] sm:$0xff]
  %v3949 = vld [vmem:[%s5 + $0xd0] sm:$0xff]
  %v3950 = vld [vmem:[%s5 + $0xd8] sm:$0xff]
  %v3951 = vld [vmem:[%s5 + $0xe0] sm:$0xff]
  %v3952 = vld [vmem:[%s5 + $0xe8] sm:$0xff]
  %v3953 = vld [vmem:[%s5 + $0xf0] sm:$0xff]
  %v3954 = vld [vmem:[%s5 + $0xf8] sm:$0xff]
  %v3956 = vsel %vm3718, %v3696, 0
  %3958 = vmatprep.subr.mxu0 0.0
  %3959 = vmatpush1.msra.mxu0 0.0
  %3960 = vmatprep.subr.mxu0 0.0
  %3961 = vmatpush1.msra.mxu0 0.0
  %3962 = vmatprep.subr.mxu0 0.0
  %3963 = vmatpush1.msra.mxu0 0.0
  %3964 = vmatprep.subr.mxu0 0.0
  %3965 = vmatpush1.msra.mxu0 0.0
  %3966 = vmatprep.subr.mxu0 0.0
  %3967 = vmatpush1.msra.mxu0 0.0
  %3968 = vmatprep.subr.mxu0 0.0
  %3969 = vmatpush1.msra.mxu0 0.0
  %3970 = vmatprep.subr.mxu0 0.0
  %3971 = vmatpush1.msra.mxu0 0.0
  %3972 = vmatprep.subr.mxu0 0.0
  %3973 = vmatpush1.msra.mxu0 0.0
  %3974 = vmatprep.subr.mxu0 0.0
  %3975 = vmatpush1.msra.mxu0 %v3954
  %3976 = vmatprep.subr.mxu0 0.0
  %3977 = vmatpush1.msra.mxu0 %v3953
  %3978 = vmatprep.subr.mxu0 0.0
  %3979 = vmatpush1.msra.mxu0 %v3952
  %3980 = vmatprep.subr.mxu0 0.0
  %3981 = vmatpush1.msra.mxu0 %v3951
  %3982 = vmatprep.subr.mxu0 0.0
  %3983 = vmatpush1.msra.mxu0 %v3950
  %3984 = vmatprep.subr.mxu0 0.0
  %3985 = vmatpush1.msra.mxu0 %v3949
  %3986 = vmatprep.subr.mxu0 0.0
  %3987 = vmatpush1.msra.mxu0 %v3948
  %3988 = vmatprep.subr.mxu0 0.0
  %3989 = vmatpush1.msra.mxu0 %v3947
  %3990 = vmatprep.subr.mxu0 0.0
  %3991 = vmatpush2.msra.mxu0 0.0
  %3992 = vmatprep.subr.mxu0 0.0
  %3993 = vmatpush2.msra.mxu0 0.0
  %3994 = vmatprep.subr.mxu0 0.0
  %3995 = vmatpush2.msra.mxu0 0.0
  %3996 = vmatprep.subr.mxu0 0.0
  %3997 = vmatpush2.msra.mxu0 0.0
  %3998 = vmatprep.subr.mxu0 0.0
  %3999 = vmatpush2.msra.mxu0 0.0
  %4000 = vmatprep.subr.mxu0 0.0
  %4001 = vmatpush2.msra.mxu0 0.0
  %4002 = vmatprep.subr.mxu0 0.0
  %4003 = vmatpush2.msra.mxu0 0.0
  %4004 = vmatprep.subr.mxu0 0.0
  %4005 = vmatpush2.msra.mxu0 0.0
  %4006 = vmatprep.subr.mxu0 0.0
  %4007 = vmatpush2.msra.mxu0 0.0
  %4008 = vmatprep.subr.mxu0 0.0
  %4009 = vmatpush2.msra.mxu0 0.0
  %4010 = vmatprep.subr.mxu0 0.0
  %4011 = vmatpush2.msra.mxu0 0.0
  %4012 = vmatprep.subr.mxu0 0.0
  %4013 = vmatpush2.msra.mxu0 0.0
  %4014 = vmatprep.subr.mxu0 0.0
  %4015 = vmatpush2.msra.mxu0 0.0
  %4016 = vmatprep.subr.mxu0 0.0
  %4017 = vmatpush2.msra.mxu0 0.0
  %4018 = vmatprep.subr.mxu0 0.0
  %4019 = vmatpush2.msra.mxu0 0.0
  %4020 = vmatprep.subr.mxu0 0.0
  %4021 = vmatpush2.msra.mxu0 0.0
  %4022 = vmatprep.mubr.f32.mxu0 0.0
  %4023 = vmatmul.mubr.f32.gmra.mxu0 %v3956
  %v4024 = vpop.f32.mrf.mxu0
  %v4025 = vadd.f32 0.0, %v4024
  %v4026 = vpop.f32.mrf.mxu0
  %4027 = vdwg.mxu0
  %v4028 = vadd.f32 %v3946, %v4025
  %v4029 = vld [vmem:[%s5 + $0x100] sm:$0xff]
  %v4030 = vld [vmem:[%s5 + $0x108] sm:$0xff]
  %v4031 = vld [vmem:[%s5 + $0x110] sm:$0xff]
  %v4032 = vld [vmem:[%s5 + $0x118] sm:$0xff]
  %v4033 = vld [vmem:[%s5 + $0x120] sm:$0xff]
  %v4034 = vld [vmem:[%s5 + $0x128] sm:$0xff]
  %v4035 = vld [vmem:[%s5 + $0x130] sm:$0xff]
  %v4036 = vld [vmem:[%s5 + $0x138] sm:$0xff]
  %v4038 = vsel %vm3718, %v3697, 0
  %4040 = vmatprep.subr.mxu0 0.0
  %4041 = vmatpush1.msra.mxu0 0.0
  %4042 = vmatprep.subr.mxu0 0.0
  %4043 = vmatpush1.msra.mxu0 0.0
  %4044 = vmatprep.subr.mxu0 0.0
  %4045 = vmatpush1.msra.mxu0 0.0
  %4046 = vmatprep.subr.mxu0 0.0
  %4047 = vmatpush1.msra.mxu0 0.0
  %4048 = vmatprep.subr.mxu0 0.0
  %4049 = vmatpush1.msra.mxu0 0.0
  %4050 = vmatprep.subr.mxu0 0.0
  %4051 = vmatpush1.msra.mxu0 0.0
  %4052 = vmatprep.subr.mxu0 0.0
  %4053 = vmatpush1.msra.mxu0 0.0
  %4054 = vmatprep.subr.mxu0 0.0
  %4055 = vmatpush1.msra.mxu0 0.0
  %4056 = vmatprep.subr.mxu0 0.0
  %4057 = vmatpush1.msra.mxu0 %v4036
  %4058 = vmatprep.subr.mxu0 0.0
  %4059 = vmatpush1.msra.mxu0 %v4035
  %4060 = vmatprep.subr.mxu0 0.0
  %4061 = vmatpush1.msra.mxu0 %v4034
  %4062 = vmatprep.subr.mxu0 0.0
  %4063 = vmatpush1.msra.mxu0 %v4033
  %4064 = vmatprep.subr.mxu0 0.0
  %4065 = vmatpush1.msra.mxu0 %v4032
  %4066 = vmatprep.subr.mxu0 0.0
  %4067 = vmatpush1.msra.mxu0 %v4031
  %4068 = vmatprep.subr.mxu0 0.0
  %4069 = vmatpush1.msra.mxu0 %v4030
  %4070 = vmatprep.subr.mxu0 0.0
  %4071 = vmatpush1.msra.mxu0 %v4029
  %4072 = vmatprep.subr.mxu0 0.0
  %4073 = vmatpush2.msra.mxu0 0.0
  %4074 = vmatprep.subr.mxu0 0.0
  %4075 = vmatpush2.msra.mxu0 0.0
  %4076 = vmatprep.subr.mxu0 0.0
  %4077 = vmatpush2.msra.mxu0 0.0
  %4078 = vmatprep.subr.mxu0 0.0
  %4079 = vmatpush2.msra.mxu0 0.0
  %4080 = vmatprep.subr.mxu0 0.0
  %4081 = vmatpush2.msra.mxu0 0.0
  %4082 = vmatprep.subr.mxu0 0.0
  %4083 = vmatpush2.msra.mxu0 0.0
  %4084 = vmatprep.subr.mxu0 0.0
  %4085 = vmatpush2.msra.mxu0 0.0
  %4086 = vmatprep.subr.mxu0 0.0
  %4087 = vmatpush2.msra.mxu0 0.0
  %4088 = vmatprep.subr.mxu0 0.0
  %4089 = vmatpush2.msra.mxu0 0.0
  %4090 = vmatprep.subr.mxu0 0.0
  %4091 = vmatpush2.msra.mxu0 0.0
  %4092 = vmatprep.subr.mxu0 0.0
  %4093 = vmatpush2.msra.mxu0 0.0
  %4094 = vmatprep.subr.mxu0 0.0
  %4095 = vmatpush2.msra.mxu0 0.0
  %4096 = vmatprep.subr.mxu0 0.0
  %4097 = vmatpush2.msra.mxu0 0.0
  %4098 = vmatprep.subr.mxu0 0.0
  %4099 = vmatpush2.msra.mxu0 0.0
  %4100 = vmatprep.subr.mxu0 0.0
  %4101 = vmatpush2.msra.mxu0 0.0
  %4102 = vmatprep.subr.mxu0 0.0
  %4103 = vmatpush2.msra.mxu0 0.0
  %4104 = vmatprep.mubr.f32.mxu0 0.0
  %4105 = vmatmul.mubr.f32.gmra.mxu0 %v4038
  %v4106 = vpop.f32.mrf.mxu0
  %v4107 = vadd.f32 0.0, %v4106
  %v4108 = vpop.f32.mrf.mxu0
  %4109 = vdwg.mxu0
  %v4110 = vadd.f32 %v4028, %v4107
  %v4111 = vld [vmem:[%s5 + $0x140] sm:$0xff]
  %v4112 = vld [vmem:[%s5 + $0x148] sm:$0xff]
  %v4113 = vld [vmem:[%s5 + $0x150] sm:$0xff]
  %v4114 = vld [vmem:[%s5 + $0x158] sm:$0xff]
  %v4115 = vld [vmem:[%s5 + $0x160] sm:$0xff]
  %v4116 = vld [vmem:[%s5 + $0x168] sm:$0xff]
  %v4117 = vld [vmem:[%s5 + $0x170] sm:$0xff]
  %v4118 = vld [vmem:[%s5 + $0x178] sm:$0xff]
  %v4120 = vsel %vm3718, %v3698, 0
  %4122 = vmatprep.subr.mxu0 0.0
  %4123 = vmatpush1.msra.mxu0 0.0
  %4124 = vmatprep.subr.mxu0 0.0
  %4125 = vmatpush1.msra.mxu0 0.0
  %4126 = vmatprep.subr.mxu0 0.0
  %4127 = vmatpush1.msra.mxu0 0.0
  %4128 = vmatprep.subr.mxu0 0.0
  %4129 = vmatpush1.msra.mxu0 0.0
  %4130 = vmatprep.subr.mxu0 0.0
  %4131 = vmatpush1.msra.mxu0 0.0
  %4132 = vmatprep.subr.mxu0 0.0
  %4133 = vmatpush1.msra.mxu0 0.0
  %4134 = vmatprep.subr.mxu0 0.0
  %4135 = vmatpush1.msra.mxu0 0.0
  %4136 = vmatprep.subr.mxu0 0.0
  %4137 = vmatpush1.msra.mxu0 0.0
  %4138 = vmatprep.subr.mxu0 0.0
  %4139 = vmatpush1.msra.mxu0 %v4118
  %4140 = vmatprep.subr.mxu0 0.0
  %4141 = vmatpush1.msra.mxu0 %v4117
  %4142 = vmatprep.subr.mxu0 0.0
  %4143 = vmatpush1.msra.mxu0 %v4116
  %4144 = vmatprep.subr.mxu0 0.0
  %4145 = vmatpush1.msra.mxu0 %v4115
  %4146 = vmatprep.subr.mxu0 0.0
  %4147 = vmatpush1.msra.mxu0 %v4114
  %4148 = vmatprep.subr.mxu0 0.0
  %4149 = vmatpush1.msra.mxu0 %v4113
  %4150 = vmatprep.subr.mxu0 0.0
  %4151 = vmatpush1.msra.mxu0 %v4112
  %4152 = vmatprep.subr.mxu0 0.0
  %4153 = vmatpush1.msra.mxu0 %v4111
  %4154 = vmatprep.subr.mxu0 0.0
  %4155 = vmatpush2.msra.mxu0 0.0
  %4156 = vmatprep.subr.mxu0 0.0
  %4157 = vmatpush2.msra.mxu0 0.0
  %4158 = vmatprep.subr.mxu0 0.0
  %4159 = vmatpush2.msra.mxu0 0.0
  %4160 = vmatprep.subr.mxu0 0.0
  %4161 = vmatpush2.msra.mxu0 0.0
  %4162 = vmatprep.subr.mxu0 0.0
  %4163 = vmatpush2.msra.mxu0 0.0
  %4164 = vmatprep.subr.mxu0 0.0
  %4165 = vmatpush2.msra.mxu0 0.0
  %4166 = vmatprep.subr.mxu0 0.0
  %4167 = vmatpush2.msra.mxu0 0.0
  %4168 = vmatprep.subr.mxu0 0.0
  %4169 = vmatpush2.msra.mxu0 0.0
  %4170 = vmatprep.subr.mxu0 0.0
  %4171 = vmatpush2.msra.mxu0 0.0
  %4172 = vmatprep.subr.mxu0 0.0
  %4173 = vmatpush2.msra.mxu0 0.0
  %4174 = vmatprep.subr.mxu0 0.0
  %4175 = vmatpush2.msra.mxu0 0.0
  %4176 = vmatprep.subr.mxu0 0.0
  %4177 = vmatpush2.msra.mxu0 0.0
  %4178 = vmatprep.subr.mxu0 0.0
  %4179 = vmatpush2.msra.mxu0 0.0
  %4180 = vmatprep.subr.mxu0 0.0
  %4181 = vmatpush2.msra.mxu0 0.0
  %4182 = vmatprep.subr.mxu0 0.0
  %4183 = vmatpush2.msra.mxu0 0.0
  %4184 = vmatprep.subr.mxu0 0.0
  %4185 = vmatpush2.msra.mxu0 0.0
  %4186 = vmatprep.mubr.f32.mxu0 0.0
  %4187 = vmatmul.mubr.f32.gmra.mxu0 %v4120
  %v4188 = vpop.f32.mrf.mxu0
  %v4189 = vadd.f32 0.0, %v4188
  %v4190 = vpop.f32.mrf.mxu0
  %4191 = vdwg.mxu0
  %v4192 = vadd.f32 %v4110, %v4189
  %v4193 = vld [vmem:[%s5 + $0x180] sm:$0xff]
  %v4194 = vld [vmem:[%s5 + $0x188] sm:$0xff]
  %v4195 = vld [vmem:[%s5 + $0x190] sm:$0xff]
  %v4196 = vld [vmem:[%s5 + $0x198] sm:$0xff]
  %v4197 = vld [vmem:[%s5 + $0x1a0] sm:$0xff]
  %v4198 = vld [vmem:[%s5 + $0x1a8] sm:$0xff]
  %v4199 = vld [vmem:[%s5 + $0x1b0] sm:$0xff]
  %v4200 = vld [vmem:[%s5 + $0x1b8] sm:$0xff]
  %v4202 = vsel %vm3718, %v3699, 0
  %4204 = vmatprep.subr.mxu0 0.0
  %4205 = vmatpush1.msra.mxu0 0.0
  %4206 = vmatprep.subr.mxu0 0.0
  %4207 = vmatpush1.msra.mxu0 0.0
  %4208 = vmatprep.subr.mxu0 0.0
  %4209 = vmatpush1.msra.mxu0 0.0
  %4210 = vmatprep.subr.mxu0 0.0
  %4211 = vmatpush1.msra.mxu0 0.0
  %4212 = vmatprep.subr.mxu0 0.0
  %4213 = vmatpush1.msra.mxu0 0.0
  %4214 = vmatprep.subr.mxu0 0.0
  %4215 = vmatpush1.msra.mxu0 0.0
  %4216 = vmatprep.subr.mxu0 0.0
  %4217 = vmatpush1.msra.mxu0 0.0
  %4218 = vmatprep.subr.mxu0 0.0
  %4219 = vmatpush1.msra.mxu0 0.0
  %4220 = vmatprep.subr.mxu0 0.0
  %4221 = vmatpush1.msra.mxu0 %v4200
  %4222 = vmatprep.subr.mxu0 0.0
  %4223 = vmatpush1.msra.mxu0 %v4199
  %4224 = vmatprep.subr.mxu0 0.0
  %4225 = vmatpush1.msra.mxu0 %v4198
  %4226 = vmatprep.subr.mxu0 0.0
  %4227 = vmatpush1.msra.mxu0 %v4197
  %4228 = vmatprep.subr.mxu0 0.0
  %4229 = vmatpush1.msra.mxu0 %v4196
  %4230 = vmatprep.subr.mxu0 0.0
  %4231 = vmatpush1.msra.mxu0 %v4195
  %4232 = vmatprep.subr.mxu0 0.0
  %4233 = vmatpush1.msra.mxu0 %v4194
  %4234 = vmatprep.subr.mxu0 0.0
  %4235 = vmatpush1.msra.mxu0 %v4193
  %4236 = vmatprep.subr.mxu0 0.0
  %4237 = vmatpush2.msra.mxu0 0.0
  %4238 = vmatprep.subr.mxu0 0.0
  %4239 = vmatpush2.msra.mxu0 0.0
  %4240 = vmatprep.subr.mxu0 0.0
  %4241 = vmatpush2.msra.mxu0 0.0
  %4242 = vmatprep.subr.mxu0 0.0
  %4243 = vmatpush2.msra.mxu0 0.0
  %4244 = vmatprep.subr.mxu0 0.0
  %4245 = vmatpush2.msra.mxu0 0.0
  %4246 = vmatprep.subr.mxu0 0.0
  %4247 = vmatpush2.msra.mxu0 0.0
  %4248 = vmatprep.subr.mxu0 0.0
  %4249 = vmatpush2.msra.mxu0 0.0
  %4250 = vmatprep.subr.mxu0 0.0
  %4251 = vmatpush2.msra.mxu0 0.0
  %4252 = vmatprep.subr.mxu0 0.0
  %4253 = vmatpush2.msra.mxu0 0.0
  %4254 = vmatprep.subr.mxu0 0.0
  %4255 = vmatpush2.msra.mxu0 0.0
  %4256 = vmatprep.subr.mxu0 0.0
  %4257 = vmatpush2.msra.mxu0 0.0
  %4258 = vmatprep.subr.mxu0 0.0
  %4259 = vmatpush2.msra.mxu0 0.0
  %4260 = vmatprep.subr.mxu0 0.0
  %4261 = vmatpush2.msra.mxu0 0.0
  %4262 = vmatprep.subr.mxu0 0.0
  %4263 = vmatpush2.msra.mxu0 0.0
  %4264 = vmatprep.subr.mxu0 0.0
  %4265 = vmatpush2.msra.mxu0 0.0
  %4266 = vmatprep.subr.mxu0 0.0
  %4267 = vmatpush2.msra.mxu0 0.0
  %4268 = vmatprep.mubr.f32.mxu0 0.0
  %4269 = vmatmul.mubr.f32.gmra.mxu0 %v4202
  %v4270 = vpop.f32.mrf.mxu0
  %v4271 = vadd.f32 0.0, %v4270
  %v4272 = vpop.f32.mrf.mxu0
  %4273 = vdwg.mxu0
  %v4274 = vadd.f32 %v4192, %v4271
  %v4275 = vld [vmem:[%s5 + $0x1c0] sm:$0xff]
  %v4276 = vld [vmem:[%s5 + $0x1c8] sm:$0xff]
  %v4277 = vld [vmem:[%s5 + $0x1d0] sm:$0xff]
  %v4278 = vld [vmem:[%s5 + $0x1d8] sm:$0xff]
  %v4279 = vld [vmem:[%s5 + $0x1e0] sm:$0xff]
  %v4280 = vld [vmem:[%s5 + $0x1e8] sm:$0xff]
  %v4281 = vld [vmem:[%s5 + $0x1f0] sm:$0xff]
  %v4282 = vld [vmem:[%s5 + $0x1f8] sm:$0xff]
  %v4284 = vsel %vm3718, %v3700, 0
  %4286 = vmatprep.subr.mxu0 0.0
  %4287 = vmatpush1.msra.mxu0 0.0
  %4288 = vmatprep.subr.mxu0 0.0
  %4289 = vmatpush1.msra.mxu0 0.0
  %4290 = vmatprep.subr.mxu0 0.0
  %4291 = vmatpush1.msra.mxu0 0.0
  %4292 = vmatprep.subr.mxu0 0.0
  %4293 = vmatpush1.msra.mxu0 0.0
  %4294 = vmatprep.subr.mxu0 0.0
  %4295 = vmatpush1.msra.mxu0 0.0
  %4296 = vmatprep.subr.mxu0 0.0
  %4297 = vmatpush1.msra.mxu0 0.0
  %4298 = vmatprep.subr.mxu0 0.0
  %4299 = vmatpush1.msra.mxu0 0.0
  %4300 = vmatprep.subr.mxu0 0.0
  %4301 = vmatpush1.msra.mxu0 0.0
  %4302 = vmatprep.subr.mxu0 0.0
  %4303 = vmatpush1.msra.mxu0 %v4282
  %4304 = vmatprep.subr.mxu0 0.0
  %4305 = vmatpush1.msra.mxu0 %v4281
  %4306 = vmatprep.subr.mxu0 0.0
  %4307 = vmatpush1.msra.mxu0 %v4280
  %4308 = vmatprep.subr.mxu0 0.0
  %4309 = vmatpush1.msra.mxu0 %v4279
  %4310 = vmatprep.subr.mxu0 0.0
  %4311 = vmatpush1.msra.mxu0 %v4278
  %4312 = vmatprep.subr.mxu0 0.0
  %4313 = vmatpush1.msra.mxu0 %v4277
  %4314 = vmatprep.subr.mxu0 0.0
  %4315 = vmatpush1.msra.mxu0 %v4276
  %4316 = vmatprep.subr.mxu0 0.0
  %4317 = vmatpush1.msra.mxu0 %v4275
  %4318 = vmatprep.subr.mxu0 0.0
  %4319 = vmatpush2.msra.mxu0 0.0
  %4320 = vmatprep.subr.mxu0 0.0
  %4321 = vmatpush2.msra.mxu0 0.0
  %4322 = vmatprep.subr.mxu0 0.0
  %4323 = vmatpush2.msra.mxu0 0.0
  %4324 = vmatprep.subr.mxu0 0.0
  %4325 = vmatpush2.msra.mxu0 0.0
  %4326 = vmatprep.subr.mxu0 0.0
  %4327 = vmatpush2.msra.mxu0 0.0
  %4328 = vmatprep.subr.mxu0 0.0
  %4329 = vmatpush2.msra.mxu0 0.0
  %4330 = vmatprep.subr.mxu0 0.0
  %4331 = vmatpush2.msra.mxu0 0.0
  %4332 = vmatprep.subr.mxu0 0.0
  %4333 = vmatpush2.msra.mxu0 0.0
  %4334 = vmatprep.subr.mxu0 0.0
  %4335 = vmatpush2.msra.mxu0 0.0
  %4336 = vmatprep.subr.mxu0 0.0
  %4337 = vmatpush2.msra.mxu0 0.0
  %4338 = vmatprep.subr.mxu0 0.0
  %4339 = vmatpush2.msra.mxu0 0.0
  %4340 = vmatprep.subr.mxu0 0.0
  %4341 = vmatpush2.msra.mxu0 0.0
  %4342 = vmatprep.subr.mxu0 0.0
  %4343 = vmatpush2.msra.mxu0 0.0
  %4344 = vmatprep.subr.mxu0 0.0
  %4345 = vmatpush2.msra.mxu0 0.0
  %4346 = vmatprep.subr.mxu0 0.0
  %4347 = vmatpush2.msra.mxu0 0.0
  %4348 = vmatprep.subr.mxu0 0.0
  %4349 = vmatpush2.msra.mxu0 0.0
  %4350 = vmatprep.mubr.f32.mxu0 0.0
  %4351 = vmatmul.mubr.f32.gmra.mxu0 %v4284
  %v4352 = vpop.f32.mrf.mxu0
  %v4353 = vadd.f32 0.0, %v4352
  %v4354 = vpop.f32.mrf.mxu0
  %4355 = vdwg.mxu0
  %v4356 = vadd.f32 %v4274, %v4353
  %v4357 = vld [vmem:[%s5 + $0x200] sm:$0xff]
  %v4358 = vld [vmem:[%s5 + $0x208] sm:$0xff]
  %v4359 = vld [vmem:[%s5 + $0x210] sm:$0xff]
  %v4360 = vld [vmem:[%s5 + $0x218] sm:$0xff]
  %v4361 = vld [vmem:[%s5 + $0x220] sm:$0xff]
  %v4362 = vld [vmem:[%s5 + $0x228] sm:$0xff]
  %v4363 = vld [vmem:[%s5 + $0x230] sm:$0xff]
  %v4364 = vld [vmem:[%s5 + $0x238] sm:$0xff]
  %v4366 = vsel %vm3718, %v3701, 0
  %4368 = vmatprep.subr.mxu0 0.0
  %4369 = vmatpush1.msra.mxu0 0.0
  %4370 = vmatprep.subr.mxu0 0.0
  %4371 = vmatpush1.msra.mxu0 0.0
  %4372 = vmatprep.subr.mxu0 0.0
  %4373 = vmatpush1.msra.mxu0 0.0
  %4374 = vmatprep.subr.mxu0 0.0
  %4375 = vmatpush1.msra.mxu0 0.0
  %4376 = vmatprep.subr.mxu0 0.0
  %4377 = vmatpush1.msra.mxu0 0.0
  %4378 = vmatprep.subr.mxu0 0.0
  %4379 = vmatpush1.msra.mxu0 0.0
  %4380 = vmatprep.subr.mxu0 0.0
  %4381 = vmatpush1.msra.mxu0 0.0
  %4382 = vmatprep.subr.mxu0 0.0
  %4383 = vmatpush1.msra.mxu0 0.0
  %4384 = vmatprep.subr.mxu0 0.0
  %4385 = vmatpush1.msra.mxu0 %v4364
  %4386 = vmatprep.subr.mxu0 0.0
  %4387 = vmatpush1.msra.mxu0 %v4363
  %4388 = vmatprep.subr.mxu0 0.0
  %4389 = vmatpush1.msra.mxu0 %v4362
  %4390 = vmatprep.subr.mxu0 0.0
  %4391 = vmatpush1.msra.mxu0 %v4361
  %4392 = vmatprep.subr.mxu0 0.0
  %4393 = vmatpush1.msra.mxu0 %v4360
  %4394 = vmatprep.subr.mxu0 0.0
  %4395 = vmatpush1.msra.mxu0 %v4359
  %4396 = vmatprep.subr.mxu0 0.0
  %4397 = vmatpush1.msra.mxu0 %v4358
  %4398 = vmatprep.subr.mxu0 0.0
  %4399 = vmatpush1.msra.mxu0 %v4357
  %4400 = vmatprep.subr.mxu0 0.0
  %4401 = vmatpush2.msra.mxu0 0.0
  %4402 = vmatprep.subr.mxu0 0.0
  %4403 = vmatpush2.msra.mxu0 0.0
  %4404 = vmatprep.subr.mxu0 0.0
  %4405 = vmatpush2.msra.mxu0 0.0
  %4406 = vmatprep.subr.mxu0 0.0
  %4407 = vmatpush2.msra.mxu0 0.0
  %4408 = vmatprep.subr.mxu0 0.0
  %4409 = vmatpush2.msra.mxu0 0.0
  %4410 = vmatprep.subr.mxu0 0.0
  %4411 = vmatpush2.msra.mxu0 0.0
  %4412 = vmatprep.subr.mxu0 0.0
  %4413 = vmatpush2.msra.mxu0 0.0
  %4414 = vmatprep.subr.mxu0 0.0
  %4415 = vmatpush2.msra.mxu0 0.0
  %4416 = vmatprep.subr.mxu0 0.0
  %4417 = vmatpush2.msra.mxu0 0.0
  %4418 = vmatprep.subr.mxu0 0.0
  %4419 = vmatpush2.msra.mxu0 0.0
  %4420 = vmatprep.subr.mxu0 0.0
  %4421 = vmatpush2.msra.mxu0 0.0
  %4422 = vmatprep.subr.mxu0 0.0
  %4423 = vmatpush2.msra.mxu0 0.0
  %4424 = vmatprep.subr.mxu0 0.0
  %4425 = vmatpush2.msra.mxu0 0.0
  %4426 = vmatprep.subr.mxu0 0.0
  %4427 = vmatpush2.msra.mxu0 0.0
  %4428 = vmatprep.subr.mxu0 0.0
  %4429 = vmatpush2.msra.mxu0 0.0
  %4430 = vmatprep.subr.mxu0 0.0
  %4431 = vmatpush2.msra.mxu0 0.0
  %4432 = vmatprep.mubr.f32.mxu0 0.0
  %4433 = vmatmul.mubr.f32.gmra.mxu0 %v4366
  %v4434 = vpop.f32.mrf.mxu0
  %v4435 = vadd.f32 0.0, %v4434
  %v4436 = vpop.f32.mrf.mxu0
  %4437 = vdwg.mxu0
  %v4438 = vadd.f32 %v4356, %v4435
  %v4439 = vld [vmem:[%s6] sm:$0x1]
  %v4441 = vlaneseq
  %v4442 = vshrl.u32 %v4441, 7
  %v4443 = vsub.s32 0, %v4442
  %v4444 = vrot.slane %v4439, %v4443
  %v4446 = vadd.f32 %v4438, %v4444
  %v4447 = vmax.f32 %v4446, 0.0
  %v4448 = vld [vmem:[%s7] sm:$0xff]
  %v4449 = vld [vmem:[%s7 + $0x8] sm:$0xff]
  %v4450 = vld [vmem:[%s7 + $0x10] sm:$0xff]
  %v4451 = vld [vmem:[%s7 + $0x18] sm:$0xff]
  %v4452 = vld [vmem:[%s7 + $0x20] sm:$0xff]
  %v4453 = vld [vmem:[%s7 + $0x28] sm:$0xff]
  %v4454 = vld [vmem:[%s7 + $0x30] sm:$0xff]
  %v4455 = vld [vmem:[%s7 + $0x38] sm:$0xff]
  %v4456 = vld [vmem:[%s7 + $0x40] sm:$0xff]
  %v4457 = vld [vmem:[%s7 + $0x48] sm:$0xff]
  %v4458 = vld [vmem:[%s7 + $0x50] sm:$0xff]
  %v4459 = vld [vmem:[%s7 + $0x58] sm:$0xff]
  %v4460 = vld [vmem:[%s7 + $0x60] sm:$0xff]
  %v4461 = vld [vmem:[%s7 + $0x68] sm:$0xff]
  %v4462 = vld [vmem:[%s7 + $0x70] sm:$0xff]
  %v4463 = vld [vmem:[%s7 + $0x78] sm:$0xff]
  %v4464 = vld [vmem:[%s7 + $0x80] sm:$0xff]
  %v4465 = vld [vmem:[%s7 + $0x88] sm:$0xff]
  %v4466 = vld [vmem:[%s7 + $0x90] sm:$0xff]
  %v4467 = vld [vmem:[%s7 + $0x98] sm:$0xff]
  %v4468 = vld [vmem:[%s7 + $0xa0] sm:$0xff]
  %v4469 = vld [vmem:[%s7 + $0xa8] sm:$0xff]
  %v4470 = vld [vmem:[%s7 + $0xb0] sm:$0xff]
  %v4471 = vld [vmem:[%s7 + $0xb8] sm:$0xff]
  %v4472 = vld [vmem:[%s7 + $0xc0] sm:$0xff]
  %v4473 = vld [vmem:[%s7 + $0xc8] sm:$0xff]
  %v4474 = vld [vmem:[%s7 + $0xd0] sm:$0xff]
  %v4475 = vld [vmem:[%s7 + $0xd8] sm:$0xff]
  %v4476 = vld [vmem:[%s7 + $0xe0] sm:$0xff]
  %v4477 = vld [vmem:[%s7 + $0xe8] sm:$0xff]
  %v4478 = vld [vmem:[%s7 + $0xf0] sm:$0xff]
  %v4479 = vld [vmem:[%s7 + $0xf8] sm:$0xff]
  %v4480 = vld [vmem:[%s7 + $0x100] sm:$0xff]
  %v4481 = vld [vmem:[%s7 + $0x108] sm:$0xff]
  %v4482 = vld [vmem:[%s7 + $0x110] sm:$0xff]
  %v4483 = vld [vmem:[%s7 + $0x118] sm:$0xff]
  %v4484 = vld [vmem:[%s7 + $0x120] sm:$0xff]
  %v4485 = vld [vmem:[%s7 + $0x128] sm:$0xff]
  %v4486 = vld [vmem:[%s7 + $0x130] sm:$0xff]
  %v4487 = vld [vmem:[%s7 + $0x138] sm:$0xff]
  %v4488 = vld [vmem:[%s7 + $0x140] sm:$0xff]
  %v4489 = vld [vmem:[%s7 + $0x148] sm:$0xff]
  %v4490 = vld [vmem:[%s7 + $0x150] sm:$0xff]
  %v4491 = vld [vmem:[%s7 + $0x158] sm:$0xff]
  %v4492 = vld [vmem:[%s7 + $0x160] sm:$0xff]
  %v4493 = vld [vmem:[%s7 + $0x168] sm:$0xff]
  %v4494 = vld [vmem:[%s7 + $0x170] sm:$0xff]
  %v4495 = vld [vmem:[%s7 + $0x178] sm:$0xff]
  %v4496 = vld [vmem:[%s7 + $0x180] sm:$0xff]
  %v4497 = vld [vmem:[%s7 + $0x188] sm:$0xff]
  %v4498 = vld [vmem:[%s7 + $0x190] sm:$0xff]
  %v4499 = vld [vmem:[%s7 + $0x198] sm:$0xff]
  %v4500 = vld [vmem:[%s7 + $0x1a0] sm:$0xff]
  %v4501 = vld [vmem:[%s7 + $0x1a8] sm:$0xff]
  %v4502 = vld [vmem:[%s7 + $0x1b0] sm:$0xff]
  %v4503 = vld [vmem:[%s7 + $0x1b8] sm:$0xff]
  %v4504 = vld [vmem:[%s7 + $0x1c0] sm:$0xff]
  %v4505 = vld [vmem:[%s7 + $0x1c8] sm:$0xff]
  %v4506 = vld [vmem:[%s7 + $0x1d0] sm:$0xff]
  %v4507 = vld [vmem:[%s7 + $0x1d8] sm:$0xff]
  %v4508 = vld [vmem:[%s7 + $0x1e0] sm:$0xff]
  %v4509 = vld [vmem:[%s7 + $0x1e8] sm:$0xff]
  %v4510 = vld [vmem:[%s7 + $0x1f0] sm:$0xff]
  %v4511 = vld [vmem:[%s7 + $0x1f8] sm:$0xff]
  %v4512 = vld [vmem:[%s8] sm:$0xff]
  %v4514 = vlaneseq
  %v4515 = vshrl.u32 %v4514, 7
  %v4516 = vsub.s32 0, %v4515
  %v4517 = vrot.slane %v4512, %v4516
  %v4518 = vlaneseq
  %v4519 = vshrl.u32 %v4518, 7
  %v4520 = vsub.s32 1, %v4519
  %v4521 = vrot.slane %v4512, %v4520
  %v4522 = vlaneseq
  %v4523 = vshrl.u32 %v4522, 7
  %v4524 = vsub.s32 2, %v4523
  %v4525 = vrot.slane %v4512, %v4524
  %v4526 = vlaneseq
  %v4527 = vshrl.u32 %v4526, 7
  %v4528 = vsub.s32 3, %v4527
  %v4529 = vrot.slane %v4512, %v4528
  %v4530 = vlaneseq
  %v4531 = vshrl.u32 %v4530, 7
  %v4532 = vsub.s32 4, %v4531
  %v4533 = vrot.slane %v4512, %v4532
  %v4534 = vlaneseq
  %v4535 = vshrl.u32 %v4534, 7
  %v4536 = vsub.s32 5, %v4535
  %v4537 = vrot.slane %v4512, %v4536
  %v4538 = vlaneseq
  %v4539 = vshrl.u32 %v4538, 7
  %v4540 = vsub.s32 6, %v4539
  %v4541 = vrot.slane %v4512, %v4540
  %v4542 = vlaneseq
  %v4543 = vshrl.u32 %v4542, 7
  %v4544 = vsub.s32 7, %v4543
  %v4545 = vrot.slane %v4512, %v4544
  %v4555 = vsel %vm3718, %v4447, 0
  %4557 = vmatprep.subr.mxu0 0.0
  %4558 = vmatpush1.msra.mxu0 0.0
  %4559 = vmatprep.subr.mxu0 0.0
  %4560 = vmatpush1.msra.mxu0 0.0
  %4561 = vmatprep.subr.mxu0 0.0
  %4562 = vmatpush1.msra.mxu0 0.0
  %4563 = vmatprep.subr.mxu0 0.0
  %4564 = vmatpush1.msra.mxu0 0.0
  %4565 = vmatprep.subr.mxu0 0.0
  %4566 = vmatpush1.msra.mxu0 0.0
  %4567 = vmatprep.subr.mxu0 0.0
  %4568 = vmatpush1.msra.mxu0 0.0
  %4569 = vmatprep.subr.mxu0 0.0
  %4570 = vmatpush1.msra.mxu0 0.0
  %4571 = vmatprep.subr.mxu0 0.0
  %4572 = vmatpush1.msra.mxu0 0.0
  %4573 = vmatprep.subr.mxu0 %v4505
  %4574 = vmatpush1.msra.mxu0 %v4504
  %4575 = vmatprep.subr.mxu0 %v4497
  %4576 = vmatpush1.msra.mxu0 %v4496
  %4577 = vmatprep.subr.mxu0 %v4489
  %4578 = vmatpush1.msra.mxu0 %v4488
  %4579 = vmatprep.subr.mxu0 %v4481
  %4580 = vmatpush1.msra.mxu0 %v4480
  %4581 = vmatprep.subr.mxu0 %v4473
  %4582 = vmatpush1.msra.mxu0 %v4472
  %4583 = vmatprep.subr.mxu0 %v4465
  %4584 = vmatpush1.msra.mxu0 %v4464
  %4585 = vmatprep.subr.mxu0 %v4457
  %4586 = vmatpush1.msra.mxu0 %v4456
  %4587 = vmatprep.subr.mxu0 %v4449
  %4588 = vmatpush1.msra.mxu0 %v4448
  %4589 = vmatprep.subr.mxu0 0.0
  %4590 = vmatpush2.msra.mxu0 0.0
  %4591 = vmatprep.subr.mxu0 0.0
  %4592 = vmatpush2.msra.mxu0 0.0
  %4593 = vmatprep.subr.mxu0 0.0
  %4594 = vmatpush2.msra.mxu0 0.0
  %4595 = vmatprep.subr.mxu0 0.0
  %4596 = vmatpush2.msra.mxu0 0.0
  %4597 = vmatprep.subr.mxu0 0.0
  %4598 = vmatpush2.msra.mxu0 0.0
  %4599 = vmatprep.subr.mxu0 0.0
  %4600 = vmatpush2.msra.mxu0 0.0
  %4601 = vmatprep.subr.mxu0 0.0
  %4602 = vmatpush2.msra.mxu0 0.0
  %4603 = vmatprep.subr.mxu0 0.0
  %4604 = vmatpush2.msra.mxu0 0.0
  %4605 = vmatprep.subr.mxu0 0.0
  %4606 = vmatpush2.msra.mxu0 0.0
  %4607 = vmatprep.subr.mxu0 0.0
  %4608 = vmatpush2.msra.mxu0 0.0
  %4609 = vmatprep.subr.mxu0 0.0
  %4610 = vmatpush2.msra.mxu0 0.0
  %4611 = vmatprep.subr.mxu0 0.0
  %4612 = vmatpush2.msra.mxu0 0.0
  %4613 = vmatprep.subr.mxu0 0.0
  %4614 = vmatpush2.msra.mxu0 0.0
  %4615 = vmatprep.subr.mxu0 0.0
  %4616 = vmatpush2.msra.mxu0 0.0
  %4617 = vmatprep.subr.mxu0 0.0
  %4618 = vmatpush2.msra.mxu0 0.0
  %4619 = vmatprep.subr.mxu0 0.0
  %4620 = vmatpush2.msra.mxu0 0.0
  %4621 = vmatprep.mubr.f32.mxu0 0.0
  %4622 = vmatmul.mubr.f32.gmra.mxu0 %v4555
  %v4623 = vpop.f32.mrf.mxu0
  %v4624 = vadd.f32 %v4517, %v4623
  %v4625 = vpop.f32.mrf.mxu0
  %v4626 = vadd.f32 %v4521, %v4625
  %4627 = vdwg.mxu0
  %4628 = vmatprep.subr.mxu0 0.0
  %4629 = vmatpush1.msra.mxu0 0.0
  %4630 = vmatprep.subr.mxu0 0.0
  %4631 = vmatpush1.msra.mxu0 0.0
  %4632 = vmatprep.subr.mxu0 0.0
  %4633 = vmatpush1.msra.mxu0 0.0
  %4634 = vmatprep.subr.mxu0 0.0
  %4635 = vmatpush1.msra.mxu0 0.0
  %4636 = vmatprep.subr.mxu0 0.0
  %4637 = vmatpush1.msra.mxu0 0.0
  %4638 = vmatprep.subr.mxu0 0.0
  %4639 = vmatpush1.msra.mxu0 0.0
  %4640 = vmatprep.subr.mxu0 0.0
  %4641 = vmatpush1.msra.mxu0 0.0
  %4642 = vmatprep.subr.mxu0 0.0
  %4643 = vmatpush1.msra.mxu0 0.0
  %4644 = vmatprep.subr.mxu0 %v4507
  %4645 = vmatpush1.msra.mxu0 %v4506
  %4646 = vmatprep.subr.mxu0 %v4499
  %4647 = vmatpush1.msra.mxu0 %v4498
  %4648 = vmatprep.subr.mxu0 %v4491
  %4649 = vmatpush1.msra.mxu0 %v4490
  %4650 = vmatprep.subr.mxu0 %v4483
  %4651 = vmatpush1.msra.mxu0 %v4482
  %4652 = vmatprep.subr.mxu0 %v4475
  %4653 = vmatpush1.msra.mxu0 %v4474
  %4654 = vmatprep.subr.mxu0 %v4467
  %4655 = vmatpush1.msra.mxu0 %v4466
  %4656 = vmatprep.subr.mxu0 %v4459
  %4657 = vmatpush1.msra.mxu0 %v4458
  %4658 = vmatprep.subr.mxu0 %v4451
  %4659 = vmatpush1.msra.mxu0 %v4450
  %4660 = vmatprep.subr.mxu0 0.0
  %4661 = vmatpush2.msra.mxu0 0.0
  %4662 = vmatprep.subr.mxu0 0.0
  %4663 = vmatpush2.msra.mxu0 0.0
  %4664 = vmatprep.subr.mxu0 0.0
  %4665 = vmatpush2.msra.mxu0 0.0
  %4666 = vmatprep.subr.mxu0 0.0
  %4667 = vmatpush2.msra.mxu0 0.0
  %4668 = vmatprep.subr.mxu0 0.0
  %4669 = vmatpush2.msra.mxu0 0.0
  %4670 = vmatprep.subr.mxu0 0.0
  %4671 = vmatpush2.msra.mxu0 0.0
  %4672 = vmatprep.subr.mxu0 0.0
  %4673 = vmatpush2.msra.mxu0 0.0
  %4674 = vmatprep.subr.mxu0 0.0
  %4675 = vmatpush2.msra.mxu0 0.0
  %4676 = vmatprep.subr.mxu0 0.0
  %4677 = vmatpush2.msra.mxu0 0.0
  %4678 = vmatprep.subr.mxu0 0.0
  %4679 = vmatpush2.msra.mxu0 0.0
  %4680 = vmatprep.subr.mxu0 0.0
  %4681 = vmatpush2.msra.mxu0 0.0
  %4682 = vmatprep.subr.mxu0 0.0
  %4683 = vmatpush2.msra.mxu0 0.0
  %4684 = vmatprep.subr.mxu0 0.0
  %4685 = vmatpush2.msra.mxu0 0.0
  %4686 = vmatprep.subr.mxu0 0.0
  %4687 = vmatpush2.msra.mxu0 0.0
  %4688 = vmatprep.subr.mxu0 0.0
  %4689 = vmatpush2.msra.mxu0 0.0
  %4690 = vmatprep.subr.mxu0 0.0
  %4691 = vmatpush2.msra.mxu0 0.0
  %4692 = vmatprep.mubr.f32.mxu0 0.0
  %4693 = vmatmul.mubr.f32.gmra.mxu0 %v4555
  %v4694 = vpop.f32.mrf.mxu0
  %v4695 = vadd.f32 %v4525, %v4694
  %v4696 = vpop.f32.mrf.mxu0
  %v4697 = vadd.f32 %v4529, %v4696
  %4698 = vdwg.mxu0
  %4699 = vmatprep.subr.mxu0 0.0
  %4700 = vmatpush1.msra.mxu0 0.0
  %4701 = vmatprep.subr.mxu0 0.0
  %4702 = vmatpush1.msra.mxu0 0.0
  %4703 = vmatprep.subr.mxu0 0.0
  %4704 = vmatpush1.msra.mxu0 0.0
  %4705 = vmatprep.subr.mxu0 0.0
  %4706 = vmatpush1.msra.mxu0 0.0
  %4707 = vmatprep.subr.mxu0 0.0
  %4708 = vmatpush1.msra.mxu0 0.0
  %4709 = vmatprep.subr.mxu0 0.0
  %4710 = vmatpush1.msra.mxu0 0.0
  %4711 = vmatprep.subr.mxu0 0.0
  %4712 = vmatpush1.msra.mxu0 0.0
  %4713 = vmatprep.subr.mxu0 0.0
  %4714 = vmatpush1.msra.mxu0 0.0
  %4715 = vmatprep.subr.mxu0 %v4509
  %4716 = vmatpush1.msra.mxu0 %v4508
  %4717 = vmatprep.subr.mxu0 %v4501
  %4718 = vmatpush1.msra.mxu0 %v4500
  %4719 = vmatprep.subr.mxu0 %v4493
  %4720 = vmatpush1.msra.mxu0 %v4492
  %4721 = vmatprep.subr.mxu0 %v4485
  %4722 = vmatpush1.msra.mxu0 %v4484
  %4723 = vmatprep.subr.mxu0 %v4477
  %4724 = vmatpush1.msra.mxu0 %v4476
  %4725 = vmatprep.subr.mxu0 %v4469
  %4726 = vmatpush1.msra.mxu0 %v4468
  %4727 = vmatprep.subr.mxu0 %v4461
  %4728 = vmatpush1.msra.mxu0 %v4460
  %4729 = vmatprep.subr.mxu0 %v4453
  %4730 = vmatpush1.msra.mxu0 %v4452
  %4731 = vmatprep.subr.mxu0 0.0
  %4732 = vmatpush2.msra.mxu0 0.0
  %4733 = vmatprep.subr.mxu0 0.0
  %4734 = vmatpush2.msra.mxu0 0.0
  %4735 = vmatprep.subr.mxu0 0.0
  %4736 = vmatpush2.msra.mxu0 0.0
  %4737 = vmatprep.subr.mxu0 0.0
  %4738 = vmatpush2.msra.mxu0 0.0
  %4739 = vmatprep.subr.mxu0 0.0
  %4740 = vmatpush2.msra.mxu0 0.0
  %4741 = vmatprep.subr.mxu0 0.0
  %4742 = vmatpush2.msra.mxu0 0.0
  %4743 = vmatprep.subr.mxu0 0.0
  %4744 = vmatpush2.msra.mxu0 0.0
  %4745 = vmatprep.subr.mxu0 0.0
  %4746 = vmatpush2.msra.mxu0 0.0
  %4747 = vmatprep.subr.mxu0 0.0
  %4748 = vmatpush2.msra.mxu0 0.0
  %4749 = vmatprep.subr.mxu0 0.0
  %4750 = vmatpush2.msra.mxu0 0.0
  %4751 = vmatprep.subr.mxu0 0.0
  %4752 = vmatpush2.msra.mxu0 0.0
  %4753 = vmatprep.subr.mxu0 0.0
  %4754 = vmatpush2.msra.mxu0 0.0
  %4755 = vmatprep.subr.mxu0 0.0
  %4756 = vmatpush2.msra.mxu0 0.0
  %4757 = vmatprep.subr.mxu0 0.0
  %4758 = vmatpush2.msra.mxu0 0.0
  %4759 = vmatprep.subr.mxu0 0.0
  %4760 = vmatpush2.msra.mxu0 0.0
  %4761 = vmatprep.subr.mxu0 0.0
  %4762 = vmatpush2.msra.mxu0 0.0
  %4763 = vmatprep.mubr.f32.mxu0 0.0
  %4764 = vmatmul.mubr.f32.gmra.mxu0 %v4555
  %v4765 = vpop.f32.mrf.mxu0
  %v4766 = vadd.f32 %v4533, %v4765
  %v4767 = vpop.f32.mrf.mxu0
  %v4768 = vadd.f32 %v4537, %v4767
  %4769 = vdwg.mxu0
  %4770 = vmatprep.subr.mxu0 0.0
  %4771 = vmatpush1.msra.mxu0 0.0
  %4772 = vmatprep.subr.mxu0 0.0
  %4773 = vmatpush1.msra.mxu0 0.0
  %4774 = vmatprep.subr.mxu0 0.0
  %4775 = vmatpush1.msra.mxu0 0.0
  %4776 = vmatprep.subr.mxu0 0.0
  %4777 = vmatpush1.msra.mxu0 0.0
  %4778 = vmatprep.subr.mxu0 0.0
  %4779 = vmatpush1.msra.mxu0 0.0
  %4780 = vmatprep.subr.mxu0 0.0
  %4781 = vmatpush1.msra.mxu0 0.0
  %4782 = vmatprep.subr.mxu0 0.0
  %4783 = vmatpush1.msra.mxu0 0.0
  %4784 = vmatprep.subr.mxu0 0.0
  %4785 = vmatpush1.msra.mxu0 0.0
  %4786 = vmatprep.subr.mxu0 %v4511
  %4787 = vmatpush1.msra.mxu0 %v4510
  %4788 = vmatprep.subr.mxu0 %v4503
  %4789 = vmatpush1.msra.mxu0 %v4502
  %4790 = vmatprep.subr.mxu0 %v4495
  %4791 = vmatpush1.msra.mxu0 %v4494
  %4792 = vmatprep.subr.mxu0 %v4487
  %4793 = vmatpush1.msra.mxu0 %v4486
  %4794 = vmatprep.subr.mxu0 %v4479
  %4795 = vmatpush1.msra.mxu0 %v4478
  %4796 = vmatprep.subr.mxu0 %v4471
  %4797 = vmatpush1.msra.mxu0 %v4470
  %4798 = vmatprep.subr.mxu0 %v4463
  %4799 = vmatpush1.msra.mxu0 %v4462
  %4800 = vmatprep.subr.mxu0 %v4455
  %4801 = vmatpush1.msra.mxu0 %v4454
  %4802 = vmatprep.subr.mxu0 0.0
  %4803 = vmatpush2.msra.mxu0 0.0
  %4804 = vmatprep.subr.mxu0 0.0
  %4805 = vmatpush2.msra.mxu0 0.0
  %4806 = vmatprep.subr.mxu0 0.0
  %4807 = vmatpush2.msra.mxu0 0.0
  %4808 = vmatprep.subr.mxu0 0.0
  %4809 = vmatpush2.msra.mxu0 0.0
  %4810 = vmatprep.subr.mxu0 0.0
  %4811 = vmatpush2.msra.mxu0 0.0
  %4812 = vmatprep.subr.mxu0 0.0
  %4813 = vmatpush2.msra.mxu0 0.0
  %4814 = vmatprep.subr.mxu0 0.0
  %4815 = vmatpush2.msra.mxu0 0.0
  %4816 = vmatprep.subr.mxu0 0.0
  %4817 = vmatpush2.msra.mxu0 0.0
  %4818 = vmatprep.subr.mxu0 0.0
  %4819 = vmatpush2.msra.mxu0 0.0
  %4820 = vmatprep.subr.mxu0 0.0
  %4821 = vmatpush2.msra.mxu0 0.0
  %4822 = vmatprep.subr.mxu0 0.0
  %4823 = vmatpush2.msra.mxu0 0.0
  %4824 = vmatprep.subr.mxu0 0.0
  %4825 = vmatpush2.msra.mxu0 0.0
  %4826 = vmatprep.subr.mxu0 0.0
  %4827 = vmatpush2.msra.mxu0 0.0
  %4828 = vmatprep.subr.mxu0 0.0
  %4829 = vmatpush2.msra.mxu0 0.0
  %4830 = vmatprep.subr.mxu0 0.0
  %4831 = vmatpush2.msra.mxu0 0.0
  %4832 = vmatprep.subr.mxu0 0.0
  %4833 = vmatpush2.msra.mxu0 0.0
  %4834 = vmatprep.mubr.f32.mxu0 0.0
  %4835 = vmatmul.mubr.f32.gmra.mxu0 %v4555
  %v4836 = vpop.f32.mrf.mxu0
  %v4837 = vadd.f32 %v4541, %v4836
  %v4838 = vpop.f32.mrf.mxu0
  %v4839 = vadd.f32 %v4545, %v4838
  %4840 = vdwg.mxu0
  %v4841 = vmax.f32 %v4624, 0.0
  %v4842 = vmax.f32 %v4626, 0.0
  %v4843 = vmax.f32 %v4695, 0.0
  %v4844 = vmax.f32 %v4697, 0.0
  %v4845 = vmax.f32 %v4766, 0.0
  %v4846 = vmax.f32 %v4768, 0.0
  %v4847 = vmax.f32 %v4837, 0.0
  %v4848 = vmax.f32 %v4839, 0.0
  %v4849 = vld [vmem:[%s9] sm:$0xff]
  %v4850 = vld [vmem:[%s9 + $0x8] sm:$0xff]
  %v4851 = vld [vmem:[%s9 + $0x10] sm:$0xff]
  %v4852 = vld [vmem:[%s9 + $0x18] sm:$0xff]
  %v4853 = vld [vmem:[%s9 + $0x20] sm:$0xff]
  %v4854 = vld [vmem:[%s9 + $0x28] sm:$0xff]
  %v4855 = vld [vmem:[%s9 + $0x30] sm:$0xff]
  %v4856 = vld [vmem:[%s9 + $0x38] sm:$0xff]
  %v4857 = vld [vmem:[%s9 + $0x40] sm:$0xff]
  %v4858 = vld [vmem:[%s9 + $0x48] sm:$0xff]
  %v4859 = vld [vmem:[%s9 + $0x50] sm:$0xff]
  %v4860 = vld [vmem:[%s9 + $0x58] sm:$0xff]
  %v4861 = vld [vmem:[%s9 + $0x60] sm:$0xff]
  %v4862 = vld [vmem:[%s9 + $0x68] sm:$0xff]
  %v4863 = vld [vmem:[%s9 + $0x70] sm:$0xff]
  %v4864 = vld [vmem:[%s9 + $0x78] sm:$0xff]
  %v4865 = vld [vmem:[%s9 + $0x80] sm:$0xff]
  %v4866 = vld [vmem:[%s9 + $0x88] sm:$0xff]
  %v4867 = vld [vmem:[%s9 + $0x90] sm:$0xff]
  %v4868 = vld [vmem:[%s9 + $0x98] sm:$0xff]
  %v4869 = vld [vmem:[%s9 + $0xa0] sm:$0xff]
  %v4870 = vld [vmem:[%s9 + $0xa8] sm:$0xff]
  %v4871 = vld [vmem:[%s9 + $0xb0] sm:$0xff]
  %v4872 = vld [vmem:[%s9 + $0xb8] sm:$0xff]
  %v4873 = vld [vmem:[%s9 + $0xc0] sm:$0xff]
  %v4874 = vld [vmem:[%s9 + $0xc8] sm:$0xff]
  %v4875 = vld [vmem:[%s9 + $0xd0] sm:$0xff]
  %v4876 = vld [vmem:[%s9 + $0xd8] sm:$0xff]
  %v4877 = vld [vmem:[%s9 + $0xe0] sm:$0xff]
  %v4878 = vld [vmem:[%s9 + $0xe8] sm:$0xff]
  %v4879 = vld [vmem:[%s9 + $0xf0] sm:$0xff]
  %v4880 = vld [vmem:[%s9 + $0xf8] sm:$0xff]
  %v4881 = vld [vmem:[%s9 + $0x100] sm:$0xff]
  %v4882 = vld [vmem:[%s9 + $0x108] sm:$0xff]
  %v4883 = vld [vmem:[%s9 + $0x110] sm:$0xff]
  %v4884 = vld [vmem:[%s9 + $0x118] sm:$0xff]
  %v4885 = vld [vmem:[%s9 + $0x120] sm:$0xff]
  %v4886 = vld [vmem:[%s9 + $0x128] sm:$0xff]
  %v4887 = vld [vmem:[%s9 + $0x130] sm:$0xff]
  %v4888 = vld [vmem:[%s9 + $0x138] sm:$0xff]
  %v4889 = vld [vmem:[%s9 + $0x140] sm:$0xff]
  %v4890 = vld [vmem:[%s9 + $0x148] sm:$0xff]
  %v4891 = vld [vmem:[%s9 + $0x150] sm:$0xff]
  %v4892 = vld [vmem:[%s9 + $0x158] sm:$0xff]
  %v4893 = vld [vmem:[%s9 + $0x160] sm:$0xff]
  %v4894 = vld [vmem:[%s9 + $0x168] sm:$0xff]
  %v4895 = vld [vmem:[%s9 + $0x170] sm:$0xff]
  %v4896 = vld [vmem:[%s9 + $0x178] sm:$0xff]
  %v4897 = vld [vmem:[%s9 + $0x180] sm:$0xff]
  %v4898 = vld [vmem:[%s9 + $0x188] sm:$0xff]
  %v4899 = vld [vmem:[%s9 + $0x190] sm:$0xff]
  %v4900 = vld [vmem:[%s9 + $0x198] sm:$0xff]
  %v4901 = vld [vmem:[%s9 + $0x1a0] sm:$0xff]
  %v4902 = vld [vmem:[%s9 + $0x1a8] sm:$0xff]
  %v4903 = vld [vmem:[%s9 + $0x1b0] sm:$0xff]
  %v4904 = vld [vmem:[%s9 + $0x1b8] sm:$0xff]
  %v4905 = vld [vmem:[%s9 + $0x1c0] sm:$0xff]
  %v4906 = vld [vmem:[%s9 + $0x1c8] sm:$0xff]
  %v4907 = vld [vmem:[%s9 + $0x1d0] sm:$0xff]
  %v4908 = vld [vmem:[%s9 + $0x1d8] sm:$0xff]
  %v4909 = vld [vmem:[%s9 + $0x1e0] sm:$0xff]
  %v4910 = vld [vmem:[%s9 + $0x1e8] sm:$0xff]
  %v4911 = vld [vmem:[%s9 + $0x1f0] sm:$0xff]
  %v4912 = vld [vmem:[%s9 + $0x1f8] sm:$0xff]
  %v4913 = vld [vmem:[%s9 + $0x200] sm:$0xff]
  %v4914 = vld [vmem:[%s9 + $0x208] sm:$0xff]
  %v4915 = vld [vmem:[%s9 + $0x210] sm:$0xff]
  %v4916 = vld [vmem:[%s9 + $0x218] sm:$0xff]
  %v4917 = vld [vmem:[%s9 + $0x220] sm:$0xff]
  %v4918 = vld [vmem:[%s9 + $0x228] sm:$0xff]
  %v4919 = vld [vmem:[%s9 + $0x230] sm:$0xff]
  %v4920 = vld [vmem:[%s9 + $0x238] sm:$0xff]
  %v4921 = vld [vmem:[%s9 + $0x240] sm:$0xff]
  %v4922 = vld [vmem:[%s9 + $0x248] sm:$0xff]
  %v4923 = vld [vmem:[%s9 + $0x250] sm:$0xff]
  %v4924 = vld [vmem:[%s9 + $0x258] sm:$0xff]
  %v4925 = vld [vmem:[%s9 + $0x260] sm:$0xff]
  %v4926 = vld [vmem:[%s9 + $0x268] sm:$0xff]
  %v4927 = vld [vmem:[%s9 + $0x270] sm:$0xff]
  %v4928 = vld [vmem:[%s9 + $0x278] sm:$0xff]
  %v4929 = vld [vmem:[%s9 + $0x280] sm:$0xff]
  %v4930 = vld [vmem:[%s9 + $0x288] sm:$0xff]
  %v4931 = vld [vmem:[%s9 + $0x290] sm:$0xff]
  %v4932 = vld [vmem:[%s9 + $0x298] sm:$0xff]
  %v4933 = vld [vmem:[%s9 + $0x2a0] sm:$0xff]
  %v4934 = vld [vmem:[%s9 + $0x2a8] sm:$0xff]
  %v4935 = vld [vmem:[%s9 + $0x2b0] sm:$0xff]
  %v4936 = vld [vmem:[%s9 + $0x2b8] sm:$0xff]
  %v4937 = vld [vmem:[%s9 + $0x2c0] sm:$0xff]
  %v4938 = vld [vmem:[%s9 + $0x2c8] sm:$0xff]
  %v4939 = vld [vmem:[%s9 + $0x2d0] sm:$0xff]
  %v4940 = vld [vmem:[%s9 + $0x2d8] sm:$0xff]
  %v4941 = vld [vmem:[%s9 + $0x2e0] sm:$0xff]
  %v4942 = vld [vmem:[%s9 + $0x2e8] sm:$0xff]
  %v4943 = vld [vmem:[%s9 + $0x2f0] sm:$0xff]
  %v4944 = vld [vmem:[%s9 + $0x2f8] sm:$0xff]
  %v4945 = vld [vmem:[%s9 + $0x300] sm:$0xff]
  %v4946 = vld [vmem:[%s9 + $0x308] sm:$0xff]
  %v4947 = vld [vmem:[%s9 + $0x310] sm:$0xff]
  %v4948 = vld [vmem:[%s9 + $0x318] sm:$0xff]
  %v4949 = vld [vmem:[%s9 + $0x320] sm:$0xff]
  %v4950 = vld [vmem:[%s9 + $0x328] sm:$0xff]
  %v4951 = vld [vmem:[%s9 + $0x330] sm:$0xff]
  %v4952 = vld [vmem:[%s9 + $0x338] sm:$0xff]
  %v4953 = vld [vmem:[%s9 + $0x340] sm:$0xff]
  %v4954 = vld [vmem:[%s9 + $0x348] sm:$0xff]
  %v4955 = vld [vmem:[%s9 + $0x350] sm:$0xff]
  %v4956 = vld [vmem:[%s9 + $0x358] sm:$0xff]
  %v4957 = vld [vmem:[%s9 + $0x360] sm:$0xff]
  %v4958 = vld [vmem:[%s9 + $0x368] sm:$0xff]
  %v4959 = vld [vmem:[%s9 + $0x370] sm:$0xff]
  %v4960 = vld [vmem:[%s9 + $0x378] sm:$0xff]
  %v4961 = vld [vmem:[%s9 + $0x380] sm:$0xff]
  %v4962 = vld [vmem:[%s9 + $0x388] sm:$0xff]
  %v4963 = vld [vmem:[%s9 + $0x390] sm:$0xff]
  %v4964 = vld [vmem:[%s9 + $0x398] sm:$0xff]
  %v4965 = vld [vmem:[%s9 + $0x3a0] sm:$0xff]
  %v4966 = vld [vmem:[%s9 + $0x3a8] sm:$0xff]
  %v4967 = vld [vmem:[%s9 + $0x3b0] sm:$0xff]
  %v4968 = vld [vmem:[%s9 + $0x3b8] sm:$0xff]
  %v4969 = vld [vmem:[%s9 + $0x3c0] sm:$0xff]
  %v4970 = vld [vmem:[%s9 + $0x3c8] sm:$0xff]
  %v4971 = vld [vmem:[%s9 + $0x3d0] sm:$0xff]
  %v4972 = vld [vmem:[%s9 + $0x3d8] sm:$0xff]
  %v4973 = vld [vmem:[%s9 + $0x3e0] sm:$0xff]
  %v4974 = vld [vmem:[%s9 + $0x3e8] sm:$0xff]
  %v4975 = vld [vmem:[%s9 + $0x3f0] sm:$0xff]
  %v4976 = vld [vmem:[%s9 + $0x3f8] sm:$0xff]
  %v4977 = vld [vmem:[%s10] sm:$0x1]
  %v4979 = vlaneseq
  %v4980 = vshrl.u32 %v4979, 7
  %v4981 = vsub.s32 0, %v4980
  %v4982 = vrot.slane %v4977, %v4981
  %4984 = vmatprep.subr.mxu0 0.0
  %4985 = vmatpush1.msra.mxu0 %v4864
  %4986 = vmatprep.subr.mxu0 0.0
  %4987 = vmatpush1.msra.mxu0 %v4863
  %4988 = vmatprep.subr.mxu0 0.0
  %4989 = vmatpush1.msra.mxu0 %v4862
  %4990 = vmatprep.subr.mxu0 0.0
  %4991 = vmatpush1.msra.mxu0 %v4861
  %4992 = vmatprep.subr.mxu0 0.0
  %4993 = vmatpush1.msra.mxu0 %v4860
  %4994 = vmatprep.subr.mxu0 0.0
  %4995 = vmatpush1.msra.mxu0 %v4859
  %4996 = vmatprep.subr.mxu0 0.0
  %4997 = vmatpush1.msra.mxu0 %v4858
  %4998 = vmatprep.subr.mxu0 0.0
  %4999 = vmatpush1.msra.mxu0 %v4857
  %5000 = vmatprep.subr.mxu0 0.0
  %5001 = vmatpush1.msra.mxu0 %v4856
  %5002 = vmatprep.subr.mxu0 0.0
  %5003 = vmatpush1.msra.mxu0 %v4855
  %5004 = vmatprep.subr.mxu0 0.0
  %5005 = vmatpush1.msra.mxu0 %v4854
  %5006 = vmatprep.subr.mxu0 0.0
  %5007 = vmatpush1.msra.mxu0 %v4853
  %5008 = vmatprep.subr.mxu0 0.0
  %5009 = vmatpush1.msra.mxu0 %v4852
  %5010 = vmatprep.subr.mxu0 0.0
  %5011 = vmatpush1.msra.mxu0 %v4851
  %5012 = vmatprep.subr.mxu0 0.0
  %5013 = vmatpush1.msra.mxu0 %v4850
  %5014 = vmatprep.subr.mxu0 0.0
  %5015 = vmatpush1.msra.mxu0 %v4849
  %5016 = vmatprep.subr.mxu0 0.0
  %5017 = vmatpush2.msra.mxu0 %v4880
  %5018 = vmatprep.subr.mxu0 0.0
  %5019 = vmatpush2.msra.mxu0 %v4879
  %5020 = vmatprep.subr.mxu0 0.0
  %5021 = vmatpush2.msra.mxu0 %v4878
  %5022 = vmatprep.subr.mxu0 0.0
  %5023 = vmatpush2.msra.mxu0 %v4877
  %5024 = vmatprep.subr.mxu0 0.0
  %5025 = vmatpush2.msra.mxu0 %v4876
  %5026 = vmatprep.subr.mxu0 0.0
  %5027 = vmatpush2.msra.mxu0 %v4875
  %5028 = vmatprep.subr.mxu0 0.0
  %5029 = vmatpush2.msra.mxu0 %v4874
  %5030 = vmatprep.subr.mxu0 0.0
  %5031 = vmatpush2.msra.mxu0 %v4873
  %5032 = vmatprep.subr.mxu0 0.0
  %5033 = vmatpush2.msra.mxu0 %v4872
  %5034 = vmatprep.subr.mxu0 0.0
  %5035 = vmatpush2.msra.mxu0 %v4871
  %5036 = vmatprep.subr.mxu0 0.0
  %5037 = vmatpush2.msra.mxu0 %v4870
  %5038 = vmatprep.subr.mxu0 0.0
  %5039 = vmatpush2.msra.mxu0 %v4869
  %5040 = vmatprep.subr.mxu0 0.0
  %5041 = vmatpush2.msra.mxu0 %v4868
  %5042 = vmatprep.subr.mxu0 0.0
  %5043 = vmatpush2.msra.mxu0 %v4867
  %5044 = vmatprep.subr.mxu0 0.0
  %5045 = vmatpush2.msra.mxu0 %v4866
  %5046 = vmatprep.subr.mxu0 0.0
  %5047 = vmatpush2.msra.mxu0 %v4865
  %5048 = vmatprep.mubr.f32.mxu0 %v4842
  %5049 = vmatmul.mubr.f32.gmra.mxu0 %v4841
  %v5050 = vpop.f32.mrf.mxu0
  %v5051 = vadd.f32 %v4982, %v5050
  %v5052 = vpop.f32.mrf.mxu0
  %5053 = vdwg.mxu0
  %5054 = vmatprep.subr.mxu0 0.0
  %5055 = vmatpush1.msra.mxu0 %v4896
  %5056 = vmatprep.subr.mxu0 0.0
  %5057 = vmatpush1.msra.mxu0 %v4895
  %5058 = vmatprep.subr.mxu0 0.0
  %5059 = vmatpush1.msra.mxu0 %v4894
  %5060 = vmatprep.subr.mxu0 0.0
  %5061 = vmatpush1.msra.mxu0 %v4893
  %5062 = vmatprep.subr.mxu0 0.0
  %5063 = vmatpush1.msra.mxu0 %v4892
  %5064 = vmatprep.subr.mxu0 0.0
  %5065 = vmatpush1.msra.mxu0 %v4891
  %5066 = vmatprep.subr.mxu0 0.0
  %5067 = vmatpush1.msra.mxu0 %v4890
  %5068 = vmatprep.subr.mxu0 0.0
  %5069 = vmatpush1.msra.mxu0 %v4889
  %5070 = vmatprep.subr.mxu0 0.0
  %5071 = vmatpush1.msra.mxu0 %v4888
  %5072 = vmatprep.subr.mxu0 0.0
  %5073 = vmatpush1.msra.mxu0 %v4887
  %5074 = vmatprep.subr.mxu0 0.0
  %5075 = vmatpush1.msra.mxu0 %v4886
  %5076 = vmatprep.subr.mxu0 0.0
  %5077 = vmatpush1.msra.mxu0 %v4885
  %5078 = vmatprep.subr.mxu0 0.0
  %5079 = vmatpush1.msra.mxu0 %v4884
  %5080 = vmatprep.subr.mxu0 0.0
  %5081 = vmatpush1.msra.mxu0 %v4883
  %5082 = vmatprep.subr.mxu0 0.0
  %5083 = vmatpush1.msra.mxu0 %v4882
  %5084 = vmatprep.subr.mxu0 0.0
  %5085 = vmatpush1.msra.mxu0 %v4881
  %5086 = vmatprep.subr.mxu0 0.0
  %5087 = vmatpush2.msra.mxu0 %v4912
  %5088 = vmatprep.subr.mxu0 0.0
  %5089 = vmatpush2.msra.mxu0 %v4911
  %5090 = vmatprep.subr.mxu0 0.0
  %5091 = vmatpush2.msra.mxu0 %v4910
  %5092 = vmatprep.subr.mxu0 0.0
  %5093 = vmatpush2.msra.mxu0 %v4909
  %5094 = vmatprep.subr.mxu0 0.0
  %5095 = vmatpush2.msra.mxu0 %v4908
  %5096 = vmatprep.subr.mxu0 0.0
  %5097 = vmatpush2.msra.mxu0 %v4907
  %5098 = vmatprep.subr.mxu0 0.0
  %5099 = vmatpush2.msra.mxu0 %v4906
  %5100 = vmatprep.subr.mxu0 0.0
  %5101 = vmatpush2.msra.mxu0 %v4905
  %5102 = vmatprep.subr.mxu0 0.0
  %5103 = vmatpush2.msra.mxu0 %v4904
  %5104 = vmatprep.subr.mxu0 0.0
  %5105 = vmatpush2.msra.mxu0 %v4903
  %5106 = vmatprep.subr.mxu0 0.0
  %5107 = vmatpush2.msra.mxu0 %v4902
  %5108 = vmatprep.subr.mxu0 0.0
  %5109 = vmatpush2.msra.mxu0 %v4901
  %5110 = vmatprep.subr.mxu0 0.0
  %5111 = vmatpush2.msra.mxu0 %v4900
  %5112 = vmatprep.subr.mxu0 0.0
  %5113 = vmatpush2.msra.mxu0 %v4899
  %5114 = vmatprep.subr.mxu0 0.0
  %5115 = vmatpush2.msra.mxu0 %v4898
  %5116 = vmatprep.subr.mxu0 0.0
  %5117 = vmatpush2.msra.mxu0 %v4897
  %5118 = vmatprep.mubr.f32.mxu0 %v4844
  %5119 = vmatmul.mubr.f32.gmra.mxu0 %v4843
  %v5120 = vpop.f32.mrf.mxu0
  %v5121 = vadd.f32 %v5051, %v5120
  %v5122 = vpop.f32.mrf.mxu0
  %5123 = vdwg.mxu0
  %5124 = vmatprep.subr.mxu0 0.0
  %5125 = vmatpush1.msra.mxu0 %v4928
  %5126 = vmatprep.subr.mxu0 0.0
  %5127 = vmatpush1.msra.mxu0 %v4927
  %5128 = vmatprep.subr.mxu0 0.0
  %5129 = vmatpush1.msra.mxu0 %v4926
  %5130 = vmatprep.subr.mxu0 0.0
  %5131 = vmatpush1.msra.mxu0 %v4925
  %5132 = vmatprep.subr.mxu0 0.0
  %5133 = vmatpush1.msra.mxu0 %v4924
  %5134 = vmatprep.subr.mxu0 0.0
  %5135 = vmatpush1.msra.mxu0 %v4923
  %5136 = vmatprep.subr.mxu0 0.0
  %5137 = vmatpush1.msra.mxu0 %v4922
  %5138 = vmatprep.subr.mxu0 0.0
  %5139 = vmatpush1.msra.mxu0 %v4921
  %5140 = vmatprep.subr.mxu0 0.0
  %5141 = vmatpush1.msra.mxu0 %v4920
  %5142 = vmatprep.subr.mxu0 0.0
  %5143 = vmatpush1.msra.mxu0 %v4919
  %5144 = vmatprep.subr.mxu0 0.0
  %5145 = vmatpush1.msra.mxu0 %v4918
  %5146 = vmatprep.subr.mxu0 0.0
  %5147 = vmatpush1.msra.mxu0 %v4917
  %5148 = vmatprep.subr.mxu0 0.0
  %5149 = vmatpush1.msra.mxu0 %v4916
  %5150 = vmatprep.subr.mxu0 0.0
  %5151 = vmatpush1.msra.mxu0 %v4915
  %5152 = vmatprep.subr.mxu0 0.0
  %5153 = vmatpush1.msra.mxu0 %v4914
  %5154 = vmatprep.subr.mxu0 0.0
  %5155 = vmatpush1.msra.mxu0 %v4913
  %5156 = vmatprep.subr.mxu0 0.0
  %5157 = vmatpush2.msra.mxu0 %v4944
  %5158 = vmatprep.subr.mxu0 0.0
  %5159 = vmatpush2.msra.mxu0 %v4943
  %5160 = vmatprep.subr.mxu0 0.0
  %5161 = vmatpush2.msra.mxu0 %v4942
  %5162 = vmatprep.subr.mxu0 0.0
  %5163 = vmatpush2.msra.mxu0 %v4941
  %5164 = vmatprep.subr.mxu0 0.0
  %5165 = vmatpush2.msra.mxu0 %v4940
  %5166 = vmatprep.subr.mxu0 0.0
  %5167 = vmatpush2.msra.mxu0 %v4939
  %5168 = vmatprep.subr.mxu0 0.0
  %5169 = vmatpush2.msra.mxu0 %v4938
  %5170 = vmatprep.subr.mxu0 0.0
  %5171 = vmatpush2.msra.mxu0 %v4937
  %5172 = vmatprep.subr.mxu0 0.0
  %5173 = vmatpush2.msra.mxu0 %v4936
  %5174 = vmatprep.subr.mxu0 0.0
  %5175 = vmatpush2.msra.mxu0 %v4935
  %5176 = vmatprep.subr.mxu0 0.0
  %5177 = vmatpush2.msra.mxu0 %v4934
  %5178 = vmatprep.subr.mxu0 0.0
  %5179 = vmatpush2.msra.mxu0 %v4933
  %5180 = vmatprep.subr.mxu0 0.0
  %5181 = vmatpush2.msra.mxu0 %v4932
  %5182 = vmatprep.subr.mxu0 0.0
  %5183 = vmatpush2.msra.mxu0 %v4931
  %5184 = vmatprep.subr.mxu0 0.0
  %5185 = vmatpush2.msra.mxu0 %v4930
  %5186 = vmatprep.subr.mxu0 0.0
  %5187 = vmatpush2.msra.mxu0 %v4929
  %5188 = vmatprep.mubr.f32.mxu0 %v4846
  %5189 = vmatmul.mubr.f32.gmra.mxu0 %v4845
  %v5190 = vpop.f32.mrf.mxu0
  %v5191 = vadd.f32 %v5121, %v5190
  %v5192 = vpop.f32.mrf.mxu0
  %5193 = vdwg.mxu0
  %5194 = vmatprep.subr.mxu0 0.0
  %5195 = vmatpush1.msra.mxu0 %v4960
  %5196 = vmatprep.subr.mxu0 0.0
  %5197 = vmatpush1.msra.mxu0 %v4959
  %5198 = vmatprep.subr.mxu0 0.0
  %5199 = vmatpush1.msra.mxu0 %v4958
  %5200 = vmatprep.subr.mxu0 0.0
  %5201 = vmatpush1.msra.mxu0 %v4957
  %5202 = vmatprep.subr.mxu0 0.0
  %5203 = vmatpush1.msra.mxu0 %v4956
  %5204 = vmatprep.subr.mxu0 0.0
  %5205 = vmatpush1.msra.mxu0 %v4955
  %5206 = vmatprep.subr.mxu0 0.0
  %5207 = vmatpush1.msra.mxu0 %v4954
  %5208 = vmatprep.subr.mxu0 0.0
  %5209 = vmatpush1.msra.mxu0 %v4953
  %5210 = vmatprep.subr.mxu0 0.0
  %5211 = vmatpush1.msra.mxu0 %v4952
  %5212 = vmatprep.subr.mxu0 0.0
  %5213 = vmatpush1.msra.mxu0 %v4951
  %5214 = vmatprep.subr.mxu0 0.0
  %5215 = vmatpush1.msra.mxu0 %v4950
  %5216 = vmatprep.subr.mxu0 0.0
  %5217 = vmatpush1.msra.mxu0 %v4949
  %5218 = vmatprep.subr.mxu0 0.0
  %5219 = vmatpush1.msra.mxu0 %v4948
  %5220 = vmatprep.subr.mxu0 0.0
  %5221 = vmatpush1.msra.mxu0 %v4947
  %5222 = vmatprep.subr.mxu0 0.0
  %5223 = vmatpush1.msra.mxu0 %v4946
  %5224 = vmatprep.subr.mxu0 0.0
  %5225 = vmatpush1.msra.mxu0 %v4945
  %5226 = vmatprep.subr.mxu0 0.0
  %5227 = vmatpush2.msra.mxu0 %v4976
  %5228 = vmatprep.subr.mxu0 0.0
  %5229 = vmatpush2.msra.mxu0 %v4975
  %5230 = vmatprep.subr.mxu0 0.0
  %5231 = vmatpush2.msra.mxu0 %v4974
  %5232 = vmatprep.subr.mxu0 0.0
  %5233 = vmatpush2.msra.mxu0 %v4973
  %5234 = vmatprep.subr.mxu0 0.0
  %5235 = vmatpush2.msra.mxu0 %v4972
  %5236 = vmatprep.subr.mxu0 0.0
  %5237 = vmatpush2.msra.mxu0 %v4971
  %5238 = vmatprep.subr.mxu0 0.0
  %5239 = vmatpush2.msra.mxu0 %v4970
  %5240 = vmatprep.subr.mxu0 0.0
  %5241 = vmatpush2.msra.mxu0 %v4969
  %5242 = vmatprep.subr.mxu0 0.0
  %5243 = vmatpush2.msra.mxu0 %v4968
  %5244 = vmatprep.subr.mxu0 0.0
  %5245 = vmatpush2.msra.mxu0 %v4967
  %5246 = vmatprep.subr.mxu0 0.0
  %5247 = vmatpush2.msra.mxu0 %v4966
  %5248 = vmatprep.subr.mxu0 0.0
  %5249 = vmatpush2.msra.mxu0 %v4965
  %5250 = vmatprep.subr.mxu0 0.0
  %5251 = vmatpush2.msra.mxu0 %v4964
  %5252 = vmatprep.subr.mxu0 0.0
  %5253 = vmatpush2.msra.mxu0 %v4963
  %5254 = vmatprep.subr.mxu0 0.0
  %5255 = vmatpush2.msra.mxu0 %v4962
  %5256 = vmatprep.subr.mxu0 0.0
  %5257 = vmatpush2.msra.mxu0 %v4961
  %5258 = vmatprep.mubr.f32.mxu0 %v4848
  %5259 = vmatmul.mubr.f32.gmra.mxu0 %v4847
  %v5260 = vpop.f32.mrf.mxu0
  %v5261 = vadd.f32 %v5191, %v5260
  %v5262 = vpop.f32.mrf.mxu0
  %5263 = vdwg.mxu0
  %5264 = vst [vmem:[%s11] sm:$0xff] %v5261
  // Predicated region
  $region46: #{forward.1} parent=0 // pred_check
    _
  $region47: #{forward.1} parent=0 // pred_check_branch
    %5266 = sbr.rel (0) target = $region49
  $region48: #{forward.1} parent=0 // pred_region
    _
  $region49: #{forward.1} parent=0 // pred_fallthru
    _
  // Predicated region
  $region50: #{forward.1} parent=0 // pred_check
    _
  $region51: #{forward.1} parent=0 // pred_check_branch
    %5268 = sbr.rel (0) target = $region53
  $region52: #{forward.1} parent=0 // pred_region
    _
  $region53: #{forward.1} parent=0 // pred_fallthru
    _

</llo_original>
